<compile_context>
chip_gen: v7x
topology: tpu7x:2x2x1
jax: 0.10.0
libtpu: 0.0.40
codegen_flags: <defaults>
</compile_context>

<pallas_src>
import functools

import jax
import jax.numpy as jnp
from jax.experimental import pallas as pl
from jax.experimental.pallas import tpu as pltpu


# --------------------------- in-kernel helpers ---------------------------

def _conv3x3_im2col(src_flat, w_flat, *, m, wpad, cin, cout):
    """3x3 VALID conv (stride 1, no bias) as ONE im2col matmul.

    src_flat: (R, cin) value = the (H, wpad, cin) image flattened over (H, W),
              with R >= m + 2*wpad + 2.
    w_flat:   (9*cin, cout) value, rows ordered (kh, kw, cin).
    Returns   (m, cout) f32; flat row r = h*wpad + w_col holds output pixel
              (h, w_col).  Columns w_col >= wpad - 2 (and the trailing slack
              rows) hold row-wrap garbage and are never read downstream.
    """
    glen = m + 2 * wpad
    # g[r] = [src[r], src[r+1], src[r+2]]  -> the 3 kw taps, lane-concatenated.
    g = jnp.concatenate([src_flat[k:k + glen, :] for k in range(3)], axis=-1)
    # cols[r] = [g[r], g[r+wpad], g[r+2*wpad]] -> 3 kh taps (8-aligned slices).
    cols = jnp.concatenate(
        [g[kh * wpad:kh * wpad + m, :] for kh in range(3)], axis=-1)  # (m, 9*cin)
    return jnp.dot(cols, w_flat, preferred_element_type=jnp.float32)  # (m, cout)


def _pool3x3s2_bias_relu(src_flat, bias, *, wpad, oh_out, ow_out, cout):
    """3x3 / stride-2 VALID max-pool fused with (+bias, ReLU), vectorized.

    src_flat: (R, cout) value = conv output flattened over (H, wpad), with
              R >= (2*oh_out + 2)*wpad + 2.
    bias:     (1, cout) value.
    Returns   (oh_out, ow_out, cout).  Output columns whose window touches
              source columns >= wpad - 2 carry garbage (caller never reads
              them).  relu(max(x) + b) == max(relu(x + b)) since +b and relu
              are monotone, so fusing bias+ReLU after the max is exact.
    """
    nrows = 2 * oh_out + 2
    L = nrows * wpad
    # Width-direction 3-max over the full width in the flat domain (the row
    # wrap only pollutes the last two columns of each row).
    w3 = jnp.maximum(jnp.maximum(src_flat[0:L, :], src_flat[1:L + 1, :]),
                     src_flat[2:L + 2, :]).reshape(nrows, wpad, cout)
    # Height-direction 3-max, stride 2, via free leading-axis reshapes.
    a = w3[0:2 * oh_out].reshape(oh_out, 2, wpad, cout)
    r = jnp.maximum(a[:, 0], a[:, 1])                               # rows 2i, 2i+1
    r = jnp.maximum(
        r, w3[2:2 * oh_out + 2].reshape(oh_out, 2, wpad, cout)[:, 0])  # rows 2i+2
    # Stride-2 column decimation: ow_out single-sublane picks + one concat.
    dec = jnp.concatenate(
        [r[:, 2 * j:2 * j + 1, :] for j in range(ow_out)], axis=1)  # (oh_out, ow_out, cout)
    return jnp.maximum(dec + bias.reshape(1, 1, cout), 0.0)


# ------------------------------ fused kernel ------------------------------

def _net1_kernel(x_ref, w1_ref, b1_ref, w2_ref, b2_ref, o_ref, *, dims):
    (h_pad, w, cin, cout, m1, ph1, pw1_pad, p1_extra, m2, ph2, pw2) = dims

    # conv1 -> pool1 (+bias1, relu)
    x_flat = x_ref[...].reshape(h_pad * w, cin)
    y1 = _conv3x3_im2col(x_flat, w1_ref[...], m=m1, wpad=w, cin=cin, cout=cout)
    p1 = _pool3x3s2_bias_relu(y1, b1_ref[...], wpad=w, oh_out=ph1,
                              ow_out=pw1_pad, cout=cout)          # (ph1, pw1_pad, cout)

    # pool1 output (garbage in cols >= pw1, never read) + zero slack rows.
    p1_flat = p1.reshape(ph1 * pw1_pad, cout)
    if p1_extra:
        p1_flat = jnp.concatenate(
            [p1_flat, jnp.zeros((p1_extra, cout), jnp.float32)], axis=0)

    # conv2 -> pool2 (+bias2, relu) -> output block
    y2 = _conv3x3_im2col(p1_flat, w2_ref[...], m=m2, wpad=pw1_pad,
                         cin=cout, cout=cout)
    o_ref[...] = _pool3x3s2_bias_relu(y2, b2_ref[...], wpad=pw1_pad,
                                      oh_out=ph2, ow_out=pw2, cout=cout)


def _round_up(v, m):
    return (v + m - 1) // m * m


@jax.jit
def net1_forward(x_nchw, w1_hwio, b1, w2_hwio, b2):
    n, cin, h, w = x_nchw.shape
    cout = w1_hwio.shape[-1]

    oh1, ow1 = h - 2, w - 2                                # conv1 out
    ph1, pw1 = (oh1 - 3) // 2 + 1, (ow1 - 3) // 2 + 1      # pool1 out
    pw1_pad = _round_up(pw1, 8)
    oh2, ow2 = ph1 - 2, pw1 - 2                            # conv2 out (valid)
    ph2, pw2 = (oh2 - 3) // 2 + 1, (ow2 - 3) // 2 + 1      # pool2 out

    # Flat geometry.  Conv outputs carry a little slack (rounded to 8 rows) so
    # every flat width-shift slice in the pools stays in bounds; slack rows /
    # wrap columns are never read.
    m1 = _round_up((2 * ph1 + 2) * w + 2, 8)               # conv1 flat rows
    h_pad = pl.cdiv(m1 + 2 * w + 2, w)                     # conv1 source rows
    m2 = _round_up((2 * ph2 + 2) * pw1_pad + 2, 8)         # conv2 flat rows
    p1_extra = max(0, _round_up(m2 + 2 * pw1_pad + 2, 8) - ph1 * pw1_pad)

    x = jnp.transpose(x_nchw, (0, 2, 3, 1))                # NCHW -> NHWC
    x = jnp.pad(x, ((0, 0), (0, h_pad - h), (0, 0), (0, 0)))
    w1g = w1_hwio.reshape(9 * cin, cout)                   # rows = (kh, kw, cin)
    w2g = w2_hwio.reshape(9 * cout, cout)

    dims = (h_pad, w, cin, cout, m1, ph1, pw1_pad, p1_extra, m2, ph2, pw2)
    kernel = functools.partial(_net1_kernel, dims=dims)

    out = pl.pallas_call(
        kernel,
        out_shape=jax.ShapeDtypeStruct((n, ph2, pw2, cout), jnp.float32),
        grid_spec=pltpu.PrefetchScalarGridSpec(
            num_scalar_prefetch=0,
            grid=(n,),
            in_specs=[
                pl.BlockSpec((None, h_pad, w, cin), lambda i: (i, 0, 0, 0)),
                pl.BlockSpec((9 * cin, cout), lambda i: (0, 0)),
                pl.BlockSpec((1, cout), lambda i: (0, 0)),
                pl.BlockSpec((9 * cout, cout), lambda i: (0, 0)),
                pl.BlockSpec((1, cout), lambda i: (0, 0)),
            ],
            out_specs=pl.BlockSpec((None, ph2, pw2, cout),
                                   lambda i: (i, 0, 0, 0)),
        ),
        compiler_params=pltpu.CompilerParams(
            dimension_semantics=("parallel",)),            # batch across TCs (v7x)
    )(x, w1g, b1.reshape(1, cout), w2g, b2.reshape(1, cout))
    return jnp.transpose(out, (0, 3, 1, 2))                # NHWC -> NCHW


# ------------------------------ pure-JAX reference ------------------------------

def net1_reference(x_nchw, w1, b1, w2, b2):
    x = jnp.transpose(x_nchw, (0, 2, 3, 1))

    def conv(x, w, b):
        y = jax.lax.conv_general_dilated(
            x, w, window_strides=(1, 1), padding="VALID",
            dimension_numbers=("NHWC", "HWIO", "NHWC"),
            precision=jax.lax.Precision.HIGHEST)
        return jax.nn.relu(y + b)

    def pool(x):
        return jax.lax.reduce_window(
            x, -jnp.inf, jax.lax.max,
            window_dimensions=(1, 3, 3, 1), window_strides=(1, 2, 2, 1),
            padding="VALID")

    y = pool(conv(x, w1, b1))
    y = pool(conv(y, w2, b2))
    return jnp.transpose(y, (0, 3, 1, 2))


if __name__ == "__main__":
    key = jax.random.PRNGKey(0)
    kx, k1, k2, k3, k4 = jax.random.split(key, 5)

    # Net1 parameters (PyTorch OIHW shapes), converted to HWIO for NHWC kernels.
    w1_oihw = jax.random.normal(k1, (64, 3, 3, 3), jnp.float32) * 0.1
    b1 = jax.random.normal(k2, (64,), jnp.float32) * 0.1
    w2_oihw = jax.random.normal(k3, (64, 64, 3, 3), jnp.float32) * 0.05
    b2 = jax.random.normal(k4, (64,), jnp.float32) * 0.05
    w1 = jnp.transpose(w1_oihw, (2, 3, 1, 0))   # HWIO
    w2 = jnp.transpose(w2_oihw, (2, 3, 1, 0))   # HWIO

    # Input: NCHW like PyTorch (3 channels as required by conv1).
    x = jax.random.normal(kx, (2, 3, 32, 32), jnp.float32)

    out = jax.block_until_ready(net1_forward(x, w1, b1, w2, b2))
    ref = jax.block_until_ready(net1_reference(x, w1, b1, w2, b2))

    assert out.shape == (2, 64, 5, 5), out.shape
    err = float(jnp.max(jnp.abs(out - ref)))
    assert err < 3e-3, f"max abs error vs reference = {err}"
    print("KERNEL_OK")
</pallas_src>

<mosaic_0001>
module attributes {stable_mosaic.version = 11 : i64} {
  func.func @_net1_kernel(%arg0: i32, %arg1: memref<1x33x32x3xf32, #tpu.memory_space<vmem>>, %arg2: memref<27x64xf32, #tpu.memory_space<vmem>>, %arg3: memref<1x64xf32, #tpu.memory_space<vmem>>, %arg4: memref<576x64xf32, #tpu.memory_space<vmem>>, %arg5: memref<1x64xf32, #tpu.memory_space<vmem>>, %arg6: memref<1x5x5x64xf32, #tpu.memory_space<vmem>>) attributes {dimension_semantics = [#tpu.dimension_semantics<parallel>], iteration_bounds = array<i64: 2>, scalar_prefetch = 0 : i64, scratch_operands = 0 : i64, tpu.core_type = #tpu.core_type<tc>, window_params = [{transform_indices = @transform_0, window_bounds = array<i64: 1, 33, 32, 3>}, {pipeline_mode = #tpu.pipeline_mode<synchronous>, transform_indices = @transform_1, window_bounds = array<i64: 27, 64>}, {pipeline_mode = #tpu.pipeline_mode<synchronous>, transform_indices = @transform_2, window_bounds = array<i64: 1, 64>}, {pipeline_mode = #tpu.pipeline_mode<synchronous>, transform_indices = @transform_3, window_bounds = array<i64: 576, 64>}, {pipeline_mode = #tpu.pipeline_mode<synchronous>, transform_indices = @transform_4, window_bounds = array<i64: 1, 64>}, {transform_indices = @transform_5, window_bounds = array<i64: 1, 5, 5, 64>}]} {
    %c0 = arith.constant 0 : index
    %c0_0 = arith.constant 0 : index
    %c0_1 = arith.constant 0 : index
    %c0_2 = arith.constant 0 : index
    %0 = vector.load %arg1[%c0, %c0_0, %c0_1, %c0_2] : memref<1x33x32x3xf32, #tpu.memory_space<vmem>>, vector<1x33x32x3xf32>
    %1 = vector.shape_cast %0 : vector<1x33x32x3xf32> to vector<33x32x3xf32>
    %2 = vector.shape_cast %1 : vector<33x32x3xf32> to vector<1056x3xf32>
    %c0_3 = arith.constant 0 : index
    %c0_4 = arith.constant 0 : index
    %3 = vector.load %arg2[%c0_3, %c0_4] : memref<27x64xf32, #tpu.memory_space<vmem>>, vector<27x64xf32>
    %4 = vector.extract_strided_slice %2 {offsets = [0, 0], sizes = [1032, 3], strides = [1, 1]} : vector<1056x3xf32> to vector<1032x3xf32>
    %5 = vector.extract_strided_slice %2 {offsets = [1, 0], sizes = [1032, 3], strides = [1, 1]} : vector<1056x3xf32> to vector<1032x3xf32>
    %6 = vector.extract_strided_slice %2 {offsets = [2, 0], sizes = [1032, 3], strides = [1, 1]} : vector<1056x3xf32> to vector<1032x3xf32>
    %7 = tpu.concatenate %4, %5, %6 in 1 : vector<1032x3xf32>, vector<1032x3xf32>, vector<1032x3xf32> -> vector<1032x9xf32>
    %8 = vector.extract_strided_slice %7 {offsets = [0, 0], sizes = [968, 9], strides = [1, 1]} : vector<1032x9xf32> to vector<968x9xf32>
    %9 = vector.extract_strided_slice %7 {offsets = [32, 0], sizes = [968, 9], strides = [1, 1]} : vector<1032x9xf32> to vector<968x9xf32>
    %10 = vector.extract_strided_slice %7 {offsets = [64, 0], sizes = [968, 9], strides = [1, 1]} : vector<1032x9xf32> to vector<968x9xf32>
    %11 = tpu.concatenate %8, %9, %10 in 1 : vector<968x9xf32>, vector<968x9xf32>, vector<968x9xf32> -> vector<968x27xf32>
    %cst = arith.constant dense<0.000000e+00> : vector<968x64xf32>
    %12 = tpu.matmul %11, %3, %cst {dimension_numbers = #tpu.dot_dimension_numbers<[1], [0], [0], [1], [0, 0, 1, 1], [], []>} : vector<968x27xf32>, vector<27x64xf32>, vector<968x64xf32> -> vector<968x64xf32>
    %c0_5 = arith.constant 0 : index
    %c0_6 = arith.constant 0 : index
    %13 = vector.load %arg3[%c0_5, %c0_6] : memref<1x64xf32, #tpu.memory_space<vmem>>, vector<1x64xf32>
    %14 = vector.extract_strided_slice %12 {offsets = [0, 0], sizes = [960, 64], strides = [1, 1]} : vector<968x64xf32> to vector<960x64xf32>
    %15 = vector.extract_strided_slice %12 {offsets = [1, 0], sizes = [960, 64], strides = [1, 1]} : vector<968x64xf32> to vector<960x64xf32>
    %16 = arith.maximumf %14, %15 : vector<960x64xf32>
    %17 = vector.extract_strided_slice %12 {offsets = [2, 0], sizes = [960, 64], strides = [1, 1]} : vector<968x64xf32> to vector<960x64xf32>
    %18 = arith.maximumf %16, %17 : vector<960x64xf32>
    %19 = vector.shape_cast %18 : vector<960x64xf32> to vector<30x32x64xf32>
    %20 = vector.extract_strided_slice %19 {offsets = [0, 0, 0], sizes = [28, 32, 64], strides = [1, 1, 1]} : vector<30x32x64xf32> to vector<28x32x64xf32>
    %21 = vector.shape_cast %20 : vector<28x32x64xf32> to vector<14x2x32x64xf32>
    %22 = vector.extract_strided_slice %21 {offsets = [0, 0, 0, 0], sizes = [14, 1, 32, 64], strides = [1, 1, 1, 1]} : vector<14x2x32x64xf32> to vector<14x1x32x64xf32>
    %23 = vector.shape_cast %22 : vector<14x1x32x64xf32> to vector<14x32x64xf32>
    %24 = vector.extract_strided_slice %21 {offsets = [0, 1, 0, 0], sizes = [14, 1, 32, 64], strides = [1, 1, 1, 1]} : vector<14x2x32x64xf32> to vector<14x1x32x64xf32>
    %25 = vector.shape_cast %24 : vector<14x1x32x64xf32> to vector<14x32x64xf32>
    %26 = arith.maximumf %23, %25 : vector<14x32x64xf32>
    %27 = vector.extract_strided_slice %19 {offsets = [2, 0, 0], sizes = [28, 32, 64], strides = [1, 1, 1]} : vector<30x32x64xf32> to vector<28x32x64xf32>
    %28 = vector.shape_cast %27 : vector<28x32x64xf32> to vector<14x2x32x64xf32>
    %29 = vector.extract_strided_slice %28 {offsets = [0, 0, 0, 0], sizes = [14, 1, 32, 64], strides = [1, 1, 1, 1]} : vector<14x2x32x64xf32> to vector<14x1x32x64xf32>
    %30 = vector.shape_cast %29 : vector<14x1x32x64xf32> to vector<14x32x64xf32>
    %31 = arith.maximumf %26, %30 : vector<14x32x64xf32>
    %32 = vector.extract_strided_slice %31 {offsets = [0, 0, 0], sizes = [14, 1, 64], strides = [1, 1, 1]} : vector<14x32x64xf32> to vector<14x1x64xf32>
    %33 = vector.extract_strided_slice %31 {offsets = [0, 2, 0], sizes = [14, 1, 64], strides = [1, 1, 1]} : vector<14x32x64xf32> to vector<14x1x64xf32>
    %34 = vector.extract_strided_slice %31 {offsets = [0, 4, 0], sizes = [14, 1, 64], strides = [1, 1, 1]} : vector<14x32x64xf32> to vector<14x1x64xf32>
    %35 = vector.extract_strided_slice %31 {offsets = [0, 6, 0], sizes = [14, 1, 64], strides = [1, 1, 1]} : vector<14x32x64xf32> to vector<14x1x64xf32>
    %36 = vector.extract_strided_slice %31 {offsets = [0, 8, 0], sizes = [14, 1, 64], strides = [1, 1, 1]} : vector<14x32x64xf32> to vector<14x1x64xf32>
    %37 = vector.extract_strided_slice %31 {offsets = [0, 10, 0], sizes = [14, 1, 64], strides = [1, 1, 1]} : vector<14x32x64xf32> to vector<14x1x64xf32>
    %38 = vector.extract_strided_slice %31 {offsets = [0, 12, 0], sizes = [14, 1, 64], strides = [1, 1, 1]} : vector<14x32x64xf32> to vector<14x1x64xf32>
    %39 = vector.extract_strided_slice %31 {offsets = [0, 14, 0], sizes = [14, 1, 64], strides = [1, 1, 1]} : vector<14x32x64xf32> to vector<14x1x64xf32>
    %40 = vector.extract_strided_slice %31 {offsets = [0, 16, 0], sizes = [14, 1, 64], strides = [1, 1, 1]} : vector<14x32x64xf32> to vector<14x1x64xf32>
    %41 = vector.extract_strided_slice %31 {offsets = [0, 18, 0], sizes = [14, 1, 64], strides = [1, 1, 1]} : vector<14x32x64xf32> to vector<14x1x64xf32>
    %42 = vector.extract_strided_slice %31 {offsets = [0, 20, 0], sizes = [14, 1, 64], strides = [1, 1, 1]} : vector<14x32x64xf32> to vector<14x1x64xf32>
    %43 = vector.extract_strided_slice %31 {offsets = [0, 22, 0], sizes = [14, 1, 64], strides = [1, 1, 1]} : vector<14x32x64xf32> to vector<14x1x64xf32>
    %44 = vector.extract_strided_slice %31 {offsets = [0, 24, 0], sizes = [14, 1, 64], strides = [1, 1, 1]} : vector<14x32x64xf32> to vector<14x1x64xf32>
    %45 = vector.extract_strided_slice %31 {offsets = [0, 26, 0], sizes = [14, 1, 64], strides = [1, 1, 1]} : vector<14x32x64xf32> to vector<14x1x64xf32>
    %46 = vector.extract_strided_slice %31 {offsets = [0, 28, 0], sizes = [14, 1, 64], strides = [1, 1, 1]} : vector<14x32x64xf32> to vector<14x1x64xf32>
    %47 = vector.extract_strided_slice %31 {offsets = [0, 30, 0], sizes = [14, 1, 64], strides = [1, 1, 1]} : vector<14x32x64xf32> to vector<14x1x64xf32>
    %48 = tpu.concatenate %32, %33, %34, %35, %36, %37, %38, %39, %40, %41, %42, %43, %44, %45, %46, %47 in 1 : vector<14x1x64xf32>, vector<14x1x64xf32>, vector<14x1x64xf32>, vector<14x1x64xf32>, vector<14x1x64xf32>, vector<14x1x64xf32>, vector<14x1x64xf32>, vector<14x1x64xf32>, vector<14x1x64xf32>, vector<14x1x64xf32>, vector<14x1x64xf32>, vector<14x1x64xf32>, vector<14x1x64xf32>, vector<14x1x64xf32>, vector<14x1x64xf32>, vector<14x1x64xf32> -> vector<14x16x64xf32>
    %49 = vector.shape_cast %13 : vector<1x64xf32> to vector<1x1x64xf32>
    %50 = vector.broadcast %49 : vector<1x1x64xf32> to vector<14x16x64xf32>
    %51 = arith.addf %48, %50 : vector<14x16x64xf32>
    %cst_7 = arith.constant 0.000000e+00 : f32
    %52 = vector.broadcast %cst_7 : f32 to vector<14x16x64xf32>
    %53 = arith.maximumf %51, %52 : vector<14x16x64xf32>
    %54 = vector.shape_cast %53 : vector<14x16x64xf32> to vector<224x64xf32>
    %cst_8 = arith.constant 0.000000e+00 : f32
    %55 = vector.broadcast %cst_8 : f32 to vector<16x64xf32>
    %56 = tpu.concatenate %54, %55 in 0 : vector<224x64xf32>, vector<16x64xf32> -> vector<240x64xf32>
    %c0_9 = arith.constant 0 : index
    %c0_10 = arith.constant 0 : index
    %57 = vector.load %arg4[%c0_9, %c0_10] : memref<576x64xf32, #tpu.memory_space<vmem>>, vector<576x64xf32>
    %58 = vector.extract_strided_slice %56 {offsets = [0, 0], sizes = [232, 64], strides = [1, 1]} : vector<240x64xf32> to vector<232x64xf32>
    %59 = vector.extract_strided_slice %56 {offsets = [1, 0], sizes = [232, 64], strides = [1, 1]} : vector<240x64xf32> to vector<232x64xf32>
    %60 = vector.extract_strided_slice %56 {offsets = [2, 0], sizes = [232, 64], strides = [1, 1]} : vector<240x64xf32> to vector<232x64xf32>
    %61 = tpu.concatenate %58, %59, %60 in 1 : vector<232x64xf32>, vector<232x64xf32>, vector<232x64xf32> -> vector<232x192xf32>
    %62 = vector.extract_strided_slice %61 {offsets = [0, 0], sizes = [200, 192], strides = [1, 1]} : vector<232x192xf32> to vector<200x192xf32>
    %63 = vector.extract_strided_slice %61 {offsets = [16, 0], sizes = [200, 192], strides = [1, 1]} : vector<232x192xf32> to vector<200x192xf32>
    %64 = vector.extract_strided_slice %61 {offsets = [32, 0], sizes = [200, 192], strides = [1, 1]} : vector<232x192xf32> to vector<200x192xf32>
    %65 = tpu.concatenate %62, %63, %64 in 1 : vector<200x192xf32>, vector<200x192xf32>, vector<200x192xf32> -> vector<200x576xf32>
    %cst_11 = arith.constant dense<0.000000e+00> : vector<200x64xf32>
    %66 = tpu.matmul %65, %57, %cst_11 {dimension_numbers = #tpu.dot_dimension_numbers<[1], [0], [0], [1], [0, 0, 1, 1], [], []>} : vector<200x576xf32>, vector<576x64xf32>, vector<200x64xf32> -> vector<200x64xf32>
    %c0_12 = arith.constant 0 : index
    %c0_13 = arith.constant 0 : index
    %67 = vector.load %arg5[%c0_12, %c0_13] : memref<1x64xf32, #tpu.memory_space<vmem>>, vector<1x64xf32>
    %68 = vector.extract_strided_slice %66 {offsets = [0, 0], sizes = [192, 64], strides = [1, 1]} : vector<200x64xf32> to vector<192x64xf32>
    %69 = vector.extract_strided_slice %66 {offsets = [1, 0], sizes = [192, 64], strides = [1, 1]} : vector<200x64xf32> to vector<192x64xf32>
    %70 = arith.maximumf %68, %69 : vector<192x64xf32>
    %71 = vector.extract_strided_slice %66 {offsets = [2, 0], sizes = [192, 64], strides = [1, 1]} : vector<200x64xf32> to vector<192x64xf32>
    %72 = arith.maximumf %70, %71 : vector<192x64xf32>
    %73 = vector.shape_cast %72 : vector<192x64xf32> to vector<12x16x64xf32>
    %74 = vector.extract_strided_slice %73 {offsets = [0, 0, 0], sizes = [10, 16, 64], strides = [1, 1, 1]} : vector<12x16x64xf32> to vector<10x16x64xf32>
    %75 = vector.shape_cast %74 : vector<10x16x64xf32> to vector<5x2x16x64xf32>
    %76 = vector.extract_strided_slice %75 {offsets = [0, 0, 0, 0], sizes = [5, 1, 16, 64], strides = [1, 1, 1, 1]} : vector<5x2x16x64xf32> to vector<5x1x16x64xf32>
    %77 = vector.shape_cast %76 : vector<5x1x16x64xf32> to vector<5x16x64xf32>
    %78 = vector.extract_strided_slice %75 {offsets = [0, 1, 0, 0], sizes = [5, 1, 16, 64], strides = [1, 1, 1, 1]} : vector<5x2x16x64xf32> to vector<5x1x16x64xf32>
    %79 = vector.shape_cast %78 : vector<5x1x16x64xf32> to vector<5x16x64xf32>
    %80 = arith.maximumf %77, %79 : vector<5x16x64xf32>
    %81 = vector.extract_strided_slice %73 {offsets = [2, 0, 0], sizes = [10, 16, 64], strides = [1, 1, 1]} : vector<12x16x64xf32> to vector<10x16x64xf32>
    %82 = vector.shape_cast %81 : vector<10x16x64xf32> to vector<5x2x16x64xf32>
    %83 = vector.extract_strided_slice %82 {offsets = [0, 0, 0, 0], sizes = [5, 1, 16, 64], strides = [1, 1, 1, 1]} : vector<5x2x16x64xf32> to vector<5x1x16x64xf32>
    %84 = vector.shape_cast %83 : vector<5x1x16x64xf32> to vector<5x16x64xf32>
    %85 = arith.maximumf %80, %84 : vector<5x16x64xf32>
    %86 = vector.extract_strided_slice %85 {offsets = [0, 0, 0], sizes = [5, 1, 64], strides = [1, 1, 1]} : vector<5x16x64xf32> to vector<5x1x64xf32>
    %87 = vector.extract_strided_slice %85 {offsets = [0, 2, 0], sizes = [5, 1, 64], strides = [1, 1, 1]} : vector<5x16x64xf32> to vector<5x1x64xf32>
    %88 = vector.extract_strided_slice %85 {offsets = [0, 4, 0], sizes = [5, 1, 64], strides = [1, 1, 1]} : vector<5x16x64xf32> to vector<5x1x64xf32>
    %89 = vector.extract_strided_slice %85 {offsets = [0, 6, 0], sizes = [5, 1, 64], strides = [1, 1, 1]} : vector<5x16x64xf32> to vector<5x1x64xf32>
    %90 = vector.extract_strided_slice %85 {offsets = [0, 8, 0], sizes = [5, 1, 64], strides = [1, 1, 1]} : vector<5x16x64xf32> to vector<5x1x64xf32>
    %91 = tpu.concatenate %86, %87, %88, %89, %90 in 1 : vector<5x1x64xf32>, vector<5x1x64xf32>, vector<5x1x64xf32>, vector<5x1x64xf32>, vector<5x1x64xf32> -> vector<5x5x64xf32>
    %92 = vector.shape_cast %67 : vector<1x64xf32> to vector<1x1x64xf32>
    %93 = vector.broadcast %92 : vector<1x1x64xf32> to vector<5x5x64xf32>
    %94 = arith.addf %91, %93 : vector<5x5x64xf32>
    %cst_14 = arith.constant 0.000000e+00 : f32
    %95 = vector.broadcast %cst_14 : f32 to vector<5x5x64xf32>
    %96 = arith.maximumf %94, %95 : vector<5x5x64xf32>
    %c0_15 = arith.constant 0 : index
    %c0_16 = arith.constant 0 : index
    %c0_17 = arith.constant 0 : index
    %c0_18 = arith.constant 0 : index
    %97 = vector.load %arg6[%c0_15, %c0_16, %c0_17, %c0_18] : memref<1x5x5x64xf32, #tpu.memory_space<vmem>>, vector<1x5x5x64xf32>
    %98 = vector.shape_cast %97 : vector<1x5x5x64xf32> to vector<5x5x64xf32>
    %99 = vector.shape_cast %96 : vector<5x5x64xf32> to vector<1x5x5x64xf32>
    tpu.vector_store %arg6[%c0_15, %c0_16, %c0_17, %c0_18], %99 {strides = array<i32>} : memref<1x5x5x64xf32, #tpu.memory_space<vmem>>, vector<1x5x5x64xf32>,
    return
  }
  func.func @transform_0(%arg0: i32) -> (i32, i32, i32, i32) {
    %c0_i32 = arith.constant 0 : i32
    %c0_i32_0 = arith.constant 0 : i32
    %c0_i32_1 = arith.constant 0 : i32
    %c0_i32_2 = arith.constant 0 : i32
    return %arg0, %c0_i32, %c0_i32_0, %c0_i32_1 : i32, i32, i32, i32
  }
  func.func @transform_1(%arg0: i32) -> (i32, i32) {
    %c0_i32 = arith.constant 0 : i32
    %c0_i32_0 = arith.constant 0 : i32
    %c0_i32_1 = arith.constant 0 : i32
    return %c0_i32, %c0_i32_0 : i32, i32
  }
  func.func @transform_2(%arg0: i32) -> (i32, i32) {
    %c0_i32 = arith.constant 0 : i32
    %c0_i32_0 = arith.constant 0 : i32
    %c0_i32_1 = arith.constant 0 : i32
    return %c0_i32, %c0_i32_0 : i32, i32
  }
  func.func @transform_3(%arg0: i32) -> (i32, i32) {
    %c0_i32 = arith.constant 0 : i32
    %c0_i32_0 = arith.constant 0 : i32
    %c0_i32_1 = arith.constant 0 : i32
    return %c0_i32, %c0_i32_0 : i32, i32
  }
  func.func @transform_4(%arg0: i32) -> (i32, i32) {
    %c0_i32 = arith.constant 0 : i32
    %c0_i32_0 = arith.constant 0 : i32
    %c0_i32_1 = arith.constant 0 : i32
    return %c0_i32, %c0_i32_0 : i32, i32
  }
  func.func @transform_5(%arg0: i32) -> (i32, i32, i32, i32) {
    %c0_i32 = arith.constant 0 : i32
    %c0_i32_0 = arith.constant 0 : i32
    %c0_i32_1 = arith.constant 0 : i32
    %c0_i32_2 = arith.constant 0 : i32
    return %arg0, %c0_i32, %c0_i32_0, %c0_i32_1 : i32, i32, i32, i32
  }
}

</mosaic_0001>

<llo_original>
// kernel: net1_forward.1
$region0: #{net1_forward.1}
  #allocation0 [shape = 'u32[]', space=smem, size = 0x4, offset = 0x4, fixed_abs, tag = 'smem constant byte address 0x4 - core index']
  #allocation1 [shape = 'u32[144,128]{1,0:T(1,128)}', space=vmem, size = 0x12000, scoped, tag = 'internal scratch']
  %s0 = inlined_call_operand.vmem [shape: f32[2,33,32,3], index: 0, kind: input, shape index: {}]
  %s1 = inlined_call_operand.vmem [shape: f32[27,64], index: 1, kind: input, shape index: {}]
  %s2 = inlined_call_operand.vmem [shape: f32[1,64], index: 2, kind: input, shape index: {}]
  %s3 = inlined_call_operand.vmem [shape: f32[576,64], index: 3, kind: input, shape index: {}]
  %s4 = inlined_call_operand.vmem [shape: f32[1,64], index: 4, kind: input, shape index: {}]
  %s5 = inlined_call_operand.vmem [shape: f32[2,5,5,64], index: 5, kind: output, shape index: {}]
  %s6 = sld [smem:[#allocation0]]
  $region53: #{net1_forward.1} parent=0
    _
  %s8 = ssub.s32 1, %s6
  %s9 = scalar_select 0, %s8, %s6
  loop: start=0, step=1, limit=4
  $region2: #{net1_forward.1} parent=0 // loop_pre_header
    _
  $region3: #{net1_forward.1} parent=0 // loop_header
    %s11 = sphi 0, %s15
    %p12 = scmp.ge.s32.totalorder %s11, 4
    %s21 = sphi 0, %s23
    %s24 = sphi 0, %s21
    %s25 = sphi 0, %s24
    %s41 = sphi 0, %s25
    %s45 = sphi 0, %s45
    %s47 = sphi 0, %s45
    %s48 = sphi 0, %s47
    %s62 = sphi 0, %s48
    %s66 = sphi 0, %s66
    %s68 = sphi 0, %s66
    %s69 = sphi 0, %s68
    %s83 = sphi 0, %s69
    %s87 = sphi 0, %s87
    %s89 = sphi 0, %s87
    %s90 = sphi 0, %s89
    %s104 = sphi 0, %s90
    %s108 = sphi 0, %s108
    %s110 = sphi 0, %s108
    %s111 = sphi 0, %s110
    %s125 = sphi 0, %s111
    %s131 = sphi 0, %s133
    %s134 = sphi 0, %s131
    %s135 = sphi 0, %s134
    %s151 = sphi 0, %s135
  $region4: #{net1_forward.1} parent=0 // loop_header_branch
    %14 = sbr.rel (%p12) target = $region8
  $region5: #{net1_forward.1} parent=0 // loop_body
    %s16 = ssub.s32 %s11, 1
    %s17 = ssub.s32 %s11, 2
    %s18 = sadd.s32 %s11, 1
    %s19 = ssub.s32 %s11, %s18
    %p20 = scmp.eq.s32.totalorder %s19, 0
    %s22 = sadd.s32 %s21, 1
    %s23 = scalar_select %p20, %s21, %s22
    %p26 = pneg %p20
    %p27 = scmp.eq.s32.totalorder %s11, 1
    %p28 = por %p26, %p27
    %p29 = scmp.ne.s32.totalorder %s21, %s24
    %p30 = scmp.eq.s32.totalorder %s11, 0
    %p31 = por %p29, %p30
    %p32 = scmp.ne.s32.totalorder %s21, %s24
    %p33 = scmp.eq.s32.totalorder %s16, 1
    %p34 = por %p32, %p33
    %p35 = scmp.ne.s32.totalorder %s24, %s25
    %p36 = scmp.eq.s32.totalorder %s16, 0
    %p37 = por %p35, %p36
    %p38 = scmp.ne.s32.totalorder %s24, %s25
    %p39 = scmp.eq.s32.totalorder %s17, 1
    %p40 = por %p38, %p39
    %p42 = scmp.ne.s32.totalorder %s25, %s41
    %p43 = scmp.eq.s32.totalorder %s17, 0
    %p44 = por %p42, %p43
    %s46 = sadd.s32 %s45, 1
    %p49 = scmp.eq.s32.totalorder %s11, 1
    %p50 = scmp.ne.s32.totalorder %s45, %s47
    %p51 = scmp.eq.s32.totalorder %s11, 0
    %p52 = por %p50, %p51
    %p53 = scmp.ne.s32.totalorder %s45, %s47
    %p54 = scmp.eq.s32.totalorder %s16, 1
    %p55 = por %p53, %p54
    %p56 = scmp.ne.s32.totalorder %s47, %s48
    %p57 = scmp.eq.s32.totalorder %s16, 0
    %p58 = por %p56, %p57
    %p59 = scmp.ne.s32.totalorder %s47, %s48
    %p60 = scmp.eq.s32.totalorder %s17, 1
    %p61 = por %p59, %p60
    %p63 = scmp.ne.s32.totalorder %s48, %s62
    %p64 = scmp.eq.s32.totalorder %s17, 0
    %p65 = por %p63, %p64
    %s67 = sadd.s32 %s66, 1
    %p70 = scmp.eq.s32.totalorder %s11, 1
    %p71 = scmp.ne.s32.totalorder %s66, %s68
    %p72 = scmp.eq.s32.totalorder %s11, 0
    %p73 = por %p71, %p72
    %p74 = scmp.ne.s32.totalorder %s66, %s68
    %p75 = scmp.eq.s32.totalorder %s16, 1
    %p76 = por %p74, %p75
    %p77 = scmp.ne.s32.totalorder %s68, %s69
    %p78 = scmp.eq.s32.totalorder %s16, 0
    %p79 = por %p77, %p78
    %p80 = scmp.ne.s32.totalorder %s68, %s69
    %p81 = scmp.eq.s32.totalorder %s17, 1
    %p82 = por %p80, %p81
    %p84 = scmp.ne.s32.totalorder %s69, %s83
    %p85 = scmp.eq.s32.totalorder %s17, 0
    %p86 = por %p84, %p85
    %s88 = sadd.s32 %s87, 1
    %p91 = scmp.eq.s32.totalorder %s11, 1
    %p92 = scmp.ne.s32.totalorder %s87, %s89
    %p93 = scmp.eq.s32.totalorder %s11, 0
    %p94 = por %p92, %p93
    %p95 = scmp.ne.s32.totalorder %s87, %s89
    %p96 = scmp.eq.s32.totalorder %s16, 1
    %p97 = por %p95, %p96
    %p98 = scmp.ne.s32.totalorder %s89, %s90
    %p99 = scmp.eq.s32.totalorder %s16, 0
    %p100 = por %p98, %p99
    %p101 = scmp.ne.s32.totalorder %s89, %s90
    %p102 = scmp.eq.s32.totalorder %s17, 1
    %p103 = por %p101, %p102
    %p105 = scmp.ne.s32.totalorder %s90, %s104
    %p106 = scmp.eq.s32.totalorder %s17, 0
    %p107 = por %p105, %p106
    %s109 = sadd.s32 %s108, 1
    %p112 = scmp.eq.s32.totalorder %s11, 1
    %p113 = scmp.ne.s32.totalorder %s108, %s110
    %p114 = scmp.eq.s32.totalorder %s11, 0
    %p115 = por %p113, %p114
    %p116 = scmp.ne.s32.totalorder %s108, %s110
    %p117 = scmp.eq.s32.totalorder %s16, 1
    %p118 = por %p116, %p117
    %p119 = scmp.ne.s32.totalorder %s110, %s111
    %p120 = scmp.eq.s32.totalorder %s16, 0
    %p121 = por %p119, %p120
    %p122 = scmp.ne.s32.totalorder %s110, %s111
    %p123 = scmp.eq.s32.totalorder %s17, 1
    %p124 = por %p122, %p123
    %p126 = scmp.ne.s32.totalorder %s111, %s125
    %p127 = scmp.eq.s32.totalorder %s17, 0
    %p128 = por %p126, %p127
    %s129 = ssub.s32 %s11, %s18
    %p130 = scmp.eq.s32.totalorder %s129, 0
    %s132 = sadd.s32 %s131, 1
    %s133 = scalar_select %p130, %s131, %s132
    %p136 = pneg %p130
    %p137 = scmp.eq.s32.totalorder %s11, 1
    %p138 = por %p136, %p137
    %p139 = scmp.ne.s32.totalorder %s131, %s134
    %p140 = scmp.eq.s32.totalorder %s11, 0
    %p141 = por %p139, %p140
    %p142 = scmp.ne.s32.totalorder %s131, %s134
    %p143 = scmp.eq.s32.totalorder %s16, 1
    %p144 = por %p142, %p143
    %p145 = scmp.ne.s32.totalorder %s134, %s135
    %p146 = scmp.eq.s32.totalorder %s16, 0
    %p147 = por %p145, %p146
    %p148 = scmp.ne.s32.totalorder %s134, %s135
    %p149 = scmp.eq.s32.totalorder %s17, 1
    %p150 = por %p148, %p149
    %p152 = scmp.ne.s32.totalorder %s135, %s151
    %p153 = scmp.eq.s32.totalorder %s17, 0
    %p154 = por %p152, %p153
    %p155 = scmp.le.s32.totalorder 1, %s11
    %p156 = scmp.lt.s32.totalorder %s11, 3
    %p157 = pnand %p155, %p156
    %p158 = pneg %p157
    // Predicated region
    $region9: #{net1_forward.1} parent=5 // pred_check
      _
    $region10: #{net1_forward.1} parent=5 // pred_check_branch
      %160 = sbr.rel (%p157) target = $region12
    $region11: #{net1_forward.1} parent=5 // pred_region
      %s161 = ssub.s32 %s11, 1
      // Predicated region
      $region13: #{net1_forward.1} parent=11 // pred_check
        %p162 = pneg %p58
      $region14: #{net1_forward.1} parent=11 // pred_check_branch
        %164 = sbr.rel (%p162) target = $region16
      $region15: #{net1_forward.1} parent=11 // pred_region
        _
      $region16: #{net1_forward.1} parent=11 // pred_fallthru
        _
      // Predicated region
      $region17: #{net1_forward.1} parent=11 // pred_check
        %p165 = pneg %p79
      $region18: #{net1_forward.1} parent=11 // pred_check_branch
        %167 = sbr.rel (%p165) target = $region20
      $region19: #{net1_forward.1} parent=11 // pred_region
        _
      $region20: #{net1_forward.1} parent=11 // pred_fallthru
        _
      // Predicated region
      $region21: #{net1_forward.1} parent=11 // pred_check
        %p168 = pneg %p100
      $region22: #{net1_forward.1} parent=11 // pred_check_branch
        %170 = sbr.rel (%p168) target = $region24
      $region23: #{net1_forward.1} parent=11 // pred_region
        _
      $region24: #{net1_forward.1} parent=11 // pred_fallthru
        _
      // Predicated region
      $region25: #{net1_forward.1} parent=11 // pred_check
        %p171 = pneg %p121
      $region26: #{net1_forward.1} parent=11 // pred_check_branch
        %173 = sbr.rel (%p171) target = $region28
      $region27: #{net1_forward.1} parent=11 // pred_region
        _
      $region28: #{net1_forward.1} parent=11 // pred_fallthru
        _
    $region12: #{net1_forward.1} parent=5 // pred_fallthru
      _
    %p174 = scmp.lt.s32.totalorder %s11, 2
    // Predicated region
    $region29: #{net1_forward.1} parent=5 // pred_check
      %p175 = pneg %p174
    $region30: #{net1_forward.1} parent=5 // pred_check_branch
      %177 = sbr.rel (%p175) target = $region32
    $region31: #{net1_forward.1} parent=5 // pred_region
      // Predicated region
      $region33: #{net1_forward.1} parent=31 // pred_check
        %p178 = pneg %p31
      $region34: #{net1_forward.1} parent=31 // pred_check_branch
        %180 = sbr.rel (%p178) target = $region36
      $region35: #{net1_forward.1} parent=31 // pred_region
        %p181 = scmp.lt.s32.totalorder %s11, 1
        %s182 = scalar_select %p181, %s11, 1
        %s183 = smul.addr %s182, 132
        %s184 = smul.addr %s183, 8
        %s185 = scalar_lea.vmem %s0, %s184
      $region36: #{net1_forward.1} parent=31 // pred_fallthru
        _
    $region32: #{net1_forward.1} parent=5 // pred_fallthru
      _
    %p186 = scmp.le.s32.totalorder 1, %s11
    %p187 = scmp.lt.s32.totalorder %s11, 3
    %p188 = pnand %p186, %p187
    %p189 = pneg %p188
    // Predicated region
    $region37: #{net1_forward.1} parent=5 // pred_check
      _
    $region38: #{net1_forward.1} parent=5 // pred_check_branch
      %191 = sbr.rel (%p188) target = $region40
    $region39: #{net1_forward.1} parent=5 // pred_region
      %s192 = ssub.s32 %s11, 1
      %p193 = scmp.lt.s32.totalorder %s16, 1
      %s194 = scalar_select %p193, %s16, 1
      %s195 = smul.addr %s194, 132
      %s196 = smul.addr %s195, 8
      %s197 = scalar_lea.vmem %s0, %s196
      %p198 = pneg %p37
      %p199 = pneg %p34
      %p200 = pneg %p58
      %p201 = pneg %p55
      %p202 = pneg %p79
      %p203 = pneg %p76
      %p204 = pneg %p100
      %p205 = pneg %p97
      %p206 = pneg %p121
      %p207 = pneg %p118
      %p208 = pneg %p147
      %p209 = pneg %p144
      %p210 = scmp.lt.s32.totalorder %s16, 1
      %s211 = scalar_select %p210, %s16, 1
      %s212 = smul.addr %s211, 5
      %s213 = smul.addr %s212, 8
      %s214 = scalar_lea.vmem %s5, %s213
      %p215 = scmp.lt.s32.totalorder %s16, 1
      %s216 = scalar_select %p215, %s16, 1
      %s217 = smul.addr %s216, 132
      %s218 = smul.addr %s217, 8
      %s219 = scalar_lea.vmem %s0, %s218
      %p220 = scmp.lt.s32.totalorder %s16, 1
      %s221 = scalar_select %p220, %s16, 1
      %s222 = smul.addr %s221, 5
      %s223 = smul.addr %s222, 8
      %s224 = scalar_lea.vmem %s5, %s223
      %v225 = vld [vmem:[%s219] sm:$0xff]
      %v226 = vld [vmem:[%s219 + $0x8] sm:$0xff]
      %v227 = vld [vmem:[%s219 + $0x10] sm:$0xff]
      %v228 = vld [vmem:[%s219 + $0x18] sm:$0xff]
      %v229 = vld [vmem:[%s219 + $0x20] sm:$0xff]
      %v230 = vld [vmem:[%s219 + $0x28] sm:$0xff]
      %v231 = vld [vmem:[%s219 + $0x30] sm:$0xff]
      %v232 = vld [vmem:[%s219 + $0x38] sm:$0xff]
      %v233 = vld [vmem:[%s219 + $0x40] sm:$0xff]
      %v234 = vld [vmem:[%s219 + $0x48] sm:$0xff]
      %v235 = vld [vmem:[%s219 + $0x50] sm:$0xff]
      %v236 = vld [vmem:[%s219 + $0x58] sm:$0xff]
      %v237 = vld [vmem:[%s219 + $0x60] sm:$0xff]
      %v238 = vld [vmem:[%s219 + $0x68] sm:$0xff]
      %v239 = vld [vmem:[%s219 + $0x70] sm:$0xff]
      %v240 = vld [vmem:[%s219 + $0x78] sm:$0xff]
      %v241 = vld [vmem:[%s219 + $0x80] sm:$0xff]
      %v242 = vld [vmem:[%s219 + $0x88] sm:$0xff]
      %v243 = vld [vmem:[%s219 + $0x90] sm:$0xff]
      %v244 = vld [vmem:[%s219 + $0x98] sm:$0xff]
      %v245 = vld [vmem:[%s219 + $0xa0] sm:$0xff]
      %v246 = vld [vmem:[%s219 + $0xa8] sm:$0xff]
      %v247 = vld [vmem:[%s219 + $0xb0] sm:$0xff]
      %v248 = vld [vmem:[%s219 + $0xb8] sm:$0xff]
      %v249 = vld [vmem:[%s219 + $0xc0] sm:$0xff]
      %v250 = vld [vmem:[%s219 + $0xc8] sm:$0xff]
      %v251 = vld [vmem:[%s219 + $0xd0] sm:$0xff]
      %v252 = vld [vmem:[%s219 + $0xd8] sm:$0xff]
      %v253 = vld [vmem:[%s219 + $0xe0] sm:$0xff]
      %v254 = vld [vmem:[%s219 + $0xe8] sm:$0xff]
      %v255 = vld [vmem:[%s219 + $0xf0] sm:$0xff]
      %v256 = vld [vmem:[%s219 + $0xf8] sm:$0xff]
      %v257 = vld [vmem:[%s219 + $0x100] sm:$0xff]
      %v258 = vld [vmem:[%s219 + $0x108] sm:$0xff]
      %v259 = vld [vmem:[%s219 + $0x110] sm:$0xff]
      %v260 = vld [vmem:[%s219 + $0x118] sm:$0xff]
      %v261 = vld [vmem:[%s219 + $0x120] sm:$0xff]
      %v262 = vld [vmem:[%s219 + $0x128] sm:$0xff]
      %v263 = vld [vmem:[%s219 + $0x130] sm:$0xff]
      %v264 = vld [vmem:[%s219 + $0x138] sm:$0xff]
      %v265 = vld [vmem:[%s219 + $0x140] sm:$0xff]
      %v266 = vld [vmem:[%s219 + $0x148] sm:$0xff]
      %v267 = vld [vmem:[%s219 + $0x150] sm:$0xff]
      %v268 = vld [vmem:[%s219 + $0x158] sm:$0xff]
      %v269 = vld [vmem:[%s219 + $0x160] sm:$0xff]
      %v270 = vld [vmem:[%s219 + $0x168] sm:$0xff]
      %v271 = vld [vmem:[%s219 + $0x170] sm:$0xff]
      %v272 = vld [vmem:[%s219 + $0x178] sm:$0xff]
      %v273 = vld [vmem:[%s219 + $0x180] sm:$0xff]
      %v274 = vld [vmem:[%s219 + $0x188] sm:$0xff]
      %v275 = vld [vmem:[%s219 + $0x190] sm:$0xff]
      %v276 = vld [vmem:[%s219 + $0x198] sm:$0xff]
      %v277 = vld [vmem:[%s219 + $0x1a0] sm:$0xff]
      %v278 = vld [vmem:[%s219 + $0x1a8] sm:$0xff]
      %v279 = vld [vmem:[%s219 + $0x1b0] sm:$0xff]
      %v280 = vld [vmem:[%s219 + $0x1b8] sm:$0xff]
      %v281 = vld [vmem:[%s219 + $0x1c0] sm:$0xff]
      %v282 = vld [vmem:[%s219 + $0x1c8] sm:$0xff]
      %v283 = vld [vmem:[%s219 + $0x1d0] sm:$0xff]
      %v284 = vld [vmem:[%s219 + $0x1d8] sm:$0xff]
      %v285 = vld [vmem:[%s219 + $0x1e0] sm:$0xff]
      %v286 = vld [vmem:[%s219 + $0x1e8] sm:$0xff]
      %v287 = vld [vmem:[%s219 + $0x1f0] sm:$0xff]
      %v288 = vld [vmem:[%s219 + $0x1f8] sm:$0xff]
      %v289 = vld [vmem:[%s219 + $0x200] sm:$0xff]
      %v290 = vld [vmem:[%s219 + $0x208] sm:$0xff]
      %v291 = vld [vmem:[%s219 + $0x210] sm:$0xff]
      %v292 = vld [vmem:[%s219 + $0x218] sm:$0xff]
      %v293 = vld [vmem:[%s219 + $0x220] sm:$0xff]
      %v294 = vld [vmem:[%s219 + $0x228] sm:$0xff]
      %v295 = vld [vmem:[%s219 + $0x230] sm:$0xff]
      %v296 = vld [vmem:[%s219 + $0x238] sm:$0xff]
      %v297 = vld [vmem:[%s219 + $0x240] sm:$0xff]
      %v298 = vld [vmem:[%s219 + $0x248] sm:$0xff]
      %v299 = vld [vmem:[%s219 + $0x250] sm:$0xff]
      %v300 = vld [vmem:[%s219 + $0x258] sm:$0xff]
      %v301 = vld [vmem:[%s219 + $0x260] sm:$0xff]
      %v302 = vld [vmem:[%s219 + $0x268] sm:$0xff]
      %v303 = vld [vmem:[%s219 + $0x270] sm:$0xff]
      %v304 = vld [vmem:[%s219 + $0x278] sm:$0xff]
      %v305 = vld [vmem:[%s219 + $0x280] sm:$0xff]
      %v306 = vld [vmem:[%s219 + $0x288] sm:$0xff]
      %v307 = vld [vmem:[%s219 + $0x290] sm:$0xff]
      %v308 = vld [vmem:[%s219 + $0x298] sm:$0xff]
      %v309 = vld [vmem:[%s219 + $0x2a0] sm:$0xff]
      %v310 = vld [vmem:[%s219 + $0x2a8] sm:$0xff]
      %v311 = vld [vmem:[%s219 + $0x2b0] sm:$0xff]
      %v312 = vld [vmem:[%s219 + $0x2b8] sm:$0xff]
      %v313 = vld [vmem:[%s219 + $0x2c0] sm:$0xff]
      %v314 = vld [vmem:[%s219 + $0x2c8] sm:$0xff]
      %v315 = vld [vmem:[%s219 + $0x2d0] sm:$0xff]
      %v316 = vld [vmem:[%s219 + $0x2d8] sm:$0xff]
      %v317 = vld [vmem:[%s219 + $0x2e0] sm:$0xff]
      %v318 = vld [vmem:[%s219 + $0x2e8] sm:$0xff]
      %v319 = vld [vmem:[%s219 + $0x2f0] sm:$0xff]
      %v320 = vld [vmem:[%s219 + $0x2f8] sm:$0xff]
      %v321 = vld [vmem:[%s219 + $0x300] sm:$0xff]
      %v322 = vld [vmem:[%s219 + $0x308] sm:$0xff]
      %v323 = vld [vmem:[%s219 + $0x310] sm:$0xff]
      %v324 = vld [vmem:[%s219 + $0x318] sm:$0xff]
      %v325 = vld [vmem:[%s219 + $0x320] sm:$0xff]
      %v326 = vld [vmem:[%s219 + $0x328] sm:$0xff]
      %v327 = vld [vmem:[%s219 + $0x330] sm:$0xff]
      %v328 = vld [vmem:[%s219 + $0x338] sm:$0xff]
      %v329 = vld [vmem:[%s219 + $0x340] sm:$0xff]
      %v330 = vld [vmem:[%s219 + $0x348] sm:$0xff]
      %v331 = vld [vmem:[%s219 + $0x350] sm:$0xff]
      %v332 = vld [vmem:[%s219 + $0x358] sm:$0xff]
      %v333 = vld [vmem:[%s219 + $0x360] sm:$0xff]
      %v334 = vld [vmem:[%s219 + $0x368] sm:$0xff]
      %v335 = vld [vmem:[%s219 + $0x370] sm:$0xff]
      %v336 = vld [vmem:[%s219 + $0x378] sm:$0xff]
      %v337 = vld [vmem:[%s219 + $0x380] sm:$0xff]
      %v338 = vld [vmem:[%s219 + $0x388] sm:$0xff]
      %v339 = vld [vmem:[%s219 + $0x390] sm:$0xff]
      %v340 = vld [vmem:[%s219 + $0x398] sm:$0xff]
      %v341 = vld [vmem:[%s219 + $0x3a0] sm:$0xff]
      %v342 = vld [vmem:[%s219 + $0x3a8] sm:$0xff]
      %v343 = vld [vmem:[%s219 + $0x3b0] sm:$0xff]
      %v344 = vld [vmem:[%s219 + $0x3b8] sm:$0xff]
      %v345 = vld [vmem:[%s219 + $0x3c0] sm:$0xff]
      %v346 = vld [vmem:[%s219 + $0x3c8] sm:$0xff]
      %v347 = vld [vmem:[%s219 + $0x3d0] sm:$0xff]
      %v348 = vld [vmem:[%s219 + $0x3d8] sm:$0xff]
      %v349 = vld [vmem:[%s219 + $0x3e0] sm:$0xff]
      %v350 = vld [vmem:[%s219 + $0x3e8] sm:$0xff]
      %v351 = vld [vmem:[%s219 + $0x3f0] sm:$0xff]
      %v352 = vld [vmem:[%s219 + $0x3f8] sm:$0xff]
      %v353 = vld [vmem:[%s219 + $0x400] sm:$0xff]
      %v354 = vld [vmem:[%s219 + $0x408] sm:$0xff]
      %v355 = vld [vmem:[%s1] sm:$0xff]
      %v356 = vld [vmem:[%s1 + $0x8] sm:$0xff]
      %v357 = vld [vmem:[%s1 + $0x10] sm:$0xff]
      %v358 = vld [vmem:[%s1 + $0x18] sm:$0x7]
      %vm489 = vcmask 1046528
      %v490 = vrot.slane %v225, 1
      %v491 = vrot.slane %v226, 1
      %v492 = vsel %vm489, %v490, %v491
      %v493 = vrot.slane %v227, 1
      %v494 = vsel %vm489, %v491, %v493
      %v495 = vrot.slane %v228, 1
      %v496 = vsel %vm489, %v493, %v495
      %v497 = vrot.slane %v229, 1
      %v498 = vsel %vm489, %v495, %v497
      %v499 = vrot.slane %v230, 1
      %v500 = vsel %vm489, %v497, %v499
      %v501 = vrot.slane %v231, 1
      %v502 = vsel %vm489, %v499, %v501
      %v503 = vrot.slane %v232, 1
      %v504 = vsel %vm489, %v501, %v503
      %v505 = vrot.slane %v233, 1
      %v506 = vsel %vm489, %v503, %v505
      %v507 = vrot.slane %v234, 1
      %v508 = vsel %vm489, %v505, %v507
      %v509 = vrot.slane %v235, 1
      %v510 = vsel %vm489, %v507, %v509
      %v511 = vrot.slane %v236, 1
      %v512 = vsel %vm489, %v509, %v511
      %v513 = vrot.slane %v237, 1
      %v514 = vsel %vm489, %v511, %v513
      %v515 = vrot.slane %v238, 1
      %v516 = vsel %vm489, %v513, %v515
      %v517 = vrot.slane %v239, 1
      %v518 = vsel %vm489, %v515, %v517
      %v519 = vrot.slane %v240, 1
      %v520 = vsel %vm489, %v517, %v519
      %v521 = vrot.slane %v241, 1
      %v522 = vsel %vm489, %v519, %v521
      %v523 = vrot.slane %v242, 1
      %v524 = vsel %vm489, %v521, %v523
      %v525 = vrot.slane %v243, 1
      %v526 = vsel %vm489, %v523, %v525
      %v527 = vrot.slane %v244, 1
      %v528 = vsel %vm489, %v525, %v527
      %v529 = vrot.slane %v245, 1
      %v530 = vsel %vm489, %v527, %v529
      %v531 = vrot.slane %v246, 1
      %v532 = vsel %vm489, %v529, %v531
      %v533 = vrot.slane %v247, 1
      %v534 = vsel %vm489, %v531, %v533
      %v535 = vrot.slane %v248, 1
      %v536 = vsel %vm489, %v533, %v535
      %v537 = vrot.slane %v249, 1
      %v538 = vsel %vm489, %v535, %v537
      %v539 = vrot.slane %v250, 1
      %v540 = vsel %vm489, %v537, %v539
      %v541 = vrot.slane %v251, 1
      %v542 = vsel %vm489, %v539, %v541
      %v543 = vrot.slane %v252, 1
      %v544 = vsel %vm489, %v541, %v543
      %v545 = vrot.slane %v253, 1
      %v546 = vsel %vm489, %v543, %v545
      %v547 = vrot.slane %v254, 1
      %v548 = vsel %vm489, %v545, %v547
      %v549 = vrot.slane %v255, 1
      %v550 = vsel %vm489, %v547, %v549
      %v551 = vrot.slane %v256, 1
      %v552 = vsel %vm489, %v549, %v551
      %v553 = vrot.slane %v257, 1
      %v554 = vsel %vm489, %v551, %v553
      %v555 = vrot.slane %v258, 1
      %v556 = vsel %vm489, %v553, %v555
      %v557 = vrot.slane %v259, 1
      %v558 = vsel %vm489, %v555, %v557
      %v559 = vrot.slane %v260, 1
      %v560 = vsel %vm489, %v557, %v559
      %v561 = vrot.slane %v261, 1
      %v562 = vsel %vm489, %v559, %v561
      %v563 = vrot.slane %v262, 1
      %v564 = vsel %vm489, %v561, %v563
      %v565 = vrot.slane %v263, 1
      %v566 = vsel %vm489, %v563, %v565
      %v567 = vrot.slane %v264, 1
      %v568 = vsel %vm489, %v565, %v567
      %v569 = vrot.slane %v265, 1
      %v570 = vsel %vm489, %v567, %v569
      %v571 = vrot.slane %v266, 1
      %v572 = vsel %vm489, %v569, %v571
      %v573 = vrot.slane %v267, 1
      %v574 = vsel %vm489, %v571, %v573
      %v575 = vrot.slane %v268, 1
      %v576 = vsel %vm489, %v573, %v575
      %v577 = vrot.slane %v269, 1
      %v578 = vsel %vm489, %v575, %v577
      %v579 = vrot.slane %v270, 1
      %v580 = vsel %vm489, %v577, %v579
      %v581 = vrot.slane %v271, 1
      %v582 = vsel %vm489, %v579, %v581
      %v583 = vrot.slane %v272, 1
      %v584 = vsel %vm489, %v581, %v583
      %v585 = vrot.slane %v273, 1
      %v586 = vsel %vm489, %v583, %v585
      %v587 = vrot.slane %v274, 1
      %v588 = vsel %vm489, %v585, %v587
      %v589 = vrot.slane %v275, 1
      %v590 = vsel %vm489, %v587, %v589
      %v591 = vrot.slane %v276, 1
      %v592 = vsel %vm489, %v589, %v591
      %v593 = vrot.slane %v277, 1
      %v594 = vsel %vm489, %v591, %v593
      %v595 = vrot.slane %v278, 1
      %v596 = vsel %vm489, %v593, %v595
      %v597 = vrot.slane %v279, 1
      %v598 = vsel %vm489, %v595, %v597
      %v599 = vrot.slane %v280, 1
      %v600 = vsel %vm489, %v597, %v599
      %v601 = vrot.slane %v281, 1
      %v602 = vsel %vm489, %v599, %v601
      %v603 = vrot.slane %v282, 1
      %v604 = vsel %vm489, %v601, %v603
      %v605 = vrot.slane %v283, 1
      %v606 = vsel %vm489, %v603, %v605
      %v607 = vrot.slane %v284, 1
      %v608 = vsel %vm489, %v605, %v607
      %v609 = vrot.slane %v285, 1
      %v610 = vsel %vm489, %v607, %v609
      %v611 = vrot.slane %v286, 1
      %v612 = vsel %vm489, %v609, %v611
      %v613 = vrot.slane %v287, 1
      %v614 = vsel %vm489, %v611, %v613
      %v615 = vrot.slane %v288, 1
      %v616 = vsel %vm489, %v613, %v615
      %v617 = vrot.slane %v289, 1
      %v618 = vsel %vm489, %v615, %v617
      %v619 = vrot.slane %v290, 1
      %v620 = vsel %vm489, %v617, %v619
      %v621 = vrot.slane %v291, 1
      %v622 = vsel %vm489, %v619, %v621
      %v623 = vrot.slane %v292, 1
      %v624 = vsel %vm489, %v621, %v623
      %v625 = vrot.slane %v293, 1
      %v626 = vsel %vm489, %v623, %v625
      %v627 = vrot.slane %v294, 1
      %v628 = vsel %vm489, %v625, %v627
      %v629 = vrot.slane %v295, 1
      %v630 = vsel %vm489, %v627, %v629
      %v631 = vrot.slane %v296, 1
      %v632 = vsel %vm489, %v629, %v631
      %v633 = vrot.slane %v297, 1
      %v634 = vsel %vm489, %v631, %v633
      %v635 = vrot.slane %v298, 1
      %v636 = vsel %vm489, %v633, %v635
      %v637 = vrot.slane %v299, 1
      %v638 = vsel %vm489, %v635, %v637
      %v639 = vrot.slane %v300, 1
      %v640 = vsel %vm489, %v637, %v639
      %v641 = vrot.slane %v301, 1
      %v642 = vsel %vm489, %v639, %v641
      %v643 = vrot.slane %v302, 1
      %v644 = vsel %vm489, %v641, %v643
      %v645 = vrot.slane %v303, 1
      %v646 = vsel %vm489, %v643, %v645
      %v647 = vrot.slane %v304, 1
      %v648 = vsel %vm489, %v645, %v647
      %v649 = vrot.slane %v305, 1
      %v650 = vsel %vm489, %v647, %v649
      %v651 = vrot.slane %v306, 1
      %v652 = vsel %vm489, %v649, %v651
      %v653 = vrot.slane %v307, 1
      %v654 = vsel %vm489, %v651, %v653
      %v655 = vrot.slane %v308, 1
      %v656 = vsel %vm489, %v653, %v655
      %v657 = vrot.slane %v309, 1
      %v658 = vsel %vm489, %v655, %v657
      %v659 = vrot.slane %v310, 1
      %v660 = vsel %vm489, %v657, %v659
      %v661 = vrot.slane %v311, 1
      %v662 = vsel %vm489, %v659, %v661
      %v663 = vrot.slane %v312, 1
      %v664 = vsel %vm489, %v661, %v663
      %v665 = vrot.slane %v313, 1
      %v666 = vsel %vm489, %v663, %v665
      %v667 = vrot.slane %v314, 1
      %v668 = vsel %vm489, %v665, %v667
      %v669 = vrot.slane %v315, 1
      %v670 = vsel %vm489, %v667, %v669
      %v671 = vrot.slane %v316, 1
      %v672 = vsel %vm489, %v669, %v671
      %v673 = vrot.slane %v317, 1
      %v674 = vsel %vm489, %v671, %v673
      %v675 = vrot.slane %v318, 1
      %v676 = vsel %vm489, %v673, %v675
      %v677 = vrot.slane %v319, 1
      %v678 = vsel %vm489, %v675, %v677
      %v679 = vrot.slane %v320, 1
      %v680 = vsel %vm489, %v677, %v679
      %v681 = vrot.slane %v321, 1
      %v682 = vsel %vm489, %v679, %v681
      %v683 = vrot.slane %v322, 1
      %v684 = vsel %vm489, %v681, %v683
      %v685 = vrot.slane %v323, 1
      %v686 = vsel %vm489, %v683, %v685
      %v687 = vrot.slane %v324, 1
      %v688 = vsel %vm489, %v685, %v687
      %v689 = vrot.slane %v325, 1
      %v690 = vsel %vm489, %v687, %v689
      %v691 = vrot.slane %v326, 1
      %v692 = vsel %vm489, %v689, %v691
      %v693 = vrot.slane %v327, 1
      %v694 = vsel %vm489, %v691, %v693
      %v695 = vrot.slane %v328, 1
      %v696 = vsel %vm489, %v693, %v695
      %v697 = vrot.slane %v329, 1
      %v698 = vsel %vm489, %v695, %v697
      %v699 = vrot.slane %v330, 1
      %v700 = vsel %vm489, %v697, %v699
      %v701 = vrot.slane %v331, 1
      %v702 = vsel %vm489, %v699, %v701
      %v703 = vrot.slane %v332, 1
      %v704 = vsel %vm489, %v701, %v703
      %v705 = vrot.slane %v333, 1
      %v706 = vsel %vm489, %v703, %v705
      %v707 = vrot.slane %v334, 1
      %v708 = vsel %vm489, %v705, %v707
      %v709 = vrot.slane %v335, 1
      %v710 = vsel %vm489, %v707, %v709
      %v711 = vrot.slane %v336, 1
      %v712 = vsel %vm489, %v709, %v711
      %v713 = vrot.slane %v337, 1
      %v714 = vsel %vm489, %v711, %v713
      %v715 = vrot.slane %v338, 1
      %v716 = vsel %vm489, %v713, %v715
      %v717 = vrot.slane %v339, 1
      %v718 = vsel %vm489, %v715, %v717
      %v719 = vrot.slane %v340, 1
      %v720 = vsel %vm489, %v717, %v719
      %v721 = vrot.slane %v341, 1
      %v722 = vsel %vm489, %v719, %v721
      %v723 = vrot.slane %v342, 1
      %v724 = vsel %vm489, %v721, %v723
      %v725 = vrot.slane %v343, 1
      %v726 = vsel %vm489, %v723, %v725
      %v727 = vrot.slane %v344, 1
      %v728 = vsel %vm489, %v725, %v727
      %v729 = vrot.slane %v345, 1
      %v730 = vsel %vm489, %v727, %v729
      %v731 = vrot.slane %v346, 1
      %v732 = vsel %vm489, %v729, %v731
      %v733 = vrot.slane %v347, 1
      %v734 = vsel %vm489, %v731, %v733
      %v735 = vrot.slane %v348, 1
      %v736 = vsel %vm489, %v733, %v735
      %v737 = vrot.slane %v349, 1
      %v738 = vsel %vm489, %v735, %v737
      %v739 = vrot.slane %v350, 1
      %v740 = vsel %vm489, %v737, %v739
      %v741 = vrot.slane %v351, 1
      %v742 = vsel %vm489, %v739, %v741
      %v743 = vrot.slane %v352, 1
      %v744 = vsel %vm489, %v741, %v743
      %v745 = vrot.slane %v353, 1
      %v746 = vsel %vm489, %v743, %v745
      %v747 = vrot.slane %v354, 1
      %v748 = vsel %vm489, %v745, %v747
      %749 = vrot.lane.b32.xlu0 %v492, 3
      %v750 = vpop.permute.xlu0 %749
      %751 = vrot.lane.b32.xlu0 %v494, 3
      %v752 = vpop.permute.xlu0 %751
      %753 = vrot.lane.b32.xlu0 %v496, 3
      %v754 = vpop.permute.xlu0 %753
      %755 = vrot.lane.b32.xlu0 %v498, 3
      %v756 = vpop.permute.xlu0 %755
      %757 = vrot.lane.b32.xlu0 %v500, 3
      %v758 = vpop.permute.xlu0 %757
      %759 = vrot.lane.b32.xlu0 %v502, 3
      %v760 = vpop.permute.xlu0 %759
      %761 = vrot.lane.b32.xlu0 %v504, 3
      %v762 = vpop.permute.xlu0 %761
      %763 = vrot.lane.b32.xlu0 %v506, 3
      %v764 = vpop.permute.xlu0 %763
      %765 = vrot.lane.b32.xlu0 %v508, 3
      %v766 = vpop.permute.xlu0 %765
      %767 = vrot.lane.b32.xlu0 %v510, 3
      %v768 = vpop.permute.xlu0 %767
      %769 = vrot.lane.b32.xlu0 %v512, 3
      %v770 = vpop.permute.xlu0 %769
      %771 = vrot.lane.b32.xlu0 %v514, 3
      %v772 = vpop.permute.xlu0 %771
      %773 = vrot.lane.b32.xlu0 %v516, 3
      %v774 = vpop.permute.xlu0 %773
      %775 = vrot.lane.b32.xlu0 %v518, 3
      %v776 = vpop.permute.xlu0 %775
      %777 = vrot.lane.b32.xlu0 %v520, 3
      %v778 = vpop.permute.xlu0 %777
      %779 = vrot.lane.b32.xlu0 %v522, 3
      %v780 = vpop.permute.xlu0 %779
      %781 = vrot.lane.b32.xlu0 %v524, 3
      %v782 = vpop.permute.xlu0 %781
      %783 = vrot.lane.b32.xlu0 %v526, 3
      %v784 = vpop.permute.xlu0 %783
      %785 = vrot.lane.b32.xlu0 %v528, 3
      %v786 = vpop.permute.xlu0 %785
      %787 = vrot.lane.b32.xlu0 %v530, 3
      %v788 = vpop.permute.xlu0 %787
      %789 = vrot.lane.b32.xlu0 %v532, 3
      %v790 = vpop.permute.xlu0 %789
      %791 = vrot.lane.b32.xlu0 %v534, 3
      %v792 = vpop.permute.xlu0 %791
      %793 = vrot.lane.b32.xlu0 %v536, 3
      %v794 = vpop.permute.xlu0 %793
      %795 = vrot.lane.b32.xlu0 %v538, 3
      %v796 = vpop.permute.xlu0 %795
      %797 = vrot.lane.b32.xlu0 %v540, 3
      %v798 = vpop.permute.xlu0 %797
      %799 = vrot.lane.b32.xlu0 %v542, 3
      %v800 = vpop.permute.xlu0 %799
      %801 = vrot.lane.b32.xlu0 %v544, 3
      %v802 = vpop.permute.xlu0 %801
      %803 = vrot.lane.b32.xlu0 %v546, 3
      %v804 = vpop.permute.xlu0 %803
      %805 = vrot.lane.b32.xlu0 %v548, 3
      %v806 = vpop.permute.xlu0 %805
      %807 = vrot.lane.b32.xlu0 %v550, 3
      %v808 = vpop.permute.xlu0 %807
      %809 = vrot.lane.b32.xlu0 %v552, 3
      %v810 = vpop.permute.xlu0 %809
      %811 = vrot.lane.b32.xlu0 %v554, 3
      %v812 = vpop.permute.xlu0 %811
      %813 = vrot.lane.b32.xlu0 %v556, 3
      %v814 = vpop.permute.xlu0 %813
      %815 = vrot.lane.b32.xlu0 %v558, 3
      %v816 = vpop.permute.xlu0 %815
      %817 = vrot.lane.b32.xlu0 %v560, 3
      %v818 = vpop.permute.xlu0 %817
      %819 = vrot.lane.b32.xlu0 %v562, 3
      %v820 = vpop.permute.xlu0 %819
      %821 = vrot.lane.b32.xlu0 %v564, 3
      %v822 = vpop.permute.xlu0 %821
      %823 = vrot.lane.b32.xlu0 %v566, 3
      %v824 = vpop.permute.xlu0 %823
      %825 = vrot.lane.b32.xlu0 %v568, 3
      %v826 = vpop.permute.xlu0 %825
      %827 = vrot.lane.b32.xlu0 %v570, 3
      %v828 = vpop.permute.xlu0 %827
      %829 = vrot.lane.b32.xlu0 %v572, 3
      %v830 = vpop.permute.xlu0 %829
      %831 = vrot.lane.b32.xlu0 %v574, 3
      %v832 = vpop.permute.xlu0 %831
      %833 = vrot.lane.b32.xlu0 %v576, 3
      %v834 = vpop.permute.xlu0 %833
      %835 = vrot.lane.b32.xlu0 %v578, 3
      %v836 = vpop.permute.xlu0 %835
      %837 = vrot.lane.b32.xlu0 %v580, 3
      %v838 = vpop.permute.xlu0 %837
      %839 = vrot.lane.b32.xlu0 %v582, 3
      %v840 = vpop.permute.xlu0 %839
      %841 = vrot.lane.b32.xlu0 %v584, 3
      %v842 = vpop.permute.xlu0 %841
      %843 = vrot.lane.b32.xlu0 %v586, 3
      %v844 = vpop.permute.xlu0 %843
      %845 = vrot.lane.b32.xlu0 %v588, 3
      %v846 = vpop.permute.xlu0 %845
      %847 = vrot.lane.b32.xlu0 %v590, 3
      %v848 = vpop.permute.xlu0 %847
      %849 = vrot.lane.b32.xlu0 %v592, 3
      %v850 = vpop.permute.xlu0 %849
      %851 = vrot.lane.b32.xlu0 %v594, 3
      %v852 = vpop.permute.xlu0 %851
      %853 = vrot.lane.b32.xlu0 %v596, 3
      %v854 = vpop.permute.xlu0 %853
      %855 = vrot.lane.b32.xlu0 %v598, 3
      %v856 = vpop.permute.xlu0 %855
      %857 = vrot.lane.b32.xlu0 %v600, 3
      %v858 = vpop.permute.xlu0 %857
      %859 = vrot.lane.b32.xlu0 %v602, 3
      %v860 = vpop.permute.xlu0 %859
      %861 = vrot.lane.b32.xlu0 %v604, 3
      %v862 = vpop.permute.xlu0 %861
      %863 = vrot.lane.b32.xlu0 %v606, 3
      %v864 = vpop.permute.xlu0 %863
      %865 = vrot.lane.b32.xlu0 %v608, 3
      %v866 = vpop.permute.xlu0 %865
      %867 = vrot.lane.b32.xlu0 %v610, 3
      %v868 = vpop.permute.xlu0 %867
      %869 = vrot.lane.b32.xlu0 %v612, 3
      %v870 = vpop.permute.xlu0 %869
      %871 = vrot.lane.b32.xlu0 %v614, 3
      %v872 = vpop.permute.xlu0 %871
      %873 = vrot.lane.b32.xlu0 %v616, 3
      %v874 = vpop.permute.xlu0 %873
      %875 = vrot.lane.b32.xlu0 %v618, 3
      %v876 = vpop.permute.xlu0 %875
      %877 = vrot.lane.b32.xlu0 %v620, 3
      %v878 = vpop.permute.xlu0 %877
      %879 = vrot.lane.b32.xlu0 %v622, 3
      %v880 = vpop.permute.xlu0 %879
      %881 = vrot.lane.b32.xlu0 %v624, 3
      %v882 = vpop.permute.xlu0 %881
      %883 = vrot.lane.b32.xlu0 %v626, 3
      %v884 = vpop.permute.xlu0 %883
      %885 = vrot.lane.b32.xlu0 %v628, 3
      %v886 = vpop.permute.xlu0 %885
      %887 = vrot.lane.b32.xlu0 %v630, 3
      %v888 = vpop.permute.xlu0 %887
      %889 = vrot.lane.b32.xlu0 %v632, 3
      %v890 = vpop.permute.xlu0 %889
      %891 = vrot.lane.b32.xlu0 %v634, 3
      %v892 = vpop.permute.xlu0 %891
      %893 = vrot.lane.b32.xlu0 %v636, 3
      %v894 = vpop.permute.xlu0 %893
      %895 = vrot.lane.b32.xlu0 %v638, 3
      %v896 = vpop.permute.xlu0 %895
      %897 = vrot.lane.b32.xlu0 %v640, 3
      %v898 = vpop.permute.xlu0 %897
      %899 = vrot.lane.b32.xlu0 %v642, 3
      %v900 = vpop.permute.xlu0 %899
      %901 = vrot.lane.b32.xlu0 %v644, 3
      %v902 = vpop.permute.xlu0 %901
      %903 = vrot.lane.b32.xlu0 %v646, 3
      %v904 = vpop.permute.xlu0 %903
      %905 = vrot.lane.b32.xlu0 %v648, 3
      %v906 = vpop.permute.xlu0 %905
      %907 = vrot.lane.b32.xlu0 %v650, 3
      %v908 = vpop.permute.xlu0 %907
      %909 = vrot.lane.b32.xlu0 %v652, 3
      %v910 = vpop.permute.xlu0 %909
      %911 = vrot.lane.b32.xlu0 %v654, 3
      %v912 = vpop.permute.xlu0 %911
      %913 = vrot.lane.b32.xlu0 %v656, 3
      %v914 = vpop.permute.xlu0 %913
      %915 = vrot.lane.b32.xlu0 %v658, 3
      %v916 = vpop.permute.xlu0 %915
      %917 = vrot.lane.b32.xlu0 %v660, 3
      %v918 = vpop.permute.xlu0 %917
      %919 = vrot.lane.b32.xlu0 %v662, 3
      %v920 = vpop.permute.xlu0 %919
      %921 = vrot.lane.b32.xlu0 %v664, 3
      %v922 = vpop.permute.xlu0 %921
      %923 = vrot.lane.b32.xlu0 %v666, 3
      %v924 = vpop.permute.xlu0 %923
      %925 = vrot.lane.b32.xlu0 %v668, 3
      %v926 = vpop.permute.xlu0 %925
      %927 = vrot.lane.b32.xlu0 %v670, 3
      %v928 = vpop.permute.xlu0 %927
      %929 = vrot.lane.b32.xlu0 %v672, 3
      %v930 = vpop.permute.xlu0 %929
      %931 = vrot.lane.b32.xlu0 %v674, 3
      %v932 = vpop.permute.xlu0 %931
      %933 = vrot.lane.b32.xlu0 %v676, 3
      %v934 = vpop.permute.xlu0 %933
      %935 = vrot.lane.b32.xlu0 %v678, 3
      %v936 = vpop.permute.xlu0 %935
      %937 = vrot.lane.b32.xlu0 %v680, 3
      %v938 = vpop.permute.xlu0 %937
      %939 = vrot.lane.b32.xlu0 %v682, 3
      %v940 = vpop.permute.xlu0 %939
      %941 = vrot.lane.b32.xlu0 %v684, 3
      %v942 = vpop.permute.xlu0 %941
      %943 = vrot.lane.b32.xlu0 %v686, 3
      %v944 = vpop.permute.xlu0 %943
      %945 = vrot.lane.b32.xlu0 %v688, 3
      %v946 = vpop.permute.xlu0 %945
      %947 = vrot.lane.b32.xlu0 %v690, 3
      %v948 = vpop.permute.xlu0 %947
      %949 = vrot.lane.b32.xlu0 %v692, 3
      %v950 = vpop.permute.xlu0 %949
      %951 = vrot.lane.b32.xlu0 %v694, 3
      %v952 = vpop.permute.xlu0 %951
      %953 = vrot.lane.b32.xlu0 %v696, 3
      %v954 = vpop.permute.xlu0 %953
      %955 = vrot.lane.b32.xlu0 %v698, 3
      %v956 = vpop.permute.xlu0 %955
      %957 = vrot.lane.b32.xlu0 %v700, 3
      %v958 = vpop.permute.xlu0 %957
      %959 = vrot.lane.b32.xlu0 %v702, 3
      %v960 = vpop.permute.xlu0 %959
      %961 = vrot.lane.b32.xlu0 %v704, 3
      %v962 = vpop.permute.xlu0 %961
      %963 = vrot.lane.b32.xlu0 %v706, 3
      %v964 = vpop.permute.xlu0 %963
      %965 = vrot.lane.b32.xlu0 %v708, 3
      %v966 = vpop.permute.xlu0 %965
      %967 = vrot.lane.b32.xlu0 %v710, 3
      %v968 = vpop.permute.xlu0 %967
      %969 = vrot.lane.b32.xlu0 %v712, 3
      %v970 = vpop.permute.xlu0 %969
      %971 = vrot.lane.b32.xlu0 %v714, 3
      %v972 = vpop.permute.xlu0 %971
      %973 = vrot.lane.b32.xlu0 %v716, 3
      %v974 = vpop.permute.xlu0 %973
      %975 = vrot.lane.b32.xlu0 %v718, 3
      %v976 = vpop.permute.xlu0 %975
      %977 = vrot.lane.b32.xlu0 %v720, 3
      %v978 = vpop.permute.xlu0 %977
      %979 = vrot.lane.b32.xlu0 %v722, 3
      %v980 = vpop.permute.xlu0 %979
      %981 = vrot.lane.b32.xlu0 %v724, 3
      %v982 = vpop.permute.xlu0 %981
      %983 = vrot.lane.b32.xlu0 %v726, 3
      %v984 = vpop.permute.xlu0 %983
      %985 = vrot.lane.b32.xlu0 %v728, 3
      %v986 = vpop.permute.xlu0 %985
      %987 = vrot.lane.b32.xlu0 %v730, 3
      %v988 = vpop.permute.xlu0 %987
      %989 = vrot.lane.b32.xlu0 %v732, 3
      %v990 = vpop.permute.xlu0 %989
      %991 = vrot.lane.b32.xlu0 %v734, 3
      %v992 = vpop.permute.xlu0 %991
      %993 = vrot.lane.b32.xlu0 %v736, 3
      %v994 = vpop.permute.xlu0 %993
      %995 = vrot.lane.b32.xlu0 %v738, 3
      %v996 = vpop.permute.xlu0 %995
      %997 = vrot.lane.b32.xlu0 %v740, 3
      %v998 = vpop.permute.xlu0 %997
      %999 = vrot.lane.b32.xlu0 %v742, 3
      %v1000 = vpop.permute.xlu0 %999
      %1001 = vrot.lane.b32.xlu0 %v744, 3
      %v1002 = vpop.permute.xlu0 %1001
      %1003 = vrot.lane.b32.xlu0 %v746, 3
      %v1004 = vpop.permute.xlu0 %1003
      %1005 = vrot.lane.b32.xlu0 %v748, 3
      %v1006 = vpop.permute.xlu0 %1005
      %vm1136 = vcmask 1045504
      %v1137 = vrot.slane %v225, 2
      %v1138 = vrot.slane %v226, 2
      %v1139 = vsel %vm1136, %v1137, %v1138
      %v1140 = vrot.slane %v227, 2
      %v1141 = vsel %vm1136, %v1138, %v1140
      %v1142 = vrot.slane %v228, 2
      %v1143 = vsel %vm1136, %v1140, %v1142
      %v1144 = vrot.slane %v229, 2
      %v1145 = vsel %vm1136, %v1142, %v1144
      %v1146 = vrot.slane %v230, 2
      %v1147 = vsel %vm1136, %v1144, %v1146
      %v1148 = vrot.slane %v231, 2
      %v1149 = vsel %vm1136, %v1146, %v1148
      %v1150 = vrot.slane %v232, 2
      %v1151 = vsel %vm1136, %v1148, %v1150
      %v1152 = vrot.slane %v233, 2
      %v1153 = vsel %vm1136, %v1150, %v1152
      %v1154 = vrot.slane %v234, 2
      %v1155 = vsel %vm1136, %v1152, %v1154
      %v1156 = vrot.slane %v235, 2
      %v1157 = vsel %vm1136, %v1154, %v1156
      %v1158 = vrot.slane %v236, 2
      %v1159 = vsel %vm1136, %v1156, %v1158
      %v1160 = vrot.slane %v237, 2
      %v1161 = vsel %vm1136, %v1158, %v1160
      %v1162 = vrot.slane %v238, 2
      %v1163 = vsel %vm1136, %v1160, %v1162
      %v1164 = vrot.slane %v239, 2
      %v1165 = vsel %vm1136, %v1162, %v1164
      %v1166 = vrot.slane %v240, 2
      %v1167 = vsel %vm1136, %v1164, %v1166
      %v1168 = vrot.slane %v241, 2
      %v1169 = vsel %vm1136, %v1166, %v1168
      %v1170 = vrot.slane %v242, 2
      %v1171 = vsel %vm1136, %v1168, %v1170
      %v1172 = vrot.slane %v243, 2
      %v1173 = vsel %vm1136, %v1170, %v1172
      %v1174 = vrot.slane %v244, 2
      %v1175 = vsel %vm1136, %v1172, %v1174
      %v1176 = vrot.slane %v245, 2
      %v1177 = vsel %vm1136, %v1174, %v1176
      %v1178 = vrot.slane %v246, 2
      %v1179 = vsel %vm1136, %v1176, %v1178
      %v1180 = vrot.slane %v247, 2
      %v1181 = vsel %vm1136, %v1178, %v1180
      %v1182 = vrot.slane %v248, 2
      %v1183 = vsel %vm1136, %v1180, %v1182
      %v1184 = vrot.slane %v249, 2
      %v1185 = vsel %vm1136, %v1182, %v1184
      %v1186 = vrot.slane %v250, 2
      %v1187 = vsel %vm1136, %v1184, %v1186
      %v1188 = vrot.slane %v251, 2
      %v1189 = vsel %vm1136, %v1186, %v1188
      %v1190 = vrot.slane %v252, 2
      %v1191 = vsel %vm1136, %v1188, %v1190
      %v1192 = vrot.slane %v253, 2
      %v1193 = vsel %vm1136, %v1190, %v1192
      %v1194 = vrot.slane %v254, 2
      %v1195 = vsel %vm1136, %v1192, %v1194
      %v1196 = vrot.slane %v255, 2
      %v1197 = vsel %vm1136, %v1194, %v1196
      %v1198 = vrot.slane %v256, 2
      %v1199 = vsel %vm1136, %v1196, %v1198
      %v1200 = vrot.slane %v257, 2
      %v1201 = vsel %vm1136, %v1198, %v1200
      %v1202 = vrot.slane %v258, 2
      %v1203 = vsel %vm1136, %v1200, %v1202
      %v1204 = vrot.slane %v259, 2
      %v1205 = vsel %vm1136, %v1202, %v1204
      %v1206 = vrot.slane %v260, 2
      %v1207 = vsel %vm1136, %v1204, %v1206
      %v1208 = vrot.slane %v261, 2
      %v1209 = vsel %vm1136, %v1206, %v1208
      %v1210 = vrot.slane %v262, 2
      %v1211 = vsel %vm1136, %v1208, %v1210
      %v1212 = vrot.slane %v263, 2
      %v1213 = vsel %vm1136, %v1210, %v1212
      %v1214 = vrot.slane %v264, 2
      %v1215 = vsel %vm1136, %v1212, %v1214
      %v1216 = vrot.slane %v265, 2
      %v1217 = vsel %vm1136, %v1214, %v1216
      %v1218 = vrot.slane %v266, 2
      %v1219 = vsel %vm1136, %v1216, %v1218
      %v1220 = vrot.slane %v267, 2
      %v1221 = vsel %vm1136, %v1218, %v1220
      %v1222 = vrot.slane %v268, 2
      %v1223 = vsel %vm1136, %v1220, %v1222
      %v1224 = vrot.slane %v269, 2
      %v1225 = vsel %vm1136, %v1222, %v1224
      %v1226 = vrot.slane %v270, 2
      %v1227 = vsel %vm1136, %v1224, %v1226
      %v1228 = vrot.slane %v271, 2
      %v1229 = vsel %vm1136, %v1226, %v1228
      %v1230 = vrot.slane %v272, 2
      %v1231 = vsel %vm1136, %v1228, %v1230
      %v1232 = vrot.slane %v273, 2
      %v1233 = vsel %vm1136, %v1230, %v1232
      %v1234 = vrot.slane %v274, 2
      %v1235 = vsel %vm1136, %v1232, %v1234
      %v1236 = vrot.slane %v275, 2
      %v1237 = vsel %vm1136, %v1234, %v1236
      %v1238 = vrot.slane %v276, 2
      %v1239 = vsel %vm1136, %v1236, %v1238
      %v1240 = vrot.slane %v277, 2
      %v1241 = vsel %vm1136, %v1238, %v1240
      %v1242 = vrot.slane %v278, 2
      %v1243 = vsel %vm1136, %v1240, %v1242
      %v1244 = vrot.slane %v279, 2
      %v1245 = vsel %vm1136, %v1242, %v1244
      %v1246 = vrot.slane %v280, 2
      %v1247 = vsel %vm1136, %v1244, %v1246
      %v1248 = vrot.slane %v281, 2
      %v1249 = vsel %vm1136, %v1246, %v1248
      %v1250 = vrot.slane %v282, 2
      %v1251 = vsel %vm1136, %v1248, %v1250
      %v1252 = vrot.slane %v283, 2
      %v1253 = vsel %vm1136, %v1250, %v1252
      %v1254 = vrot.slane %v284, 2
      %v1255 = vsel %vm1136, %v1252, %v1254
      %v1256 = vrot.slane %v285, 2
      %v1257 = vsel %vm1136, %v1254, %v1256
      %v1258 = vrot.slane %v286, 2
      %v1259 = vsel %vm1136, %v1256, %v1258
      %v1260 = vrot.slane %v287, 2
      %v1261 = vsel %vm1136, %v1258, %v1260
      %v1262 = vrot.slane %v288, 2
      %v1263 = vsel %vm1136, %v1260, %v1262
      %v1264 = vrot.slane %v289, 2
      %v1265 = vsel %vm1136, %v1262, %v1264
      %v1266 = vrot.slane %v290, 2
      %v1267 = vsel %vm1136, %v1264, %v1266
      %v1268 = vrot.slane %v291, 2
      %v1269 = vsel %vm1136, %v1266, %v1268
      %v1270 = vrot.slane %v292, 2
      %v1271 = vsel %vm1136, %v1268, %v1270
      %v1272 = vrot.slane %v293, 2
      %v1273 = vsel %vm1136, %v1270, %v1272
      %v1274 = vrot.slane %v294, 2
      %v1275 = vsel %vm1136, %v1272, %v1274
      %v1276 = vrot.slane %v295, 2
      %v1277 = vsel %vm1136, %v1274, %v1276
      %v1278 = vrot.slane %v296, 2
      %v1279 = vsel %vm1136, %v1276, %v1278
      %v1280 = vrot.slane %v297, 2
      %v1281 = vsel %vm1136, %v1278, %v1280
      %v1282 = vrot.slane %v298, 2
      %v1283 = vsel %vm1136, %v1280, %v1282
      %v1284 = vrot.slane %v299, 2
      %v1285 = vsel %vm1136, %v1282, %v1284
      %v1286 = vrot.slane %v300, 2
      %v1287 = vsel %vm1136, %v1284, %v1286
      %v1288 = vrot.slane %v301, 2
      %v1289 = vsel %vm1136, %v1286, %v1288
      %v1290 = vrot.slane %v302, 2
      %v1291 = vsel %vm1136, %v1288, %v1290
      %v1292 = vrot.slane %v303, 2
      %v1293 = vsel %vm1136, %v1290, %v1292
      %v1294 = vrot.slane %v304, 2
      %v1295 = vsel %vm1136, %v1292, %v1294
      %v1296 = vrot.slane %v305, 2
      %v1297 = vsel %vm1136, %v1294, %v1296
      %v1298 = vrot.slane %v306, 2
      %v1299 = vsel %vm1136, %v1296, %v1298
      %v1300 = vrot.slane %v307, 2
      %v1301 = vsel %vm1136, %v1298, %v1300
      %v1302 = vrot.slane %v308, 2
      %v1303 = vsel %vm1136, %v1300, %v1302
      %v1304 = vrot.slane %v309, 2
      %v1305 = vsel %vm1136, %v1302, %v1304
      %v1306 = vrot.slane %v310, 2
      %v1307 = vsel %vm1136, %v1304, %v1306
      %v1308 = vrot.slane %v311, 2
      %v1309 = vsel %vm1136, %v1306, %v1308
      %v1310 = vrot.slane %v312, 2
      %v1311 = vsel %vm1136, %v1308, %v1310
      %v1312 = vrot.slane %v313, 2
      %v1313 = vsel %vm1136, %v1310, %v1312
      %v1314 = vrot.slane %v314, 2
      %v1315 = vsel %vm1136, %v1312, %v1314
      %v1316 = vrot.slane %v315, 2
      %v1317 = vsel %vm1136, %v1314, %v1316
      %v1318 = vrot.slane %v316, 2
      %v1319 = vsel %vm1136, %v1316, %v1318
      %v1320 = vrot.slane %v317, 2
      %v1321 = vsel %vm1136, %v1318, %v1320
      %v1322 = vrot.slane %v318, 2
      %v1323 = vsel %vm1136, %v1320, %v1322
      %v1324 = vrot.slane %v319, 2
      %v1325 = vsel %vm1136, %v1322, %v1324
      %v1326 = vrot.slane %v320, 2
      %v1327 = vsel %vm1136, %v1324, %v1326
      %v1328 = vrot.slane %v321, 2
      %v1329 = vsel %vm1136, %v1326, %v1328
      %v1330 = vrot.slane %v322, 2
      %v1331 = vsel %vm1136, %v1328, %v1330
      %v1332 = vrot.slane %v323, 2
      %v1333 = vsel %vm1136, %v1330, %v1332
      %v1334 = vrot.slane %v324, 2
      %v1335 = vsel %vm1136, %v1332, %v1334
      %v1336 = vrot.slane %v325, 2
      %v1337 = vsel %vm1136, %v1334, %v1336
      %v1338 = vrot.slane %v326, 2
      %v1339 = vsel %vm1136, %v1336, %v1338
      %v1340 = vrot.slane %v327, 2
      %v1341 = vsel %vm1136, %v1338, %v1340
      %v1342 = vrot.slane %v328, 2
      %v1343 = vsel %vm1136, %v1340, %v1342
      %v1344 = vrot.slane %v329, 2
      %v1345 = vsel %vm1136, %v1342, %v1344
      %v1346 = vrot.slane %v330, 2
      %v1347 = vsel %vm1136, %v1344, %v1346
      %v1348 = vrot.slane %v331, 2
      %v1349 = vsel %vm1136, %v1346, %v1348
      %v1350 = vrot.slane %v332, 2
      %v1351 = vsel %vm1136, %v1348, %v1350
      %v1352 = vrot.slane %v333, 2
      %v1353 = vsel %vm1136, %v1350, %v1352
      %v1354 = vrot.slane %v334, 2
      %v1355 = vsel %vm1136, %v1352, %v1354
      %v1356 = vrot.slane %v335, 2
      %v1357 = vsel %vm1136, %v1354, %v1356
      %v1358 = vrot.slane %v336, 2
      %v1359 = vsel %vm1136, %v1356, %v1358
      %v1360 = vrot.slane %v337, 2
      %v1361 = vsel %vm1136, %v1358, %v1360
      %v1362 = vrot.slane %v338, 2
      %v1363 = vsel %vm1136, %v1360, %v1362
      %v1364 = vrot.slane %v339, 2
      %v1365 = vsel %vm1136, %v1362, %v1364
      %v1366 = vrot.slane %v340, 2
      %v1367 = vsel %vm1136, %v1364, %v1366
      %v1368 = vrot.slane %v341, 2
      %v1369 = vsel %vm1136, %v1366, %v1368
      %v1370 = vrot.slane %v342, 2
      %v1371 = vsel %vm1136, %v1368, %v1370
      %v1372 = vrot.slane %v343, 2
      %v1373 = vsel %vm1136, %v1370, %v1372
      %v1374 = vrot.slane %v344, 2
      %v1375 = vsel %vm1136, %v1372, %v1374
      %v1376 = vrot.slane %v345, 2
      %v1377 = vsel %vm1136, %v1374, %v1376
      %v1378 = vrot.slane %v346, 2
      %v1379 = vsel %vm1136, %v1376, %v1378
      %v1380 = vrot.slane %v347, 2
      %v1381 = vsel %vm1136, %v1378, %v1380
      %v1382 = vrot.slane %v348, 2
      %v1383 = vsel %vm1136, %v1380, %v1382
      %v1384 = vrot.slane %v349, 2
      %v1385 = vsel %vm1136, %v1382, %v1384
      %v1386 = vrot.slane %v350, 2
      %v1387 = vsel %vm1136, %v1384, %v1386
      %v1388 = vrot.slane %v351, 2
      %v1389 = vsel %vm1136, %v1386, %v1388
      %v1390 = vrot.slane %v352, 2
      %v1391 = vsel %vm1136, %v1388, %v1390
      %v1392 = vrot.slane %v353, 2
      %v1393 = vsel %vm1136, %v1390, %v1392
      %v1394 = vrot.slane %v354, 2
      %v1395 = vsel %vm1136, %v1392, %v1394
      %1396 = vrot.lane.b32.xlu0 %v1139, 6
      %v1397 = vpop.permute.xlu0 %1396
      %1398 = vrot.lane.b32.xlu0 %v1141, 6
      %v1399 = vpop.permute.xlu0 %1398
      %1400 = vrot.lane.b32.xlu0 %v1143, 6
      %v1401 = vpop.permute.xlu0 %1400
      %1402 = vrot.lane.b32.xlu0 %v1145, 6
      %v1403 = vpop.permute.xlu0 %1402
      %1404 = vrot.lane.b32.xlu0 %v1147, 6
      %v1405 = vpop.permute.xlu0 %1404
      %1406 = vrot.lane.b32.xlu0 %v1149, 6
      %v1407 = vpop.permute.xlu0 %1406
      %1408 = vrot.lane.b32.xlu0 %v1151, 6
      %v1409 = vpop.permute.xlu0 %1408
      %1410 = vrot.lane.b32.xlu0 %v1153, 6
      %v1411 = vpop.permute.xlu0 %1410
      %1412 = vrot.lane.b32.xlu0 %v1155, 6
      %v1413 = vpop.permute.xlu0 %1412
      %1414 = vrot.lane.b32.xlu0 %v1157, 6
      %v1415 = vpop.permute.xlu0 %1414
      %1416 = vrot.lane.b32.xlu0 %v1159, 6
      %v1417 = vpop.permute.xlu0 %1416
      %1418 = vrot.lane.b32.xlu0 %v1161, 6
      %v1419 = vpop.permute.xlu0 %1418
      %1420 = vrot.lane.b32.xlu0 %v1163, 6
      %v1421 = vpop.permute.xlu0 %1420
      %1422 = vrot.lane.b32.xlu0 %v1165, 6
      %v1423 = vpop.permute.xlu0 %1422
      %1424 = vrot.lane.b32.xlu0 %v1167, 6
      %v1425 = vpop.permute.xlu0 %1424
      %1426 = vrot.lane.b32.xlu0 %v1169, 6
      %v1427 = vpop.permute.xlu0 %1426
      %1428 = vrot.lane.b32.xlu0 %v1171, 6
      %v1429 = vpop.permute.xlu0 %1428
      %1430 = vrot.lane.b32.xlu0 %v1173, 6
      %v1431 = vpop.permute.xlu0 %1430
      %1432 = vrot.lane.b32.xlu0 %v1175, 6
      %v1433 = vpop.permute.xlu0 %1432
      %1434 = vrot.lane.b32.xlu0 %v1177, 6
      %v1435 = vpop.permute.xlu0 %1434
      %1436 = vrot.lane.b32.xlu0 %v1179, 6
      %v1437 = vpop.permute.xlu0 %1436
      %1438 = vrot.lane.b32.xlu0 %v1181, 6
      %v1439 = vpop.permute.xlu0 %1438
      %1440 = vrot.lane.b32.xlu0 %v1183, 6
      %v1441 = vpop.permute.xlu0 %1440
      %1442 = vrot.lane.b32.xlu0 %v1185, 6
      %v1443 = vpop.permute.xlu0 %1442
      %1444 = vrot.lane.b32.xlu0 %v1187, 6
      %v1445 = vpop.permute.xlu0 %1444
      %1446 = vrot.lane.b32.xlu0 %v1189, 6
      %v1447 = vpop.permute.xlu0 %1446
      %1448 = vrot.lane.b32.xlu0 %v1191, 6
      %v1449 = vpop.permute.xlu0 %1448
      %1450 = vrot.lane.b32.xlu0 %v1193, 6
      %v1451 = vpop.permute.xlu0 %1450
      %1452 = vrot.lane.b32.xlu0 %v1195, 6
      %v1453 = vpop.permute.xlu0 %1452
      %1454 = vrot.lane.b32.xlu0 %v1197, 6
      %v1455 = vpop.permute.xlu0 %1454
      %1456 = vrot.lane.b32.xlu0 %v1199, 6
      %v1457 = vpop.permute.xlu0 %1456
      %1458 = vrot.lane.b32.xlu0 %v1201, 6
      %v1459 = vpop.permute.xlu0 %1458
      %1460 = vrot.lane.b32.xlu0 %v1203, 6
      %v1461 = vpop.permute.xlu0 %1460
      %1462 = vrot.lane.b32.xlu0 %v1205, 6
      %v1463 = vpop.permute.xlu0 %1462
      %1464 = vrot.lane.b32.xlu0 %v1207, 6
      %v1465 = vpop.permute.xlu0 %1464
      %1466 = vrot.lane.b32.xlu0 %v1209, 6
      %v1467 = vpop.permute.xlu0 %1466
      %1468 = vrot.lane.b32.xlu0 %v1211, 6
      %v1469 = vpop.permute.xlu0 %1468
      %1470 = vrot.lane.b32.xlu0 %v1213, 6
      %v1471 = vpop.permute.xlu0 %1470
      %1472 = vrot.lane.b32.xlu0 %v1215, 6
      %v1473 = vpop.permute.xlu0 %1472
      %1474 = vrot.lane.b32.xlu0 %v1217, 6
      %v1475 = vpop.permute.xlu0 %1474
      %1476 = vrot.lane.b32.xlu0 %v1219, 6
      %v1477 = vpop.permute.xlu0 %1476
      %1478 = vrot.lane.b32.xlu0 %v1221, 6
      %v1479 = vpop.permute.xlu0 %1478
      %1480 = vrot.lane.b32.xlu0 %v1223, 6
      %v1481 = vpop.permute.xlu0 %1480
      %1482 = vrot.lane.b32.xlu0 %v1225, 6
      %v1483 = vpop.permute.xlu0 %1482
      %1484 = vrot.lane.b32.xlu0 %v1227, 6
      %v1485 = vpop.permute.xlu0 %1484
      %1486 = vrot.lane.b32.xlu0 %v1229, 6
      %v1487 = vpop.permute.xlu0 %1486
      %1488 = vrot.lane.b32.xlu0 %v1231, 6
      %v1489 = vpop.permute.xlu0 %1488
      %1490 = vrot.lane.b32.xlu0 %v1233, 6
      %v1491 = vpop.permute.xlu0 %1490
      %1492 = vrot.lane.b32.xlu0 %v1235, 6
      %v1493 = vpop.permute.xlu0 %1492
      %1494 = vrot.lane.b32.xlu0 %v1237, 6
      %v1495 = vpop.permute.xlu0 %1494
      %1496 = vrot.lane.b32.xlu0 %v1239, 6
      %v1497 = vpop.permute.xlu0 %1496
      %1498 = vrot.lane.b32.xlu0 %v1241, 6
      %v1499 = vpop.permute.xlu0 %1498
      %1500 = vrot.lane.b32.xlu0 %v1243, 6
      %v1501 = vpop.permute.xlu0 %1500
      %1502 = vrot.lane.b32.xlu0 %v1245, 6
      %v1503 = vpop.permute.xlu0 %1502
      %1504 = vrot.lane.b32.xlu0 %v1247, 6
      %v1505 = vpop.permute.xlu0 %1504
      %1506 = vrot.lane.b32.xlu0 %v1249, 6
      %v1507 = vpop.permute.xlu0 %1506
      %1508 = vrot.lane.b32.xlu0 %v1251, 6
      %v1509 = vpop.permute.xlu0 %1508
      %1510 = vrot.lane.b32.xlu0 %v1253, 6
      %v1511 = vpop.permute.xlu0 %1510
      %1512 = vrot.lane.b32.xlu0 %v1255, 6
      %v1513 = vpop.permute.xlu0 %1512
      %1514 = vrot.lane.b32.xlu0 %v1257, 6
      %v1515 = vpop.permute.xlu0 %1514
      %1516 = vrot.lane.b32.xlu0 %v1259, 6
      %v1517 = vpop.permute.xlu0 %1516
      %1518 = vrot.lane.b32.xlu0 %v1261, 6
      %v1519 = vpop.permute.xlu0 %1518
      %1520 = vrot.lane.b32.xlu0 %v1263, 6
      %v1521 = vpop.permute.xlu0 %1520
      %1522 = vrot.lane.b32.xlu0 %v1265, 6
      %v1523 = vpop.permute.xlu0 %1522
      %1524 = vrot.lane.b32.xlu0 %v1267, 6
      %v1525 = vpop.permute.xlu0 %1524
      %1526 = vrot.lane.b32.xlu0 %v1269, 6
      %v1527 = vpop.permute.xlu0 %1526
      %1528 = vrot.lane.b32.xlu0 %v1271, 6
      %v1529 = vpop.permute.xlu0 %1528
      %1530 = vrot.lane.b32.xlu0 %v1273, 6
      %v1531 = vpop.permute.xlu0 %1530
      %1532 = vrot.lane.b32.xlu0 %v1275, 6
      %v1533 = vpop.permute.xlu0 %1532
      %1534 = vrot.lane.b32.xlu0 %v1277, 6
      %v1535 = vpop.permute.xlu0 %1534
      %1536 = vrot.lane.b32.xlu0 %v1279, 6
      %v1537 = vpop.permute.xlu0 %1536
      %1538 = vrot.lane.b32.xlu0 %v1281, 6
      %v1539 = vpop.permute.xlu0 %1538
      %1540 = vrot.lane.b32.xlu0 %v1283, 6
      %v1541 = vpop.permute.xlu0 %1540
      %1542 = vrot.lane.b32.xlu0 %v1285, 6
      %v1543 = vpop.permute.xlu0 %1542
      %1544 = vrot.lane.b32.xlu0 %v1287, 6
      %v1545 = vpop.permute.xlu0 %1544
      %1546 = vrot.lane.b32.xlu0 %v1289, 6
      %v1547 = vpop.permute.xlu0 %1546
      %1548 = vrot.lane.b32.xlu0 %v1291, 6
      %v1549 = vpop.permute.xlu0 %1548
      %1550 = vrot.lane.b32.xlu0 %v1293, 6
      %v1551 = vpop.permute.xlu0 %1550
      %1552 = vrot.lane.b32.xlu0 %v1295, 6
      %v1553 = vpop.permute.xlu0 %1552
      %1554 = vrot.lane.b32.xlu0 %v1297, 6
      %v1555 = vpop.permute.xlu0 %1554
      %1556 = vrot.lane.b32.xlu0 %v1299, 6
      %v1557 = vpop.permute.xlu0 %1556
      %1558 = vrot.lane.b32.xlu0 %v1301, 6
      %v1559 = vpop.permute.xlu0 %1558
      %1560 = vrot.lane.b32.xlu0 %v1303, 6
      %v1561 = vpop.permute.xlu0 %1560
      %1562 = vrot.lane.b32.xlu0 %v1305, 6
      %v1563 = vpop.permute.xlu0 %1562
      %1564 = vrot.lane.b32.xlu0 %v1307, 6
      %v1565 = vpop.permute.xlu0 %1564
      %1566 = vrot.lane.b32.xlu0 %v1309, 6
      %v1567 = vpop.permute.xlu0 %1566
      %1568 = vrot.lane.b32.xlu0 %v1311, 6
      %v1569 = vpop.permute.xlu0 %1568
      %1570 = vrot.lane.b32.xlu0 %v1313, 6
      %v1571 = vpop.permute.xlu0 %1570
      %1572 = vrot.lane.b32.xlu0 %v1315, 6
      %v1573 = vpop.permute.xlu0 %1572
      %1574 = vrot.lane.b32.xlu0 %v1317, 6
      %v1575 = vpop.permute.xlu0 %1574
      %1576 = vrot.lane.b32.xlu0 %v1319, 6
      %v1577 = vpop.permute.xlu0 %1576
      %1578 = vrot.lane.b32.xlu0 %v1321, 6
      %v1579 = vpop.permute.xlu0 %1578
      %1580 = vrot.lane.b32.xlu0 %v1323, 6
      %v1581 = vpop.permute.xlu0 %1580
      %1582 = vrot.lane.b32.xlu0 %v1325, 6
      %v1583 = vpop.permute.xlu0 %1582
      %1584 = vrot.lane.b32.xlu0 %v1327, 6
      %v1585 = vpop.permute.xlu0 %1584
      %1586 = vrot.lane.b32.xlu0 %v1329, 6
      %v1587 = vpop.permute.xlu0 %1586
      %1588 = vrot.lane.b32.xlu0 %v1331, 6
      %v1589 = vpop.permute.xlu0 %1588
      %1590 = vrot.lane.b32.xlu0 %v1333, 6
      %v1591 = vpop.permute.xlu0 %1590
      %1592 = vrot.lane.b32.xlu0 %v1335, 6
      %v1593 = vpop.permute.xlu0 %1592
      %1594 = vrot.lane.b32.xlu0 %v1337, 6
      %v1595 = vpop.permute.xlu0 %1594
      %1596 = vrot.lane.b32.xlu0 %v1339, 6
      %v1597 = vpop.permute.xlu0 %1596
      %1598 = vrot.lane.b32.xlu0 %v1341, 6
      %v1599 = vpop.permute.xlu0 %1598
      %1600 = vrot.lane.b32.xlu0 %v1343, 6
      %v1601 = vpop.permute.xlu0 %1600
      %1602 = vrot.lane.b32.xlu0 %v1345, 6
      %v1603 = vpop.permute.xlu0 %1602
      %1604 = vrot.lane.b32.xlu0 %v1347, 6
      %v1605 = vpop.permute.xlu0 %1604
      %1606 = vrot.lane.b32.xlu0 %v1349, 6
      %v1607 = vpop.permute.xlu0 %1606
      %1608 = vrot.lane.b32.xlu0 %v1351, 6
      %v1609 = vpop.permute.xlu0 %1608
      %1610 = vrot.lane.b32.xlu0 %v1353, 6
      %v1611 = vpop.permute.xlu0 %1610
      %1612 = vrot.lane.b32.xlu0 %v1355, 6
      %v1613 = vpop.permute.xlu0 %1612
      %1614 = vrot.lane.b32.xlu0 %v1357, 6
      %v1615 = vpop.permute.xlu0 %1614
      %1616 = vrot.lane.b32.xlu0 %v1359, 6
      %v1617 = vpop.permute.xlu0 %1616
      %1618 = vrot.lane.b32.xlu0 %v1361, 6
      %v1619 = vpop.permute.xlu0 %1618
      %1620 = vrot.lane.b32.xlu0 %v1363, 6
      %v1621 = vpop.permute.xlu0 %1620
      %1622 = vrot.lane.b32.xlu0 %v1365, 6
      %v1623 = vpop.permute.xlu0 %1622
      %1624 = vrot.lane.b32.xlu0 %v1367, 6
      %v1625 = vpop.permute.xlu0 %1624
      %1626 = vrot.lane.b32.xlu0 %v1369, 6
      %v1627 = vpop.permute.xlu0 %1626
      %1628 = vrot.lane.b32.xlu0 %v1371, 6
      %v1629 = vpop.permute.xlu0 %1628
      %1630 = vrot.lane.b32.xlu0 %v1373, 6
      %v1631 = vpop.permute.xlu0 %1630
      %1632 = vrot.lane.b32.xlu0 %v1375, 6
      %v1633 = vpop.permute.xlu0 %1632
      %1634 = vrot.lane.b32.xlu0 %v1377, 6
      %v1635 = vpop.permute.xlu0 %1634
      %1636 = vrot.lane.b32.xlu0 %v1379, 6
      %v1637 = vpop.permute.xlu0 %1636
      %1638 = vrot.lane.b32.xlu0 %v1381, 6
      %v1639 = vpop.permute.xlu0 %1638
      %1640 = vrot.lane.b32.xlu0 %v1383, 6
      %v1641 = vpop.permute.xlu0 %1640
      %1642 = vrot.lane.b32.xlu0 %v1385, 6
      %v1643 = vpop.permute.xlu0 %1642
      %1644 = vrot.lane.b32.xlu0 %v1387, 6
      %v1645 = vpop.permute.xlu0 %1644
      %1646 = vrot.lane.b32.xlu0 %v1389, 6
      %v1647 = vpop.permute.xlu0 %1646
      %1648 = vrot.lane.b32.xlu0 %v1391, 6
      %v1649 = vpop.permute.xlu0 %1648
      %1650 = vrot.lane.b32.xlu0 %v1393, 6
      %v1651 = vpop.permute.xlu0 %1650
      %1652 = vrot.lane.b32.xlu0 %v1395, 6
      %v1653 = vpop.permute.xlu0 %1652
      %vm1783 = vcmask 23552
      %v1784 = vsel %vm1783, %v225, %v750
      %v1785 = vsel %vm1783, %v226, %v752
      %v1786 = vsel %vm1783, %v227, %v754
      %v1787 = vsel %vm1783, %v228, %v756
      %v1788 = vsel %vm1783, %v229, %v758
      %v1789 = vsel %vm1783, %v230, %v760
      %v1790 = vsel %vm1783, %v231, %v762
      %v1791 = vsel %vm1783, %v232, %v764
      %v1792 = vsel %vm1783, %v233, %v766
      %v1793 = vsel %vm1783, %v234, %v768
      %v1794 = vsel %vm1783, %v235, %v770
      %v1795 = vsel %vm1783, %v236, %v772
      %v1796 = vsel %vm1783, %v237, %v774
      %v1797 = vsel %vm1783, %v238, %v776
      %v1798 = vsel %vm1783, %v239, %v778
      %v1799 = vsel %vm1783, %v240, %v780
      %v1800 = vsel %vm1783, %v241, %v782
      %v1801 = vsel %vm1783, %v242, %v784
      %v1802 = vsel %vm1783, %v243, %v786
      %v1803 = vsel %vm1783, %v244, %v788
      %v1804 = vsel %vm1783, %v245, %v790
      %v1805 = vsel %vm1783, %v246, %v792
      %v1806 = vsel %vm1783, %v247, %v794
      %v1807 = vsel %vm1783, %v248, %v796
      %v1808 = vsel %vm1783, %v249, %v798
      %v1809 = vsel %vm1783, %v250, %v800
      %v1810 = vsel %vm1783, %v251, %v802
      %v1811 = vsel %vm1783, %v252, %v804
      %v1812 = vsel %vm1783, %v253, %v806
      %v1813 = vsel %vm1783, %v254, %v808
      %v1814 = vsel %vm1783, %v255, %v810
      %v1815 = vsel %vm1783, %v256, %v812
      %v1816 = vsel %vm1783, %v257, %v814
      %v1817 = vsel %vm1783, %v258, %v816
      %v1818 = vsel %vm1783, %v259, %v818
      %v1819 = vsel %vm1783, %v260, %v820
      %v1820 = vsel %vm1783, %v261, %v822
      %v1821 = vsel %vm1783, %v262, %v824
      %v1822 = vsel %vm1783, %v263, %v826
      %v1823 = vsel %vm1783, %v264, %v828
      %v1824 = vsel %vm1783, %v265, %v830
      %v1825 = vsel %vm1783, %v266, %v832
      %v1826 = vsel %vm1783, %v267, %v834
      %v1827 = vsel %vm1783, %v268, %v836
      %v1828 = vsel %vm1783, %v269, %v838
      %v1829 = vsel %vm1783, %v270, %v840
      %v1830 = vsel %vm1783, %v271, %v842
      %v1831 = vsel %vm1783, %v272, %v844
      %v1832 = vsel %vm1783, %v273, %v846
      %v1833 = vsel %vm1783, %v274, %v848
      %v1834 = vsel %vm1783, %v275, %v850
      %v1835 = vsel %vm1783, %v276, %v852
      %v1836 = vsel %vm1783, %v277, %v854
      %v1837 = vsel %vm1783, %v278, %v856
      %v1838 = vsel %vm1783, %v279, %v858
      %v1839 = vsel %vm1783, %v280, %v860
      %v1840 = vsel %vm1783, %v281, %v862
      %v1841 = vsel %vm1783, %v282, %v864
      %v1842 = vsel %vm1783, %v283, %v866
      %v1843 = vsel %vm1783, %v284, %v868
      %v1844 = vsel %vm1783, %v285, %v870
      %v1845 = vsel %vm1783, %v286, %v872
      %v1846 = vsel %vm1783, %v287, %v874
      %v1847 = vsel %vm1783, %v288, %v876
      %v1848 = vsel %vm1783, %v289, %v878
      %v1849 = vsel %vm1783, %v290, %v880
      %v1850 = vsel %vm1783, %v291, %v882
      %v1851 = vsel %vm1783, %v292, %v884
      %v1852 = vsel %vm1783, %v293, %v886
      %v1853 = vsel %vm1783, %v294, %v888
      %v1854 = vsel %vm1783, %v295, %v890
      %v1855 = vsel %vm1783, %v296, %v892
      %v1856 = vsel %vm1783, %v297, %v894
      %v1857 = vsel %vm1783, %v298, %v896
      %v1858 = vsel %vm1783, %v299, %v898
      %v1859 = vsel %vm1783, %v300, %v900
      %v1860 = vsel %vm1783, %v301, %v902
      %v1861 = vsel %vm1783, %v302, %v904
      %v1862 = vsel %vm1783, %v303, %v906
      %v1863 = vsel %vm1783, %v304, %v908
      %v1864 = vsel %vm1783, %v305, %v910
      %v1865 = vsel %vm1783, %v306, %v912
      %v1866 = vsel %vm1783, %v307, %v914
      %v1867 = vsel %vm1783, %v308, %v916
      %v1868 = vsel %vm1783, %v309, %v918
      %v1869 = vsel %vm1783, %v310, %v920
      %v1870 = vsel %vm1783, %v311, %v922
      %v1871 = vsel %vm1783, %v312, %v924
      %v1872 = vsel %vm1783, %v313, %v926
      %v1873 = vsel %vm1783, %v314, %v928
      %v1874 = vsel %vm1783, %v315, %v930
      %v1875 = vsel %vm1783, %v316, %v932
      %v1876 = vsel %vm1783, %v317, %v934
      %v1877 = vsel %vm1783, %v318, %v936
      %v1878 = vsel %vm1783, %v319, %v938
      %v1879 = vsel %vm1783, %v320, %v940
      %v1880 = vsel %vm1783, %v321, %v942
      %v1881 = vsel %vm1783, %v322, %v944
      %v1882 = vsel %vm1783, %v323, %v946
      %v1883 = vsel %vm1783, %v324, %v948
      %v1884 = vsel %vm1783, %v325, %v950
      %v1885 = vsel %vm1783, %v326, %v952
      %v1886 = vsel %vm1783, %v327, %v954
      %v1887 = vsel %vm1783, %v328, %v956
      %v1888 = vsel %vm1783, %v329, %v958
      %v1889 = vsel %vm1783, %v330, %v960
      %v1890 = vsel %vm1783, %v331, %v962
      %v1891 = vsel %vm1783, %v332, %v964
      %v1892 = vsel %vm1783, %v333, %v966
      %v1893 = vsel %vm1783, %v334, %v968
      %v1894 = vsel %vm1783, %v335, %v970
      %v1895 = vsel %vm1783, %v336, %v972
      %v1896 = vsel %vm1783, %v337, %v974
      %v1897 = vsel %vm1783, %v338, %v976
      %v1898 = vsel %vm1783, %v339, %v978
      %v1899 = vsel %vm1783, %v340, %v980
      %v1900 = vsel %vm1783, %v341, %v982
      %v1901 = vsel %vm1783, %v342, %v984
      %v1902 = vsel %vm1783, %v343, %v986
      %v1903 = vsel %vm1783, %v344, %v988
      %v1904 = vsel %vm1783, %v345, %v990
      %v1905 = vsel %vm1783, %v346, %v992
      %v1906 = vsel %vm1783, %v347, %v994
      %v1907 = vsel %vm1783, %v348, %v996
      %v1908 = vsel %vm1783, %v349, %v998
      %v1909 = vsel %vm1783, %v350, %v1000
      %v1910 = vsel %vm1783, %v351, %v1002
      %v1911 = vsel %vm1783, %v352, %v1004
      %v1912 = vsel %vm1783, %v353, %v1006
      %vm1913 = vcmask 48128
      %v1914 = vsel %vm1913, %v1784, %v1397
      %v1915 = vsel %vm1913, %v1785, %v1399
      %v1916 = vsel %vm1913, %v1786, %v1401
      %v1917 = vsel %vm1913, %v1787, %v1403
      %v1918 = vsel %vm1913, %v1788, %v1405
      %v1919 = vsel %vm1913, %v1789, %v1407
      %v1920 = vsel %vm1913, %v1790, %v1409
      %v1921 = vsel %vm1913, %v1791, %v1411
      %v1922 = vsel %vm1913, %v1792, %v1413
      %v1923 = vsel %vm1913, %v1793, %v1415
      %v1924 = vsel %vm1913, %v1794, %v1417
      %v1925 = vsel %vm1913, %v1795, %v1419
      %v1926 = vsel %vm1913, %v1796, %v1421
      %v1927 = vsel %vm1913, %v1797, %v1423
      %v1928 = vsel %vm1913, %v1798, %v1425
      %v1929 = vsel %vm1913, %v1799, %v1427
      %v1930 = vsel %vm1913, %v1800, %v1429
      %v1931 = vsel %vm1913, %v1801, %v1431
      %v1932 = vsel %vm1913, %v1802, %v1433
      %v1933 = vsel %vm1913, %v1803, %v1435
      %v1934 = vsel %vm1913, %v1804, %v1437
      %v1935 = vsel %vm1913, %v1805, %v1439
      %v1936 = vsel %vm1913, %v1806, %v1441
      %v1937 = vsel %vm1913, %v1807, %v1443
      %v1938 = vsel %vm1913, %v1808, %v1445
      %v1939 = vsel %vm1913, %v1809, %v1447
      %v1940 = vsel %vm1913, %v1810, %v1449
      %v1941 = vsel %vm1913, %v1811, %v1451
      %v1942 = vsel %vm1913, %v1812, %v1453
      %v1943 = vsel %vm1913, %v1813, %v1455
      %v1944 = vsel %vm1913, %v1814, %v1457
      %v1945 = vsel %vm1913, %v1815, %v1459
      %v1946 = vsel %vm1913, %v1816, %v1461
      %v1947 = vsel %vm1913, %v1817, %v1463
      %v1948 = vsel %vm1913, %v1818, %v1465
      %v1949 = vsel %vm1913, %v1819, %v1467
      %v1950 = vsel %vm1913, %v1820, %v1469
      %v1951 = vsel %vm1913, %v1821, %v1471
      %v1952 = vsel %vm1913, %v1822, %v1473
      %v1953 = vsel %vm1913, %v1823, %v1475
      %v1954 = vsel %vm1913, %v1824, %v1477
      %v1955 = vsel %vm1913, %v1825, %v1479
      %v1956 = vsel %vm1913, %v1826, %v1481
      %v1957 = vsel %vm1913, %v1827, %v1483
      %v1958 = vsel %vm1913, %v1828, %v1485
      %v1959 = vsel %vm1913, %v1829, %v1487
      %v1960 = vsel %vm1913, %v1830, %v1489
      %v1961 = vsel %vm1913, %v1831, %v1491
      %v1962 = vsel %vm1913, %v1832, %v1493
      %v1963 = vsel %vm1913, %v1833, %v1495
      %v1964 = vsel %vm1913, %v1834, %v1497
      %v1965 = vsel %vm1913, %v1835, %v1499
      %v1966 = vsel %vm1913, %v1836, %v1501
      %v1967 = vsel %vm1913, %v1837, %v1503
      %v1968 = vsel %vm1913, %v1838, %v1505
      %v1969 = vsel %vm1913, %v1839, %v1507
      %v1970 = vsel %vm1913, %v1840, %v1509
      %v1971 = vsel %vm1913, %v1841, %v1511
      %v1972 = vsel %vm1913, %v1842, %v1513
      %v1973 = vsel %vm1913, %v1843, %v1515
      %v1974 = vsel %vm1913, %v1844, %v1517
      %v1975 = vsel %vm1913, %v1845, %v1519
      %v1976 = vsel %vm1913, %v1846, %v1521
      %v1977 = vsel %vm1913, %v1847, %v1523
      %v1978 = vsel %vm1913, %v1848, %v1525
      %v1979 = vsel %vm1913, %v1849, %v1527
      %v1980 = vsel %vm1913, %v1850, %v1529
      %v1981 = vsel %vm1913, %v1851, %v1531
      %v1982 = vsel %vm1913, %v1852, %v1533
      %v1983 = vsel %vm1913, %v1853, %v1535
      %v1984 = vsel %vm1913, %v1854, %v1537
      %v1985 = vsel %vm1913, %v1855, %v1539
      %v1986 = vsel %vm1913, %v1856, %v1541
      %v1987 = vsel %vm1913, %v1857, %v1543
      %v1988 = vsel %vm1913, %v1858, %v1545
      %v1989 = vsel %vm1913, %v1859, %v1547
      %v1990 = vsel %vm1913, %v1860, %v1549
      %v1991 = vsel %vm1913, %v1861, %v1551
      %v1992 = vsel %vm1913, %v1862, %v1553
      %v1993 = vsel %vm1913, %v1863, %v1555
      %v1994 = vsel %vm1913, %v1864, %v1557
      %v1995 = vsel %vm1913, %v1865, %v1559
      %v1996 = vsel %vm1913, %v1866, %v1561
      %v1997 = vsel %vm1913, %v1867, %v1563
      %v1998 = vsel %vm1913, %v1868, %v1565
      %v1999 = vsel %vm1913, %v1869, %v1567
      %v2000 = vsel %vm1913, %v1870, %v1569
      %v2001 = vsel %vm1913, %v1871, %v1571
      %v2002 = vsel %vm1913, %v1872, %v1573
      %v2003 = vsel %vm1913, %v1873, %v1575
      %v2004 = vsel %vm1913, %v1874, %v1577
      %v2005 = vsel %vm1913, %v1875, %v1579
      %v2006 = vsel %vm1913, %v1876, %v1581
      %v2007 = vsel %vm1913, %v1877, %v1583
      %v2008 = vsel %vm1913, %v1878, %v1585
      %v2009 = vsel %vm1913, %v1879, %v1587
      %v2010 = vsel %vm1913, %v1880, %v1589
      %v2011 = vsel %vm1913, %v1881, %v1591
      %v2012 = vsel %vm1913, %v1882, %v1593
      %v2013 = vsel %vm1913, %v1883, %v1595
      %v2014 = vsel %vm1913, %v1884, %v1597
      %v2015 = vsel %vm1913, %v1885, %v1599
      %v2016 = vsel %vm1913, %v1886, %v1601
      %v2017 = vsel %vm1913, %v1887, %v1603
      %v2018 = vsel %vm1913, %v1888, %v1605
      %v2019 = vsel %vm1913, %v1889, %v1607
      %v2020 = vsel %vm1913, %v1890, %v1609
      %v2021 = vsel %vm1913, %v1891, %v1611
      %v2022 = vsel %vm1913, %v1892, %v1613
      %v2023 = vsel %vm1913, %v1893, %v1615
      %v2024 = vsel %vm1913, %v1894, %v1617
      %v2025 = vsel %vm1913, %v1895, %v1619
      %v2026 = vsel %vm1913, %v1896, %v1621
      %v2027 = vsel %vm1913, %v1897, %v1623
      %v2028 = vsel %vm1913, %v1898, %v1625
      %v2029 = vsel %vm1913, %v1899, %v1627
      %v2030 = vsel %vm1913, %v1900, %v1629
      %v2031 = vsel %vm1913, %v1901, %v1631
      %v2032 = vsel %vm1913, %v1902, %v1633
      %v2033 = vsel %vm1913, %v1903, %v1635
      %v2034 = vsel %vm1913, %v1904, %v1637
      %v2035 = vsel %vm1913, %v1905, %v1639
      %v2036 = vsel %vm1913, %v1906, %v1641
      %v2037 = vsel %vm1913, %v1907, %v1643
      %v2038 = vsel %vm1913, %v1908, %v1645
      %v2039 = vsel %vm1913, %v1909, %v1647
      %v2040 = vsel %vm1913, %v1910, %v1649
      %v2041 = vsel %vm1913, %v1911, %v1651
      %v2042 = vsel %vm1913, %v1912, %v1653
      %2164 = vrot.lane.b32.xlu0 %v1918, 9
      %v2165 = vpop.permute.xlu0 %2164
      %2166 = vrot.lane.b32.xlu0 %v1919, 9
      %v2167 = vpop.permute.xlu0 %2166
      %2168 = vrot.lane.b32.xlu0 %v1920, 9
      %v2169 = vpop.permute.xlu0 %2168
      %2170 = vrot.lane.b32.xlu0 %v1921, 9
      %v2171 = vpop.permute.xlu0 %2170
      %2172 = vrot.lane.b32.xlu0 %v1922, 9
      %v2173 = vpop.permute.xlu0 %2172
      %2174 = vrot.lane.b32.xlu0 %v1923, 9
      %v2175 = vpop.permute.xlu0 %2174
      %2176 = vrot.lane.b32.xlu0 %v1924, 9
      %v2177 = vpop.permute.xlu0 %2176
      %2178 = vrot.lane.b32.xlu0 %v1925, 9
      %v2179 = vpop.permute.xlu0 %2178
      %2180 = vrot.lane.b32.xlu0 %v1926, 9
      %v2181 = vpop.permute.xlu0 %2180
      %2182 = vrot.lane.b32.xlu0 %v1927, 9
      %v2183 = vpop.permute.xlu0 %2182
      %2184 = vrot.lane.b32.xlu0 %v1928, 9
      %v2185 = vpop.permute.xlu0 %2184
      %2186 = vrot.lane.b32.xlu0 %v1929, 9
      %v2187 = vpop.permute.xlu0 %2186
      %2188 = vrot.lane.b32.xlu0 %v1930, 9
      %v2189 = vpop.permute.xlu0 %2188
      %2190 = vrot.lane.b32.xlu0 %v1931, 9
      %v2191 = vpop.permute.xlu0 %2190
      %2192 = vrot.lane.b32.xlu0 %v1932, 9
      %v2193 = vpop.permute.xlu0 %2192
      %2194 = vrot.lane.b32.xlu0 %v1933, 9
      %v2195 = vpop.permute.xlu0 %2194
      %2196 = vrot.lane.b32.xlu0 %v1934, 9
      %v2197 = vpop.permute.xlu0 %2196
      %2198 = vrot.lane.b32.xlu0 %v1935, 9
      %v2199 = vpop.permute.xlu0 %2198
      %2200 = vrot.lane.b32.xlu0 %v1936, 9
      %v2201 = vpop.permute.xlu0 %2200
      %2202 = vrot.lane.b32.xlu0 %v1937, 9
      %v2203 = vpop.permute.xlu0 %2202
      %2204 = vrot.lane.b32.xlu0 %v1938, 9
      %v2205 = vpop.permute.xlu0 %2204
      %2206 = vrot.lane.b32.xlu0 %v1939, 9
      %v2207 = vpop.permute.xlu0 %2206
      %2208 = vrot.lane.b32.xlu0 %v1940, 9
      %v2209 = vpop.permute.xlu0 %2208
      %2210 = vrot.lane.b32.xlu0 %v1941, 9
      %v2211 = vpop.permute.xlu0 %2210
      %2212 = vrot.lane.b32.xlu0 %v1942, 9
      %v2213 = vpop.permute.xlu0 %2212
      %2214 = vrot.lane.b32.xlu0 %v1943, 9
      %v2215 = vpop.permute.xlu0 %2214
      %2216 = vrot.lane.b32.xlu0 %v1944, 9
      %v2217 = vpop.permute.xlu0 %2216
      %2218 = vrot.lane.b32.xlu0 %v1945, 9
      %v2219 = vpop.permute.xlu0 %2218
      %2220 = vrot.lane.b32.xlu0 %v1946, 9
      %v2221 = vpop.permute.xlu0 %2220
      %2222 = vrot.lane.b32.xlu0 %v1947, 9
      %v2223 = vpop.permute.xlu0 %2222
      %2224 = vrot.lane.b32.xlu0 %v1948, 9
      %v2225 = vpop.permute.xlu0 %2224
      %2226 = vrot.lane.b32.xlu0 %v1949, 9
      %v2227 = vpop.permute.xlu0 %2226
      %2228 = vrot.lane.b32.xlu0 %v1950, 9
      %v2229 = vpop.permute.xlu0 %2228
      %2230 = vrot.lane.b32.xlu0 %v1951, 9
      %v2231 = vpop.permute.xlu0 %2230
      %2232 = vrot.lane.b32.xlu0 %v1952, 9
      %v2233 = vpop.permute.xlu0 %2232
      %2234 = vrot.lane.b32.xlu0 %v1953, 9
      %v2235 = vpop.permute.xlu0 %2234
      %2236 = vrot.lane.b32.xlu0 %v1954, 9
      %v2237 = vpop.permute.xlu0 %2236
      %2238 = vrot.lane.b32.xlu0 %v1955, 9
      %v2239 = vpop.permute.xlu0 %2238
      %2240 = vrot.lane.b32.xlu0 %v1956, 9
      %v2241 = vpop.permute.xlu0 %2240
      %2242 = vrot.lane.b32.xlu0 %v1957, 9
      %v2243 = vpop.permute.xlu0 %2242
      %2244 = vrot.lane.b32.xlu0 %v1958, 9
      %v2245 = vpop.permute.xlu0 %2244
      %2246 = vrot.lane.b32.xlu0 %v1959, 9
      %v2247 = vpop.permute.xlu0 %2246
      %2248 = vrot.lane.b32.xlu0 %v1960, 9
      %v2249 = vpop.permute.xlu0 %2248
      %2250 = vrot.lane.b32.xlu0 %v1961, 9
      %v2251 = vpop.permute.xlu0 %2250
      %2252 = vrot.lane.b32.xlu0 %v1962, 9
      %v2253 = vpop.permute.xlu0 %2252
      %2254 = vrot.lane.b32.xlu0 %v1963, 9
      %v2255 = vpop.permute.xlu0 %2254
      %2256 = vrot.lane.b32.xlu0 %v1964, 9
      %v2257 = vpop.permute.xlu0 %2256
      %2258 = vrot.lane.b32.xlu0 %v1965, 9
      %v2259 = vpop.permute.xlu0 %2258
      %2260 = vrot.lane.b32.xlu0 %v1966, 9
      %v2261 = vpop.permute.xlu0 %2260
      %2262 = vrot.lane.b32.xlu0 %v1967, 9
      %v2263 = vpop.permute.xlu0 %2262
      %2264 = vrot.lane.b32.xlu0 %v1968, 9
      %v2265 = vpop.permute.xlu0 %2264
      %2266 = vrot.lane.b32.xlu0 %v1969, 9
      %v2267 = vpop.permute.xlu0 %2266
      %2268 = vrot.lane.b32.xlu0 %v1970, 9
      %v2269 = vpop.permute.xlu0 %2268
      %2270 = vrot.lane.b32.xlu0 %v1971, 9
      %v2271 = vpop.permute.xlu0 %2270
      %2272 = vrot.lane.b32.xlu0 %v1972, 9
      %v2273 = vpop.permute.xlu0 %2272
      %2274 = vrot.lane.b32.xlu0 %v1973, 9
      %v2275 = vpop.permute.xlu0 %2274
      %2276 = vrot.lane.b32.xlu0 %v1974, 9
      %v2277 = vpop.permute.xlu0 %2276
      %2278 = vrot.lane.b32.xlu0 %v1975, 9
      %v2279 = vpop.permute.xlu0 %2278
      %2280 = vrot.lane.b32.xlu0 %v1976, 9
      %v2281 = vpop.permute.xlu0 %2280
      %2282 = vrot.lane.b32.xlu0 %v1977, 9
      %v2283 = vpop.permute.xlu0 %2282
      %2284 = vrot.lane.b32.xlu0 %v1978, 9
      %v2285 = vpop.permute.xlu0 %2284
      %2286 = vrot.lane.b32.xlu0 %v1979, 9
      %v2287 = vpop.permute.xlu0 %2286
      %2288 = vrot.lane.b32.xlu0 %v1980, 9
      %v2289 = vpop.permute.xlu0 %2288
      %2290 = vrot.lane.b32.xlu0 %v1981, 9
      %v2291 = vpop.permute.xlu0 %2290
      %2292 = vrot.lane.b32.xlu0 %v1982, 9
      %v2293 = vpop.permute.xlu0 %2292
      %2294 = vrot.lane.b32.xlu0 %v1983, 9
      %v2295 = vpop.permute.xlu0 %2294
      %2296 = vrot.lane.b32.xlu0 %v1984, 9
      %v2297 = vpop.permute.xlu0 %2296
      %2298 = vrot.lane.b32.xlu0 %v1985, 9
      %v2299 = vpop.permute.xlu0 %2298
      %2300 = vrot.lane.b32.xlu0 %v1986, 9
      %v2301 = vpop.permute.xlu0 %2300
      %2302 = vrot.lane.b32.xlu0 %v1987, 9
      %v2303 = vpop.permute.xlu0 %2302
      %2304 = vrot.lane.b32.xlu0 %v1988, 9
      %v2305 = vpop.permute.xlu0 %2304
      %2306 = vrot.lane.b32.xlu0 %v1989, 9
      %v2307 = vpop.permute.xlu0 %2306
      %2308 = vrot.lane.b32.xlu0 %v1990, 9
      %v2309 = vpop.permute.xlu0 %2308
      %2310 = vrot.lane.b32.xlu0 %v1991, 9
      %v2311 = vpop.permute.xlu0 %2310
      %2312 = vrot.lane.b32.xlu0 %v1992, 9
      %v2313 = vpop.permute.xlu0 %2312
      %2314 = vrot.lane.b32.xlu0 %v1993, 9
      %v2315 = vpop.permute.xlu0 %2314
      %2316 = vrot.lane.b32.xlu0 %v1994, 9
      %v2317 = vpop.permute.xlu0 %2316
      %2318 = vrot.lane.b32.xlu0 %v1995, 9
      %v2319 = vpop.permute.xlu0 %2318
      %2320 = vrot.lane.b32.xlu0 %v1996, 9
      %v2321 = vpop.permute.xlu0 %2320
      %2322 = vrot.lane.b32.xlu0 %v1997, 9
      %v2323 = vpop.permute.xlu0 %2322
      %2324 = vrot.lane.b32.xlu0 %v1998, 9
      %v2325 = vpop.permute.xlu0 %2324
      %2326 = vrot.lane.b32.xlu0 %v1999, 9
      %v2327 = vpop.permute.xlu0 %2326
      %2328 = vrot.lane.b32.xlu0 %v2000, 9
      %v2329 = vpop.permute.xlu0 %2328
      %2330 = vrot.lane.b32.xlu0 %v2001, 9
      %v2331 = vpop.permute.xlu0 %2330
      %2332 = vrot.lane.b32.xlu0 %v2002, 9
      %v2333 = vpop.permute.xlu0 %2332
      %2334 = vrot.lane.b32.xlu0 %v2003, 9
      %v2335 = vpop.permute.xlu0 %2334
      %2336 = vrot.lane.b32.xlu0 %v2004, 9
      %v2337 = vpop.permute.xlu0 %2336
      %2338 = vrot.lane.b32.xlu0 %v2005, 9
      %v2339 = vpop.permute.xlu0 %2338
      %2340 = vrot.lane.b32.xlu0 %v2006, 9
      %v2341 = vpop.permute.xlu0 %2340
      %2342 = vrot.lane.b32.xlu0 %v2007, 9
      %v2343 = vpop.permute.xlu0 %2342
      %2344 = vrot.lane.b32.xlu0 %v2008, 9
      %v2345 = vpop.permute.xlu0 %2344
      %2346 = vrot.lane.b32.xlu0 %v2009, 9
      %v2347 = vpop.permute.xlu0 %2346
      %2348 = vrot.lane.b32.xlu0 %v2010, 9
      %v2349 = vpop.permute.xlu0 %2348
      %2350 = vrot.lane.b32.xlu0 %v2011, 9
      %v2351 = vpop.permute.xlu0 %2350
      %2352 = vrot.lane.b32.xlu0 %v2012, 9
      %v2353 = vpop.permute.xlu0 %2352
      %2354 = vrot.lane.b32.xlu0 %v2013, 9
      %v2355 = vpop.permute.xlu0 %2354
      %2356 = vrot.lane.b32.xlu0 %v2014, 9
      %v2357 = vpop.permute.xlu0 %2356
      %2358 = vrot.lane.b32.xlu0 %v2015, 9
      %v2359 = vpop.permute.xlu0 %2358
      %2360 = vrot.lane.b32.xlu0 %v2016, 9
      %v2361 = vpop.permute.xlu0 %2360
      %2362 = vrot.lane.b32.xlu0 %v2017, 9
      %v2363 = vpop.permute.xlu0 %2362
      %2364 = vrot.lane.b32.xlu0 %v2018, 9
      %v2365 = vpop.permute.xlu0 %2364
      %2366 = vrot.lane.b32.xlu0 %v2019, 9
      %v2367 = vpop.permute.xlu0 %2366
      %2368 = vrot.lane.b32.xlu0 %v2020, 9
      %v2369 = vpop.permute.xlu0 %2368
      %2370 = vrot.lane.b32.xlu0 %v2021, 9
      %v2371 = vpop.permute.xlu0 %2370
      %2372 = vrot.lane.b32.xlu0 %v2022, 9
      %v2373 = vpop.permute.xlu0 %2372
      %2374 = vrot.lane.b32.xlu0 %v2023, 9
      %v2375 = vpop.permute.xlu0 %2374
      %2376 = vrot.lane.b32.xlu0 %v2024, 9
      %v2377 = vpop.permute.xlu0 %2376
      %2378 = vrot.lane.b32.xlu0 %v2025, 9
      %v2379 = vpop.permute.xlu0 %2378
      %2380 = vrot.lane.b32.xlu0 %v2026, 9
      %v2381 = vpop.permute.xlu0 %2380
      %2382 = vrot.lane.b32.xlu0 %v2027, 9
      %v2383 = vpop.permute.xlu0 %2382
      %2384 = vrot.lane.b32.xlu0 %v2028, 9
      %v2385 = vpop.permute.xlu0 %2384
      %2386 = vrot.lane.b32.xlu0 %v2029, 9
      %v2387 = vpop.permute.xlu0 %2386
      %2388 = vrot.lane.b32.xlu0 %v2030, 9
      %v2389 = vpop.permute.xlu0 %2388
      %2390 = vrot.lane.b32.xlu0 %v2031, 9
      %v2391 = vpop.permute.xlu0 %2390
      %2392 = vrot.lane.b32.xlu0 %v2032, 9
      %v2393 = vpop.permute.xlu0 %2392
      %2394 = vrot.lane.b32.xlu0 %v2033, 9
      %v2395 = vpop.permute.xlu0 %2394
      %2396 = vrot.lane.b32.xlu0 %v2034, 9
      %v2397 = vpop.permute.xlu0 %2396
      %2398 = vrot.lane.b32.xlu0 %v2035, 9
      %v2399 = vpop.permute.xlu0 %2398
      %2400 = vrot.lane.b32.xlu0 %v2036, 9
      %v2401 = vpop.permute.xlu0 %2400
      %2402 = vrot.lane.b32.xlu0 %v2037, 9
      %v2403 = vpop.permute.xlu0 %2402
      %2404 = vrot.lane.b32.xlu0 %v2038, 9
      %v2405 = vpop.permute.xlu0 %2404
      %2531 = vrot.lane.b32.xlu0 %v1922, 18
      %v2532 = vpop.permute.xlu0 %2531
      %2533 = vrot.lane.b32.xlu0 %v1923, 18
      %v2534 = vpop.permute.xlu0 %2533
      %2535 = vrot.lane.b32.xlu0 %v1924, 18
      %v2536 = vpop.permute.xlu0 %2535
      %2537 = vrot.lane.b32.xlu0 %v1925, 18
      %v2538 = vpop.permute.xlu0 %2537
      %2539 = vrot.lane.b32.xlu0 %v1926, 18
      %v2540 = vpop.permute.xlu0 %2539
      %2541 = vrot.lane.b32.xlu0 %v1927, 18
      %v2542 = vpop.permute.xlu0 %2541
      %2543 = vrot.lane.b32.xlu0 %v1928, 18
      %v2544 = vpop.permute.xlu0 %2543
      %2545 = vrot.lane.b32.xlu0 %v1929, 18
      %v2546 = vpop.permute.xlu0 %2545
      %2547 = vrot.lane.b32.xlu0 %v1930, 18
      %v2548 = vpop.permute.xlu0 %2547
      %2549 = vrot.lane.b32.xlu0 %v1931, 18
      %v2550 = vpop.permute.xlu0 %2549
      %2551 = vrot.lane.b32.xlu0 %v1932, 18
      %v2552 = vpop.permute.xlu0 %2551
      %2553 = vrot.lane.b32.xlu0 %v1933, 18
      %v2554 = vpop.permute.xlu0 %2553
      %2555 = vrot.lane.b32.xlu0 %v1934, 18
      %v2556 = vpop.permute.xlu0 %2555
      %2557 = vrot.lane.b32.xlu0 %v1935, 18
      %v2558 = vpop.permute.xlu0 %2557
      %2559 = vrot.lane.b32.xlu0 %v1936, 18
      %v2560 = vpop.permute.xlu0 %2559
      %2561 = vrot.lane.b32.xlu0 %v1937, 18
      %v2562 = vpop.permute.xlu0 %2561
      %2563 = vrot.lane.b32.xlu0 %v1938, 18
      %v2564 = vpop.permute.xlu0 %2563
      %2565 = vrot.lane.b32.xlu0 %v1939, 18
      %v2566 = vpop.permute.xlu0 %2565
      %2567 = vrot.lane.b32.xlu0 %v1940, 18
      %v2568 = vpop.permute.xlu0 %2567
      %2569 = vrot.lane.b32.xlu0 %v1941, 18
      %v2570 = vpop.permute.xlu0 %2569
      %2571 = vrot.lane.b32.xlu0 %v1942, 18
      %v2572 = vpop.permute.xlu0 %2571
      %2573 = vrot.lane.b32.xlu0 %v1943, 18
      %v2574 = vpop.permute.xlu0 %2573
      %2575 = vrot.lane.b32.xlu0 %v1944, 18
      %v2576 = vpop.permute.xlu0 %2575
      %2577 = vrot.lane.b32.xlu0 %v1945, 18
      %v2578 = vpop.permute.xlu0 %2577
      %2579 = vrot.lane.b32.xlu0 %v1946, 18
      %v2580 = vpop.permute.xlu0 %2579
      %2581 = vrot.lane.b32.xlu0 %v1947, 18
      %v2582 = vpop.permute.xlu0 %2581
      %2583 = vrot.lane.b32.xlu0 %v1948, 18
      %v2584 = vpop.permute.xlu0 %2583
      %2585 = vrot.lane.b32.xlu0 %v1949, 18
      %v2586 = vpop.permute.xlu0 %2585
      %2587 = vrot.lane.b32.xlu0 %v1950, 18
      %v2588 = vpop.permute.xlu0 %2587
      %2589 = vrot.lane.b32.xlu0 %v1951, 18
      %v2590 = vpop.permute.xlu0 %2589
      %2591 = vrot.lane.b32.xlu0 %v1952, 18
      %v2592 = vpop.permute.xlu0 %2591
      %2593 = vrot.lane.b32.xlu0 %v1953, 18
      %v2594 = vpop.permute.xlu0 %2593
      %2595 = vrot.lane.b32.xlu0 %v1954, 18
      %v2596 = vpop.permute.xlu0 %2595
      %2597 = vrot.lane.b32.xlu0 %v1955, 18
      %v2598 = vpop.permute.xlu0 %2597
      %2599 = vrot.lane.b32.xlu0 %v1956, 18
      %v2600 = vpop.permute.xlu0 %2599
      %2601 = vrot.lane.b32.xlu0 %v1957, 18
      %v2602 = vpop.permute.xlu0 %2601
      %2603 = vrot.lane.b32.xlu0 %v1958, 18
      %v2604 = vpop.permute.xlu0 %2603
      %2605 = vrot.lane.b32.xlu0 %v1959, 18
      %v2606 = vpop.permute.xlu0 %2605
      %2607 = vrot.lane.b32.xlu0 %v1960, 18
      %v2608 = vpop.permute.xlu0 %2607
      %2609 = vrot.lane.b32.xlu0 %v1961, 18
      %v2610 = vpop.permute.xlu0 %2609
      %2611 = vrot.lane.b32.xlu0 %v1962, 18
      %v2612 = vpop.permute.xlu0 %2611
      %2613 = vrot.lane.b32.xlu0 %v1963, 18
      %v2614 = vpop.permute.xlu0 %2613
      %2615 = vrot.lane.b32.xlu0 %v1964, 18
      %v2616 = vpop.permute.xlu0 %2615
      %2617 = vrot.lane.b32.xlu0 %v1965, 18
      %v2618 = vpop.permute.xlu0 %2617
      %2619 = vrot.lane.b32.xlu0 %v1966, 18
      %v2620 = vpop.permute.xlu0 %2619
      %2621 = vrot.lane.b32.xlu0 %v1967, 18
      %v2622 = vpop.permute.xlu0 %2621
      %2623 = vrot.lane.b32.xlu0 %v1968, 18
      %v2624 = vpop.permute.xlu0 %2623
      %2625 = vrot.lane.b32.xlu0 %v1969, 18
      %v2626 = vpop.permute.xlu0 %2625
      %2627 = vrot.lane.b32.xlu0 %v1970, 18
      %v2628 = vpop.permute.xlu0 %2627
      %2629 = vrot.lane.b32.xlu0 %v1971, 18
      %v2630 = vpop.permute.xlu0 %2629
      %2631 = vrot.lane.b32.xlu0 %v1972, 18
      %v2632 = vpop.permute.xlu0 %2631
      %2633 = vrot.lane.b32.xlu0 %v1973, 18
      %v2634 = vpop.permute.xlu0 %2633
      %2635 = vrot.lane.b32.xlu0 %v1974, 18
      %v2636 = vpop.permute.xlu0 %2635
      %2637 = vrot.lane.b32.xlu0 %v1975, 18
      %v2638 = vpop.permute.xlu0 %2637
      %2639 = vrot.lane.b32.xlu0 %v1976, 18
      %v2640 = vpop.permute.xlu0 %2639
      %2641 = vrot.lane.b32.xlu0 %v1977, 18
      %v2642 = vpop.permute.xlu0 %2641
      %2643 = vrot.lane.b32.xlu0 %v1978, 18
      %v2644 = vpop.permute.xlu0 %2643
      %2645 = vrot.lane.b32.xlu0 %v1979, 18
      %v2646 = vpop.permute.xlu0 %2645
      %2647 = vrot.lane.b32.xlu0 %v1980, 18
      %v2648 = vpop.permute.xlu0 %2647
      %2649 = vrot.lane.b32.xlu0 %v1981, 18
      %v2650 = vpop.permute.xlu0 %2649
      %2651 = vrot.lane.b32.xlu0 %v1982, 18
      %v2652 = vpop.permute.xlu0 %2651
      %2653 = vrot.lane.b32.xlu0 %v1983, 18
      %v2654 = vpop.permute.xlu0 %2653
      %2655 = vrot.lane.b32.xlu0 %v1984, 18
      %v2656 = vpop.permute.xlu0 %2655
      %2657 = vrot.lane.b32.xlu0 %v1985, 18
      %v2658 = vpop.permute.xlu0 %2657
      %2659 = vrot.lane.b32.xlu0 %v1986, 18
      %v2660 = vpop.permute.xlu0 %2659
      %2661 = vrot.lane.b32.xlu0 %v1987, 18
      %v2662 = vpop.permute.xlu0 %2661
      %2663 = vrot.lane.b32.xlu0 %v1988, 18
      %v2664 = vpop.permute.xlu0 %2663
      %2665 = vrot.lane.b32.xlu0 %v1989, 18
      %v2666 = vpop.permute.xlu0 %2665
      %2667 = vrot.lane.b32.xlu0 %v1990, 18
      %v2668 = vpop.permute.xlu0 %2667
      %2669 = vrot.lane.b32.xlu0 %v1991, 18
      %v2670 = vpop.permute.xlu0 %2669
      %2671 = vrot.lane.b32.xlu0 %v1992, 18
      %v2672 = vpop.permute.xlu0 %2671
      %2673 = vrot.lane.b32.xlu0 %v1993, 18
      %v2674 = vpop.permute.xlu0 %2673
      %2675 = vrot.lane.b32.xlu0 %v1994, 18
      %v2676 = vpop.permute.xlu0 %2675
      %2677 = vrot.lane.b32.xlu0 %v1995, 18
      %v2678 = vpop.permute.xlu0 %2677
      %2679 = vrot.lane.b32.xlu0 %v1996, 18
      %v2680 = vpop.permute.xlu0 %2679
      %2681 = vrot.lane.b32.xlu0 %v1997, 18
      %v2682 = vpop.permute.xlu0 %2681
      %2683 = vrot.lane.b32.xlu0 %v1998, 18
      %v2684 = vpop.permute.xlu0 %2683
      %2685 = vrot.lane.b32.xlu0 %v1999, 18
      %v2686 = vpop.permute.xlu0 %2685
      %2687 = vrot.lane.b32.xlu0 %v2000, 18
      %v2688 = vpop.permute.xlu0 %2687
      %2689 = vrot.lane.b32.xlu0 %v2001, 18
      %v2690 = vpop.permute.xlu0 %2689
      %2691 = vrot.lane.b32.xlu0 %v2002, 18
      %v2692 = vpop.permute.xlu0 %2691
      %2693 = vrot.lane.b32.xlu0 %v2003, 18
      %v2694 = vpop.permute.xlu0 %2693
      %2695 = vrot.lane.b32.xlu0 %v2004, 18
      %v2696 = vpop.permute.xlu0 %2695
      %2697 = vrot.lane.b32.xlu0 %v2005, 18
      %v2698 = vpop.permute.xlu0 %2697
      %2699 = vrot.lane.b32.xlu0 %v2006, 18
      %v2700 = vpop.permute.xlu0 %2699
      %2701 = vrot.lane.b32.xlu0 %v2007, 18
      %v2702 = vpop.permute.xlu0 %2701
      %2703 = vrot.lane.b32.xlu0 %v2008, 18
      %v2704 = vpop.permute.xlu0 %2703
      %2705 = vrot.lane.b32.xlu0 %v2009, 18
      %v2706 = vpop.permute.xlu0 %2705
      %2707 = vrot.lane.b32.xlu0 %v2010, 18
      %v2708 = vpop.permute.xlu0 %2707
      %2709 = vrot.lane.b32.xlu0 %v2011, 18
      %v2710 = vpop.permute.xlu0 %2709
      %2711 = vrot.lane.b32.xlu0 %v2012, 18
      %v2712 = vpop.permute.xlu0 %2711
      %2713 = vrot.lane.b32.xlu0 %v2013, 18
      %v2714 = vpop.permute.xlu0 %2713
      %2715 = vrot.lane.b32.xlu0 %v2014, 18
      %v2716 = vpop.permute.xlu0 %2715
      %2717 = vrot.lane.b32.xlu0 %v2015, 18
      %v2718 = vpop.permute.xlu0 %2717
      %2719 = vrot.lane.b32.xlu0 %v2016, 18
      %v2720 = vpop.permute.xlu0 %2719
      %2721 = vrot.lane.b32.xlu0 %v2017, 18
      %v2722 = vpop.permute.xlu0 %2721
      %2723 = vrot.lane.b32.xlu0 %v2018, 18
      %v2724 = vpop.permute.xlu0 %2723
      %2725 = vrot.lane.b32.xlu0 %v2019, 18
      %v2726 = vpop.permute.xlu0 %2725
      %2727 = vrot.lane.b32.xlu0 %v2020, 18
      %v2728 = vpop.permute.xlu0 %2727
      %2729 = vrot.lane.b32.xlu0 %v2021, 18
      %v2730 = vpop.permute.xlu0 %2729
      %2731 = vrot.lane.b32.xlu0 %v2022, 18
      %v2732 = vpop.permute.xlu0 %2731
      %2733 = vrot.lane.b32.xlu0 %v2023, 18
      %v2734 = vpop.permute.xlu0 %2733
      %2735 = vrot.lane.b32.xlu0 %v2024, 18
      %v2736 = vpop.permute.xlu0 %2735
      %2737 = vrot.lane.b32.xlu0 %v2025, 18
      %v2738 = vpop.permute.xlu0 %2737
      %2739 = vrot.lane.b32.xlu0 %v2026, 18
      %v2740 = vpop.permute.xlu0 %2739
      %2741 = vrot.lane.b32.xlu0 %v2027, 18
      %v2742 = vpop.permute.xlu0 %2741
      %2743 = vrot.lane.b32.xlu0 %v2028, 18
      %v2744 = vpop.permute.xlu0 %2743
      %2745 = vrot.lane.b32.xlu0 %v2029, 18
      %v2746 = vpop.permute.xlu0 %2745
      %2747 = vrot.lane.b32.xlu0 %v2030, 18
      %v2748 = vpop.permute.xlu0 %2747
      %2749 = vrot.lane.b32.xlu0 %v2031, 18
      %v2750 = vpop.permute.xlu0 %2749
      %2751 = vrot.lane.b32.xlu0 %v2032, 18
      %v2752 = vpop.permute.xlu0 %2751
      %2753 = vrot.lane.b32.xlu0 %v2033, 18
      %v2754 = vpop.permute.xlu0 %2753
      %2755 = vrot.lane.b32.xlu0 %v2034, 18
      %v2756 = vpop.permute.xlu0 %2755
      %2757 = vrot.lane.b32.xlu0 %v2035, 18
      %v2758 = vpop.permute.xlu0 %2757
      %2759 = vrot.lane.b32.xlu0 %v2036, 18
      %v2760 = vpop.permute.xlu0 %2759
      %2761 = vrot.lane.b32.xlu0 %v2037, 18
      %v2762 = vpop.permute.xlu0 %2761
      %2763 = vrot.lane.b32.xlu0 %v2038, 18
      %v2764 = vpop.permute.xlu0 %2763
      %2765 = vrot.lane.b32.xlu0 %v2039, 18
      %v2766 = vpop.permute.xlu0 %2765
      %2767 = vrot.lane.b32.xlu0 %v2040, 18
      %v2768 = vpop.permute.xlu0 %2767
      %2769 = vrot.lane.b32.xlu0 %v2041, 18
      %v2770 = vpop.permute.xlu0 %2769
      %2771 = vrot.lane.b32.xlu0 %v2042, 18
      %v2772 = vpop.permute.xlu0 %2771
      %vm2894 = vcmask 72704
      %v2895 = vsel %vm2894, %v1914, %v2165
      %v2896 = vsel %vm2894, %v1915, %v2167
      %v2897 = vsel %vm2894, %v1916, %v2169
      %v2898 = vsel %vm2894, %v1917, %v2171
      %v2899 = vsel %vm2894, %v1918, %v2173
      %v2900 = vsel %vm2894, %v1919, %v2175
      %v2901 = vsel %vm2894, %v1920, %v2177
      %v2902 = vsel %vm2894, %v1921, %v2179
      %v2903 = vsel %vm2894, %v1922, %v2181
      %v2904 = vsel %vm2894, %v1923, %v2183
      %v2905 = vsel %vm2894, %v1924, %v2185
      %v2906 = vsel %vm2894, %v1925, %v2187
      %v2907 = vsel %vm2894, %v1926, %v2189
      %v2908 = vsel %vm2894, %v1927, %v2191
      %v2909 = vsel %vm2894, %v1928, %v2193
      %v2910 = vsel %vm2894, %v1929, %v2195
      %v2911 = vsel %vm2894, %v1930, %v2197
      %v2912 = vsel %vm2894, %v1931, %v2199
      %v2913 = vsel %vm2894, %v1932, %v2201
      %v2914 = vsel %vm2894, %v1933, %v2203
      %v2915 = vsel %vm2894, %v1934, %v2205
      %v2916 = vsel %vm2894, %v1935, %v2207
      %v2917 = vsel %vm2894, %v1936, %v2209
      %v2918 = vsel %vm2894, %v1937, %v2211
      %v2919 = vsel %vm2894, %v1938, %v2213
      %v2920 = vsel %vm2894, %v1939, %v2215
      %v2921 = vsel %vm2894, %v1940, %v2217
      %v2922 = vsel %vm2894, %v1941, %v2219
      %v2923 = vsel %vm2894, %v1942, %v2221
      %v2924 = vsel %vm2894, %v1943, %v2223
      %v2925 = vsel %vm2894, %v1944, %v2225
      %v2926 = vsel %vm2894, %v1945, %v2227
      %v2927 = vsel %vm2894, %v1946, %v2229
      %v2928 = vsel %vm2894, %v1947, %v2231
      %v2929 = vsel %vm2894, %v1948, %v2233
      %v2930 = vsel %vm2894, %v1949, %v2235
      %v2931 = vsel %vm2894, %v1950, %v2237
      %v2932 = vsel %vm2894, %v1951, %v2239
      %v2933 = vsel %vm2894, %v1952, %v2241
      %v2934 = vsel %vm2894, %v1953, %v2243
      %v2935 = vsel %vm2894, %v1954, %v2245
      %v2936 = vsel %vm2894, %v1955, %v2247
      %v2937 = vsel %vm2894, %v1956, %v2249
      %v2938 = vsel %vm2894, %v1957, %v2251
      %v2939 = vsel %vm2894, %v1958, %v2253
      %v2940 = vsel %vm2894, %v1959, %v2255
      %v2941 = vsel %vm2894, %v1960, %v2257
      %v2942 = vsel %vm2894, %v1961, %v2259
      %v2943 = vsel %vm2894, %v1962, %v2261
      %v2944 = vsel %vm2894, %v1963, %v2263
      %v2945 = vsel %vm2894, %v1964, %v2265
      %v2946 = vsel %vm2894, %v1965, %v2267
      %v2947 = vsel %vm2894, %v1966, %v2269
      %v2948 = vsel %vm2894, %v1967, %v2271
      %v2949 = vsel %vm2894, %v1968, %v2273
      %v2950 = vsel %vm2894, %v1969, %v2275
      %v2951 = vsel %vm2894, %v1970, %v2277
      %v2952 = vsel %vm2894, %v1971, %v2279
      %v2953 = vsel %vm2894, %v1972, %v2281
      %v2954 = vsel %vm2894, %v1973, %v2283
      %v2955 = vsel %vm2894, %v1974, %v2285
      %v2956 = vsel %vm2894, %v1975, %v2287
      %v2957 = vsel %vm2894, %v1976, %v2289
      %v2958 = vsel %vm2894, %v1977, %v2291
      %v2959 = vsel %vm2894, %v1978, %v2293
      %v2960 = vsel %vm2894, %v1979, %v2295
      %v2961 = vsel %vm2894, %v1980, %v2297
      %v2962 = vsel %vm2894, %v1981, %v2299
      %v2963 = vsel %vm2894, %v1982, %v2301
      %v2964 = vsel %vm2894, %v1983, %v2303
      %v2965 = vsel %vm2894, %v1984, %v2305
      %v2966 = vsel %vm2894, %v1985, %v2307
      %v2967 = vsel %vm2894, %v1986, %v2309
      %v2968 = vsel %vm2894, %v1987, %v2311
      %v2969 = vsel %vm2894, %v1988, %v2313
      %v2970 = vsel %vm2894, %v1989, %v2315
      %v2971 = vsel %vm2894, %v1990, %v2317
      %v2972 = vsel %vm2894, %v1991, %v2319
      %v2973 = vsel %vm2894, %v1992, %v2321
      %v2974 = vsel %vm2894, %v1993, %v2323
      %v2975 = vsel %vm2894, %v1994, %v2325
      %v2976 = vsel %vm2894, %v1995, %v2327
      %v2977 = vsel %vm2894, %v1996, %v2329
      %v2978 = vsel %vm2894, %v1997, %v2331
      %v2979 = vsel %vm2894, %v1998, %v2333
      %v2980 = vsel %vm2894, %v1999, %v2335
      %v2981 = vsel %vm2894, %v2000, %v2337
      %v2982 = vsel %vm2894, %v2001, %v2339
      %v2983 = vsel %vm2894, %v2002, %v2341
      %v2984 = vsel %vm2894, %v2003, %v2343
      %v2985 = vsel %vm2894, %v2004, %v2345
      %v2986 = vsel %vm2894, %v2005, %v2347
      %v2987 = vsel %vm2894, %v2006, %v2349
      %v2988 = vsel %vm2894, %v2007, %v2351
      %v2989 = vsel %vm2894, %v2008, %v2353
      %v2990 = vsel %vm2894, %v2009, %v2355
      %v2991 = vsel %vm2894, %v2010, %v2357
      %v2992 = vsel %vm2894, %v2011, %v2359
      %v2993 = vsel %vm2894, %v2012, %v2361
      %v2994 = vsel %vm2894, %v2013, %v2363
      %v2995 = vsel %vm2894, %v2014, %v2365
      %v2996 = vsel %vm2894, %v2015, %v2367
      %v2997 = vsel %vm2894, %v2016, %v2369
      %v2998 = vsel %vm2894, %v2017, %v2371
      %v2999 = vsel %vm2894, %v2018, %v2373
      %v3000 = vsel %vm2894, %v2019, %v2375
      %v3001 = vsel %vm2894, %v2020, %v2377
      %v3002 = vsel %vm2894, %v2021, %v2379
      %v3003 = vsel %vm2894, %v2022, %v2381
      %v3004 = vsel %vm2894, %v2023, %v2383
      %v3005 = vsel %vm2894, %v2024, %v2385
      %v3006 = vsel %vm2894, %v2025, %v2387
      %v3007 = vsel %vm2894, %v2026, %v2389
      %v3008 = vsel %vm2894, %v2027, %v2391
      %v3009 = vsel %vm2894, %v2028, %v2393
      %v3010 = vsel %vm2894, %v2029, %v2395
      %v3011 = vsel %vm2894, %v2030, %v2397
      %v3012 = vsel %vm2894, %v2031, %v2399
      %v3013 = vsel %vm2894, %v2032, %v2401
      %v3014 = vsel %vm2894, %v2033, %v2403
      %v3015 = vsel %vm2894, %v2034, %v2405
      %vm3016 = vcmask 146432
      %v3017 = vsel %vm3016, %v2895, %v2532
      %v3018 = vsel %vm3016, %v2896, %v2534
      %v3019 = vsel %vm3016, %v2897, %v2536
      %v3020 = vsel %vm3016, %v2898, %v2538
      %v3021 = vsel %vm3016, %v2899, %v2540
      %v3022 = vsel %vm3016, %v2900, %v2542
      %v3023 = vsel %vm3016, %v2901, %v2544
      %v3024 = vsel %vm3016, %v2902, %v2546
      %v3025 = vsel %vm3016, %v2903, %v2548
      %v3026 = vsel %vm3016, %v2904, %v2550
      %v3027 = vsel %vm3016, %v2905, %v2552
      %v3028 = vsel %vm3016, %v2906, %v2554
      %v3029 = vsel %vm3016, %v2907, %v2556
      %v3030 = vsel %vm3016, %v2908, %v2558
      %v3031 = vsel %vm3016, %v2909, %v2560
      %v3032 = vsel %vm3016, %v2910, %v2562
      %v3033 = vsel %vm3016, %v2911, %v2564
      %v3034 = vsel %vm3016, %v2912, %v2566
      %v3035 = vsel %vm3016, %v2913, %v2568
      %v3036 = vsel %vm3016, %v2914, %v2570
      %v3037 = vsel %vm3016, %v2915, %v2572
      %v3038 = vsel %vm3016, %v2916, %v2574
      %v3039 = vsel %vm3016, %v2917, %v2576
      %v3040 = vsel %vm3016, %v2918, %v2578
      %v3041 = vsel %vm3016, %v2919, %v2580
      %v3042 = vsel %vm3016, %v2920, %v2582
      %v3043 = vsel %vm3016, %v2921, %v2584
      %v3044 = vsel %vm3016, %v2922, %v2586
      %v3045 = vsel %vm3016, %v2923, %v2588
      %v3046 = vsel %vm3016, %v2924, %v2590
      %v3047 = vsel %vm3016, %v2925, %v2592
      %v3048 = vsel %vm3016, %v2926, %v2594
      %v3049 = vsel %vm3016, %v2927, %v2596
      %v3050 = vsel %vm3016, %v2928, %v2598
      %v3051 = vsel %vm3016, %v2929, %v2600
      %v3052 = vsel %vm3016, %v2930, %v2602
      %v3053 = vsel %vm3016, %v2931, %v2604
      %v3054 = vsel %vm3016, %v2932, %v2606
      %v3055 = vsel %vm3016, %v2933, %v2608
      %v3056 = vsel %vm3016, %v2934, %v2610
      %v3057 = vsel %vm3016, %v2935, %v2612
      %v3058 = vsel %vm3016, %v2936, %v2614
      %v3059 = vsel %vm3016, %v2937, %v2616
      %v3060 = vsel %vm3016, %v2938, %v2618
      %v3061 = vsel %vm3016, %v2939, %v2620
      %v3062 = vsel %vm3016, %v2940, %v2622
      %v3063 = vsel %vm3016, %v2941, %v2624
      %v3064 = vsel %vm3016, %v2942, %v2626
      %v3065 = vsel %vm3016, %v2943, %v2628
      %v3066 = vsel %vm3016, %v2944, %v2630
      %v3067 = vsel %vm3016, %v2945, %v2632
      %v3068 = vsel %vm3016, %v2946, %v2634
      %v3069 = vsel %vm3016, %v2947, %v2636
      %v3070 = vsel %vm3016, %v2948, %v2638
      %v3071 = vsel %vm3016, %v2949, %v2640
      %v3072 = vsel %vm3016, %v2950, %v2642
      %v3073 = vsel %vm3016, %v2951, %v2644
      %v3074 = vsel %vm3016, %v2952, %v2646
      %v3075 = vsel %vm3016, %v2953, %v2648
      %v3076 = vsel %vm3016, %v2954, %v2650
      %v3077 = vsel %vm3016, %v2955, %v2652
      %v3078 = vsel %vm3016, %v2956, %v2654
      %v3079 = vsel %vm3016, %v2957, %v2656
      %v3080 = vsel %vm3016, %v2958, %v2658
      %v3081 = vsel %vm3016, %v2959, %v2660
      %v3082 = vsel %vm3016, %v2960, %v2662
      %v3083 = vsel %vm3016, %v2961, %v2664
      %v3084 = vsel %vm3016, %v2962, %v2666
      %v3085 = vsel %vm3016, %v2963, %v2668
      %v3086 = vsel %vm3016, %v2964, %v2670
      %v3087 = vsel %vm3016, %v2965, %v2672
      %v3088 = vsel %vm3016, %v2966, %v2674
      %v3089 = vsel %vm3016, %v2967, %v2676
      %v3090 = vsel %vm3016, %v2968, %v2678
      %v3091 = vsel %vm3016, %v2969, %v2680
      %v3092 = vsel %vm3016, %v2970, %v2682
      %v3093 = vsel %vm3016, %v2971, %v2684
      %v3094 = vsel %vm3016, %v2972, %v2686
      %v3095 = vsel %vm3016, %v2973, %v2688
      %v3096 = vsel %vm3016, %v2974, %v2690
      %v3097 = vsel %vm3016, %v2975, %v2692
      %v3098 = vsel %vm3016, %v2976, %v2694
      %v3099 = vsel %vm3016, %v2977, %v2696
      %v3100 = vsel %vm3016, %v2978, %v2698
      %v3101 = vsel %vm3016, %v2979, %v2700
      %v3102 = vsel %vm3016, %v2980, %v2702
      %v3103 = vsel %vm3016, %v2981, %v2704
      %v3104 = vsel %vm3016, %v2982, %v2706
      %v3105 = vsel %vm3016, %v2983, %v2708
      %v3106 = vsel %vm3016, %v2984, %v2710
      %v3107 = vsel %vm3016, %v2985, %v2712
      %v3108 = vsel %vm3016, %v2986, %v2714
      %v3109 = vsel %vm3016, %v2987, %v2716
      %v3110 = vsel %vm3016, %v2988, %v2718
      %v3111 = vsel %vm3016, %v2989, %v2720
      %v3112 = vsel %vm3016, %v2990, %v2722
      %v3113 = vsel %vm3016, %v2991, %v2724
      %v3114 = vsel %vm3016, %v2992, %v2726
      %v3115 = vsel %vm3016, %v2993, %v2728
      %v3116 = vsel %vm3016, %v2994, %v2730
      %v3117 = vsel %vm3016, %v2995, %v2732
      %v3118 = vsel %vm3016, %v2996, %v2734
      %v3119 = vsel %vm3016, %v2997, %v2736
      %v3120 = vsel %vm3016, %v2998, %v2738
      %v3121 = vsel %vm3016, %v2999, %v2740
      %v3122 = vsel %vm3016, %v3000, %v2742
      %v3123 = vsel %vm3016, %v3001, %v2744
      %v3124 = vsel %vm3016, %v3002, %v2746
      %v3125 = vsel %vm3016, %v3003, %v2748
      %v3126 = vsel %vm3016, %v3004, %v2750
      %v3127 = vsel %vm3016, %v3005, %v2752
      %v3128 = vsel %vm3016, %v3006, %v2754
      %v3129 = vsel %vm3016, %v3007, %v2756
      %v3130 = vsel %vm3016, %v3008, %v2758
      %v3131 = vsel %vm3016, %v3009, %v2760
      %v3132 = vsel %vm3016, %v3010, %v2762
      %v3133 = vsel %vm3016, %v3011, %v2764
      %v3134 = vsel %vm3016, %v3012, %v2766
      %v3135 = vsel %vm3016, %v3013, %v2768
      %v3136 = vsel %vm3016, %v3014, %v2770
      %v3137 = vsel %vm3016, %v3015, %v2772
      %vm3138 = vcmask 220160
      %v3140 = vsel %vm3138, %v3017, 0
      %v3143 = vsel %vm3138, %v3018, 0
      %v3146 = vsel %vm3138, %v3019, 0
      %v3149 = vsel %vm3138, %v3020, 0
      %v3152 = vsel %vm3138, %v3021, 0
      %v3155 = vsel %vm3138, %v3022, 0
      %v3158 = vsel %vm3138, %v3023, 0
      %v3161 = vsel %vm3138, %v3024, 0
      %v3164 = vsel %vm3138, %v3025, 0
      %v3167 = vsel %vm3138, %v3026, 0
      %v3170 = vsel %vm3138, %v3027, 0
      %v3173 = vsel %vm3138, %v3028, 0
      %v3176 = vsel %vm3138, %v3029, 0
      %v3179 = vsel %vm3138, %v3030, 0
      %v3182 = vsel %vm3138, %v3031, 0
      %v3185 = vsel %vm3138, %v3032, 0
      %v3188 = vsel %vm3138, %v3033, 0
      %v3191 = vsel %vm3138, %v3034, 0
      %v3194 = vsel %vm3138, %v3035, 0
      %v3197 = vsel %vm3138, %v3036, 0
      %v3200 = vsel %vm3138, %v3037, 0
      %v3203 = vsel %vm3138, %v3038, 0
      %v3206 = vsel %vm3138, %v3039, 0
      %v3209 = vsel %vm3138, %v3040, 0
      %v3212 = vsel %vm3138, %v3041, 0
      %v3215 = vsel %vm3138, %v3042, 0
      %v3218 = vsel %vm3138, %v3043, 0
      %v3221 = vsel %vm3138, %v3044, 0
      %v3224 = vsel %vm3138, %v3045, 0
      %v3227 = vsel %vm3138, %v3046, 0
      %v3230 = vsel %vm3138, %v3047, 0
      %v3233 = vsel %vm3138, %v3048, 0
      %v3236 = vsel %vm3138, %v3049, 0
      %v3239 = vsel %vm3138, %v3050, 0
      %v3242 = vsel %vm3138, %v3051, 0
      %v3245 = vsel %vm3138, %v3052, 0
      %v3248 = vsel %vm3138, %v3053, 0
      %v3251 = vsel %vm3138, %v3054, 0
      %v3254 = vsel %vm3138, %v3055, 0
      %v3257 = vsel %vm3138, %v3056, 0
      %v3260 = vsel %vm3138, %v3057, 0
      %v3263 = vsel %vm3138, %v3058, 0
      %v3266 = vsel %vm3138, %v3059, 0
      %v3269 = vsel %vm3138, %v3060, 0
      %v3272 = vsel %vm3138, %v3061, 0
      %v3275 = vsel %vm3138, %v3062, 0
      %v3278 = vsel %vm3138, %v3063, 0
      %v3281 = vsel %vm3138, %v3064, 0
      %v3284 = vsel %vm3138, %v3065, 0
      %v3287 = vsel %vm3138, %v3066, 0
      %v3290 = vsel %vm3138, %v3067, 0
      %v3293 = vsel %vm3138, %v3068, 0
      %v3296 = vsel %vm3138, %v3069, 0
      %v3299 = vsel %vm3138, %v3070, 0
      %v3302 = vsel %vm3138, %v3071, 0
      %v3305 = vsel %vm3138, %v3072, 0
      %v3308 = vsel %vm3138, %v3073, 0
      %v3311 = vsel %vm3138, %v3074, 0
      %v3314 = vsel %vm3138, %v3075, 0
      %v3317 = vsel %vm3138, %v3076, 0
      %v3320 = vsel %vm3138, %v3077, 0
      %v3323 = vsel %vm3138, %v3078, 0
      %v3326 = vsel %vm3138, %v3079, 0
      %v3329 = vsel %vm3138, %v3080, 0
      %v3332 = vsel %vm3138, %v3081, 0
      %v3335 = vsel %vm3138, %v3082, 0
      %v3338 = vsel %vm3138, %v3083, 0
      %v3341 = vsel %vm3138, %v3084, 0
      %v3344 = vsel %vm3138, %v3085, 0
      %v3347 = vsel %vm3138, %v3086, 0
      %v3350 = vsel %vm3138, %v3087, 0
      %v3353 = vsel %vm3138, %v3088, 0
      %v3356 = vsel %vm3138, %v3089, 0
      %v3359 = vsel %vm3138, %v3090, 0
      %v3362 = vsel %vm3138, %v3091, 0
      %v3365 = vsel %vm3138, %v3092, 0
      %v3368 = vsel %vm3138, %v3093, 0
      %v3371 = vsel %vm3138, %v3094, 0
      %v3374 = vsel %vm3138, %v3095, 0
      %v3377 = vsel %vm3138, %v3096, 0
      %v3380 = vsel %vm3138, %v3097, 0
      %v3383 = vsel %vm3138, %v3098, 0
      %v3386 = vsel %vm3138, %v3099, 0
      %v3389 = vsel %vm3138, %v3100, 0
      %v3392 = vsel %vm3138, %v3101, 0
      %v3395 = vsel %vm3138, %v3102, 0
      %v3398 = vsel %vm3138, %v3103, 0
      %v3401 = vsel %vm3138, %v3104, 0
      %v3404 = vsel %vm3138, %v3105, 0
      %v3407 = vsel %vm3138, %v3106, 0
      %v3410 = vsel %vm3138, %v3107, 0
      %v3413 = vsel %vm3138, %v3108, 0
      %v3416 = vsel %vm3138, %v3109, 0
      %v3419 = vsel %vm3138, %v3110, 0
      %v3422 = vsel %vm3138, %v3111, 0
      %v3425 = vsel %vm3138, %v3112, 0
      %v3428 = vsel %vm3138, %v3113, 0
      %v3431 = vsel %vm3138, %v3114, 0
      %v3434 = vsel %vm3138, %v3115, 0
      %v3437 = vsel %vm3138, %v3116, 0
      %v3440 = vsel %vm3138, %v3117, 0
      %v3443 = vsel %vm3138, %v3118, 0
      %v3446 = vsel %vm3138, %v3119, 0
      %v3449 = vsel %vm3138, %v3120, 0
      %v3452 = vsel %vm3138, %v3121, 0
      %v3455 = vsel %vm3138, %v3122, 0
      %v3458 = vsel %vm3138, %v3123, 0
      %v3461 = vsel %vm3138, %v3124, 0
      %v3464 = vsel %vm3138, %v3125, 0
      %v3467 = vsel %vm3138, %v3126, 0
      %v3470 = vsel %vm3138, %v3127, 0
      %v3473 = vsel %vm3138, %v3128, 0
      %v3476 = vsel %vm3138, %v3129, 0
      %v3479 = vsel %vm3138, %v3130, 0
      %v3482 = vsel %vm3138, %v3131, 0
      %v3485 = vsel %vm3138, %v3132, 0
      %v3488 = vsel %vm3138, %v3133, 0
      %v3491 = vsel %vm3138, %v3134, 0
      %v3494 = vsel %vm3138, %v3135, 0
      %v3497 = vsel %vm3138, %v3136, 0
      %v3500 = vsel %vm3138, %v3137, 0
      %vm3502 = vcmask 1042432
      %v3504 = vsel %vm3502, %v358, 0
      %3506 = vmatprep.subr.mxu0 0.0
      %3507 = vmatpush1.msra.mxu0 %v355
      %3508 = vmatprep.subr.mxu0 0.0
      %3509 = vmatpush1.msra.mxu0 %v356
      %3510 = vmatprep.subr.mxu0 0.0
      %3511 = vmatpush1.msra.mxu0 %v357
      %3512 = vmatprep.subr.mxu0 0.0
      %3513 = vmatpush1.msra.mxu0 %v3504
      %3514 = vmatprep.subr.mxu0 0.0
      %3515 = vmatpush1.msra.mxu0 0.0
      %3516 = vmatprep.subr.mxu0 0.0
      %3517 = vmatpush1.msra.mxu0 0.0
      %3518 = vmatprep.subr.mxu0 0.0
      %3519 = vmatpush1.msra.mxu0 0.0
      %3520 = vmatprep.subr.mxu0 0.0
      %3521 = vmatpush1.msra.mxu0 0.0
      %3522 = vmatprep.subr.mxu0 0.0
      %3523 = vmatpush1.msra.mxu0 0.0
      %3524 = vmatprep.subr.mxu0 0.0
      %3525 = vmatpush1.msra.mxu0 0.0
      %3526 = vmatprep.subr.mxu0 0.0
      %3527 = vmatpush1.msra.mxu0 0.0
      %3528 = vmatprep.subr.mxu0 0.0
      %3529 = vmatpush1.msra.mxu0 0.0
      %3530 = vmatprep.subr.mxu0 0.0
      %3531 = vmatpush1.msra.mxu0 0.0
      %3532 = vmatprep.subr.mxu0 0.0
      %3533 = vmatpush1.msra.mxu0 0.0
      %3534 = vmatprep.subr.mxu0 0.0
      %3535 = vmatpush1.msra.mxu0 0.0
      %3536 = vmatprep.subr.mxu0 0.0
      %3537 = vmatpush1.msra.mxu0 0.0
      %3538 = vmatprep.subr.mxu0 0.0
      %3539 = vmatpush1.msra.mxu0 0.0
      %3540 = vmatprep.subr.mxu0 0.0
      %3541 = vmatpush1.msra.mxu0 0.0
      %3542 = vmatprep.subr.mxu0 0.0
      %3543 = vmatpush1.msra.mxu0 0.0
      %3544 = vmatprep.subr.mxu0 0.0
      %3545 = vmatpush1.msra.mxu0 0.0
      %3546 = vmatprep.subr.mxu0 0.0
      %3547 = vmatpush1.msra.mxu0 0.0
      %3548 = vmatprep.subr.mxu0 0.0
      %3549 = vmatpush1.msra.mxu0 0.0
      %3550 = vmatprep.subr.mxu0 0.0
      %3551 = vmatpush1.msra.mxu0 0.0
      %3552 = vmatprep.subr.mxu0 0.0
      %3553 = vmatpush1.msra.mxu0 0.0
      %3554 = vmatprep.subr.mxu0 0.0
      %3555 = vmatpush1.msra.mxu0 0.0
      %3556 = vmatprep.subr.mxu0 0.0
      %3557 = vmatpush1.msra.mxu0 0.0
      %3558 = vmatprep.subr.mxu0 0.0
      %3559 = vmatpush1.msra.mxu0 0.0
      %3560 = vmatprep.subr.mxu0 0.0
      %3561 = vmatpush1.msra.mxu0 0.0
      %3562 = vmatprep.subr.mxu0 0.0
      %3563 = vmatpush1.msra.mxu0 0.0
      %3564 = vmatprep.subr.mxu0 0.0
      %3565 = vmatpush1.msra.mxu0 0.0
      %3566 = vmatprep.subr.mxu0 0.0
      %3567 = vmatpush1.msra.mxu0 0.0
      %3568 = vmatprep.subr.mxu0 0.0
      %3569 = vmatpush1.msra.mxu0 0.0
      %3570 = vmatprep.mubr.f32.mxu0 0.0
      %3571 = vmatmul.mubr.f32.gmra.mrb[0].mxu0 %v3140
      %v3572 = vpop.f32.mrb[0].mxu0
      %v3573 = vadd.f32 0.0, %v3572
      %v3574 = vpop.f32.mrb[0].mxu0
      %3575 = vmatprep.mubr.f32.mxu0 0.0
      %3576 = vmatmul.mubr.f32.gmra.mrb[0].mxu0 %v3143
      %v3577 = vpop.f32.mrb[0].mxu0
      %v3578 = vadd.f32 0.0, %v3577
      %v3579 = vpop.f32.mrb[0].mxu0
      %3580 = vmatprep.mubr.f32.mxu0 0.0
      %3581 = vmatmul.mubr.f32.gmra.mrb[0].mxu0 %v3146
      %v3582 = vpop.f32.mrb[0].mxu0
      %v3583 = vadd.f32 0.0, %v3582
      %v3584 = vpop.f32.mrb[0].mxu0
      %3585 = vmatprep.mubr.f32.mxu0 0.0
      %3586 = vmatmul.mubr.f32.gmra.mrb[0].mxu0 %v3149
      %v3587 = vpop.f32.mrb[0].mxu0
      %v3588 = vadd.f32 0.0, %v3587
      %v3589 = vpop.f32.mrb[0].mxu0
      %3590 = vmatprep.mubr.f32.mxu0 0.0
      %3591 = vmatmul.mubr.f32.gmra.mrb[0].mxu0 %v3152
      %v3592 = vpop.f32.mrb[0].mxu0
      %v3593 = vadd.f32 0.0, %v3592
      %v3594 = vpop.f32.mrb[0].mxu0
      %3595 = vmatprep.mubr.f32.mxu0 0.0
      %3596 = vmatmul.mubr.f32.gmra.mrb[0].mxu0 %v3155
      %v3597 = vpop.f32.mrb[0].mxu0
      %v3598 = vadd.f32 0.0, %v3597
      %v3599 = vpop.f32.mrb[0].mxu0
      %3600 = vmatprep.mubr.f32.mxu0 0.0
      %3601 = vmatmul.mubr.f32.gmra.mrb[0].mxu0 %v3158
      %v3602 = vpop.f32.mrb[0].mxu0
      %v3603 = vadd.f32 0.0, %v3602
      %v3604 = vpop.f32.mrb[0].mxu0
      %3605 = vmatprep.mubr.f32.mxu0 0.0
      %3606 = vmatmul.mubr.f32.gmra.mrb[0].mxu0 %v3161
      %v3607 = vpop.f32.mrb[0].mxu0
      %v3608 = vadd.f32 0.0, %v3607
      %v3609 = vpop.f32.mrb[0].mxu0
      %3610 = vmatprep.mubr.f32.mxu0 0.0
      %3611 = vmatmul.mubr.f32.gmra.mrb[0].mxu0 %v3164
      %v3612 = vpop.f32.mrb[0].mxu0
      %v3613 = vadd.f32 0.0, %v3612
      %v3614 = vpop.f32.mrb[0].mxu0
      %3615 = vmatprep.mubr.f32.mxu0 0.0
      %3616 = vmatmul.mubr.f32.gmra.mrb[0].mxu0 %v3167
      %v3617 = vpop.f32.mrb[0].mxu0
      %v3618 = vadd.f32 0.0, %v3617
      %v3619 = vpop.f32.mrb[0].mxu0
      %3620 = vmatprep.mubr.f32.mxu0 0.0
      %3621 = vmatmul.mubr.f32.gmra.mrb[0].mxu0 %v3170
      %v3622 = vpop.f32.mrb[0].mxu0
      %v3623 = vadd.f32 0.0, %v3622
      %v3624 = vpop.f32.mrb[0].mxu0
      %3625 = vmatprep.mubr.f32.mxu0 0.0
      %3626 = vmatmul.mubr.f32.gmra.mrb[0].mxu0 %v3173
      %v3627 = vpop.f32.mrb[0].mxu0
      %v3628 = vadd.f32 0.0, %v3627
      %v3629 = vpop.f32.mrb[0].mxu0
      %3630 = vmatprep.mubr.f32.mxu0 0.0
      %3631 = vmatmul.mubr.f32.gmra.mrb[0].mxu0 %v3176
      %v3632 = vpop.f32.mrb[0].mxu0
      %v3633 = vadd.f32 0.0, %v3632
      %v3634 = vpop.f32.mrb[0].mxu0
      %3635 = vmatprep.mubr.f32.mxu0 0.0
      %3636 = vmatmul.mubr.f32.gmra.mrb[0].mxu0 %v3179
      %v3637 = vpop.f32.mrb[0].mxu0
      %v3638 = vadd.f32 0.0, %v3637
      %v3639 = vpop.f32.mrb[0].mxu0
      %3640 = vmatprep.mubr.f32.mxu0 0.0
      %3641 = vmatmul.mubr.f32.gmra.mrb[0].mxu0 %v3182
      %v3642 = vpop.f32.mrb[0].mxu0
      %v3643 = vadd.f32 0.0, %v3642
      %v3644 = vpop.f32.mrb[0].mxu0
      %3645 = vmatprep.mubr.f32.mxu0 0.0
      %3646 = vmatmul.mubr.f32.gmra.mrb[0].mxu0 %v3185
      %v3647 = vpop.f32.mrb[0].mxu0
      %v3648 = vadd.f32 0.0, %v3647
      %v3649 = vpop.f32.mrb[0].mxu0
      %3650 = vmatprep.mubr.f32.mxu0 0.0
      %3651 = vmatmul.mubr.f32.gmra.mrb[0].mxu0 %v3188
      %v3652 = vpop.f32.mrb[0].mxu0
      %v3653 = vadd.f32 0.0, %v3652
      %v3654 = vpop.f32.mrb[0].mxu0
      %3655 = vmatprep.mubr.f32.mxu0 0.0
      %3656 = vmatmul.mubr.f32.gmra.mrb[0].mxu0 %v3191
      %v3657 = vpop.f32.mrb[0].mxu0
      %v3658 = vadd.f32 0.0, %v3657
      %v3659 = vpop.f32.mrb[0].mxu0
      %3660 = vmatprep.mubr.f32.mxu0 0.0
      %3661 = vmatmul.mubr.f32.gmra.mrb[0].mxu0 %v3194
      %v3662 = vpop.f32.mrb[0].mxu0
      %v3663 = vadd.f32 0.0, %v3662
      %v3664 = vpop.f32.mrb[0].mxu0
      %3665 = vmatprep.mubr.f32.mxu0 0.0
      %3666 = vmatmul.mubr.f32.gmra.mrb[0].mxu0 %v3197
      %v3667 = vpop.f32.mrb[0].mxu0
      %v3668 = vadd.f32 0.0, %v3667
      %v3669 = vpop.f32.mrb[0].mxu0
      %3670 = vmatprep.mubr.f32.mxu0 0.0
      %3671 = vmatmul.mubr.f32.gmra.mrb[0].mxu0 %v3200
      %v3672 = vpop.f32.mrb[0].mxu0
      %v3673 = vadd.f32 0.0, %v3672
      %v3674 = vpop.f32.mrb[0].mxu0
      %3675 = vmatprep.mubr.f32.mxu0 0.0
      %3676 = vmatmul.mubr.f32.gmra.mrb[0].mxu0 %v3203
      %v3677 = vpop.f32.mrb[0].mxu0
      %v3678 = vadd.f32 0.0, %v3677
      %v3679 = vpop.f32.mrb[0].mxu0
      %3680 = vmatprep.mubr.f32.mxu0 0.0
      %3681 = vmatmul.mubr.f32.gmra.mrb[0].mxu0 %v3206
      %v3682 = vpop.f32.mrb[0].mxu0
      %v3683 = vadd.f32 0.0, %v3682
      %v3684 = vpop.f32.mrb[0].mxu0
      %3685 = vmatprep.mubr.f32.mxu0 0.0
      %3686 = vmatmul.mubr.f32.gmra.mrb[0].mxu0 %v3209
      %v3687 = vpop.f32.mrb[0].mxu0
      %v3688 = vadd.f32 0.0, %v3687
      %v3689 = vpop.f32.mrb[0].mxu0
      %3690 = vmatprep.mubr.f32.mxu0 0.0
      %3691 = vmatmul.mubr.f32.gmra.mrb[0].mxu0 %v3212
      %v3692 = vpop.f32.mrb[0].mxu0
      %v3693 = vadd.f32 0.0, %v3692
      %v3694 = vpop.f32.mrb[0].mxu0
      %3695 = vmatprep.mubr.f32.mxu0 0.0
      %3696 = vmatmul.mubr.f32.gmra.mrb[0].mxu0 %v3215
      %v3697 = vpop.f32.mrb[0].mxu0
      %v3698 = vadd.f32 0.0, %v3697
      %v3699 = vpop.f32.mrb[0].mxu0
      %3700 = vmatprep.mubr.f32.mxu0 0.0
      %3701 = vmatmul.mubr.f32.gmra.mrb[0].mxu0 %v3218
      %v3702 = vpop.f32.mrb[0].mxu0
      %v3703 = vadd.f32 0.0, %v3702
      %v3704 = vpop.f32.mrb[0].mxu0
      %3705 = vmatprep.mubr.f32.mxu0 0.0
      %3706 = vmatmul.mubr.f32.gmra.mrb[0].mxu0 %v3221
      %v3707 = vpop.f32.mrb[0].mxu0
      %v3708 = vadd.f32 0.0, %v3707
      %v3709 = vpop.f32.mrb[0].mxu0
      %3710 = vmatprep.mubr.f32.mxu0 0.0
      %3711 = vmatmul.mubr.f32.gmra.mrb[0].mxu0 %v3224
      %v3712 = vpop.f32.mrb[0].mxu0
      %v3713 = vadd.f32 0.0, %v3712
      %v3714 = vpop.f32.mrb[0].mxu0
      %3715 = vmatprep.mubr.f32.mxu0 0.0
      %3716 = vmatmul.mubr.f32.gmra.mrb[0].mxu0 %v3227
      %v3717 = vpop.f32.mrb[0].mxu0
      %v3718 = vadd.f32 0.0, %v3717
      %v3719 = vpop.f32.mrb[0].mxu0
      %3720 = vmatprep.mubr.f32.mxu0 0.0
      %3721 = vmatmul.mubr.f32.gmra.mrb[0].mxu0 %v3230
      %v3722 = vpop.f32.mrb[0].mxu0
      %v3723 = vadd.f32 0.0, %v3722
      %v3724 = vpop.f32.mrb[0].mxu0
      %3725 = vmatprep.mubr.f32.mxu0 0.0
      %3726 = vmatmul.mubr.f32.gmra.mrb[0].mxu0 %v3233
      %v3727 = vpop.f32.mrb[0].mxu0
      %v3728 = vadd.f32 0.0, %v3727
      %v3729 = vpop.f32.mrb[0].mxu0
      %3730 = vmatprep.mubr.f32.mxu0 0.0
      %3731 = vmatmul.mubr.f32.gmra.mrb[0].mxu0 %v3236
      %v3732 = vpop.f32.mrb[0].mxu0
      %v3733 = vadd.f32 0.0, %v3732
      %v3734 = vpop.f32.mrb[0].mxu0
      %3735 = vmatprep.mubr.f32.mxu0 0.0
      %3736 = vmatmul.mubr.f32.gmra.mrb[0].mxu0 %v3239
      %v3737 = vpop.f32.mrb[0].mxu0
      %v3738 = vadd.f32 0.0, %v3737
      %v3739 = vpop.f32.mrb[0].mxu0
      %3740 = vmatprep.mubr.f32.mxu0 0.0
      %3741 = vmatmul.mubr.f32.gmra.mrb[0].mxu0 %v3242
      %v3742 = vpop.f32.mrb[0].mxu0
      %v3743 = vadd.f32 0.0, %v3742
      %v3744 = vpop.f32.mrb[0].mxu0
      %3745 = vmatprep.mubr.f32.mxu0 0.0
      %3746 = vmatmul.mubr.f32.gmra.mrb[0].mxu0 %v3245
      %v3747 = vpop.f32.mrb[0].mxu0
      %v3748 = vadd.f32 0.0, %v3747
      %v3749 = vpop.f32.mrb[0].mxu0
      %3750 = vmatprep.mubr.f32.mxu0 0.0
      %3751 = vmatmul.mubr.f32.gmra.mrb[0].mxu0 %v3248
      %v3752 = vpop.f32.mrb[0].mxu0
      %v3753 = vadd.f32 0.0, %v3752
      %v3754 = vpop.f32.mrb[0].mxu0
      %3755 = vmatprep.mubr.f32.mxu0 0.0
      %3756 = vmatmul.mubr.f32.gmra.mrb[0].mxu0 %v3251
      %v3757 = vpop.f32.mrb[0].mxu0
      %v3758 = vadd.f32 0.0, %v3757
      %v3759 = vpop.f32.mrb[0].mxu0
      %3760 = vmatprep.mubr.f32.mxu0 0.0
      %3761 = vmatmul.mubr.f32.gmra.mrb[0].mxu0 %v3254
      %v3762 = vpop.f32.mrb[0].mxu0
      %v3763 = vadd.f32 0.0, %v3762
      %v3764 = vpop.f32.mrb[0].mxu0
      %3765 = vmatprep.mubr.f32.mxu0 0.0
      %3766 = vmatmul.mubr.f32.gmra.mrb[0].mxu0 %v3257
      %v3767 = vpop.f32.mrb[0].mxu0
      %v3768 = vadd.f32 0.0, %v3767
      %v3769 = vpop.f32.mrb[0].mxu0
      %3770 = vmatprep.mubr.f32.mxu0 0.0
      %3771 = vmatmul.mubr.f32.gmra.mrb[0].mxu0 %v3260
      %v3772 = vpop.f32.mrb[0].mxu0
      %v3773 = vadd.f32 0.0, %v3772
      %v3774 = vpop.f32.mrb[0].mxu0
      %3775 = vmatprep.mubr.f32.mxu0 0.0
      %3776 = vmatmul.mubr.f32.gmra.mrb[0].mxu0 %v3263
      %v3777 = vpop.f32.mrb[0].mxu0
      %v3778 = vadd.f32 0.0, %v3777
      %v3779 = vpop.f32.mrb[0].mxu0
      %3780 = vmatprep.mubr.f32.mxu0 0.0
      %3781 = vmatmul.mubr.f32.gmra.mrb[0].mxu0 %v3266
      %v3782 = vpop.f32.mrb[0].mxu0
      %v3783 = vadd.f32 0.0, %v3782
      %v3784 = vpop.f32.mrb[0].mxu0
      %3785 = vmatprep.mubr.f32.mxu0 0.0
      %3786 = vmatmul.mubr.f32.gmra.mrb[0].mxu0 %v3269
      %v3787 = vpop.f32.mrb[0].mxu0
      %v3788 = vadd.f32 0.0, %v3787
      %v3789 = vpop.f32.mrb[0].mxu0
      %3790 = vmatprep.mubr.f32.mxu0 0.0
      %3791 = vmatmul.mubr.f32.gmra.mrb[0].mxu0 %v3272
      %v3792 = vpop.f32.mrb[0].mxu0
      %v3793 = vadd.f32 0.0, %v3792
      %v3794 = vpop.f32.mrb[0].mxu0
      %3795 = vmatprep.mubr.f32.mxu0 0.0
      %3796 = vmatmul.mubr.f32.gmra.mrb[0].mxu0 %v3275
      %v3797 = vpop.f32.mrb[0].mxu0
      %v3798 = vadd.f32 0.0, %v3797
      %v3799 = vpop.f32.mrb[0].mxu0
      %3800 = vmatprep.mubr.f32.mxu0 0.0
      %3801 = vmatmul.mubr.f32.gmra.mrb[0].mxu0 %v3278
      %v3802 = vpop.f32.mrb[0].mxu0
      %v3803 = vadd.f32 0.0, %v3802
      %v3804 = vpop.f32.mrb[0].mxu0
      %3805 = vmatprep.mubr.f32.mxu0 0.0
      %3806 = vmatmul.mubr.f32.gmra.mrb[0].mxu0 %v3281
      %v3807 = vpop.f32.mrb[0].mxu0
      %v3808 = vadd.f32 0.0, %v3807
      %v3809 = vpop.f32.mrb[0].mxu0
      %3810 = vmatprep.mubr.f32.mxu0 0.0
      %3811 = vmatmul.mubr.f32.gmra.mrb[0].mxu0 %v3284
      %v3812 = vpop.f32.mrb[0].mxu0
      %v3813 = vadd.f32 0.0, %v3812
      %v3814 = vpop.f32.mrb[0].mxu0
      %3815 = vmatprep.mubr.f32.mxu0 0.0
      %3816 = vmatmul.mubr.f32.gmra.mrb[0].mxu0 %v3287
      %v3817 = vpop.f32.mrb[0].mxu0
      %v3818 = vadd.f32 0.0, %v3817
      %v3819 = vpop.f32.mrb[0].mxu0
      %3820 = vmatprep.mubr.f32.mxu0 0.0
      %3821 = vmatmul.mubr.f32.gmra.mrb[0].mxu0 %v3290
      %v3822 = vpop.f32.mrb[0].mxu0
      %v3823 = vadd.f32 0.0, %v3822
      %v3824 = vpop.f32.mrb[0].mxu0
      %3825 = vmatprep.mubr.f32.mxu0 0.0
      %3826 = vmatmul.mubr.f32.gmra.mrb[0].mxu0 %v3293
      %v3827 = vpop.f32.mrb[0].mxu0
      %v3828 = vadd.f32 0.0, %v3827
      %v3829 = vpop.f32.mrb[0].mxu0
      %3830 = vmatprep.mubr.f32.mxu0 0.0
      %3831 = vmatmul.mubr.f32.gmra.mrb[0].mxu0 %v3296
      %v3832 = vpop.f32.mrb[0].mxu0
      %v3833 = vadd.f32 0.0, %v3832
      %v3834 = vpop.f32.mrb[0].mxu0
      %3835 = vmatprep.mubr.f32.mxu0 0.0
      %3836 = vmatmul.mubr.f32.gmra.mrb[0].mxu0 %v3299
      %v3837 = vpop.f32.mrb[0].mxu0
      %v3838 = vadd.f32 0.0, %v3837
      %v3839 = vpop.f32.mrb[0].mxu0
      %3840 = vmatprep.mubr.f32.mxu0 0.0
      %3841 = vmatmul.mubr.f32.gmra.mrb[0].mxu0 %v3302
      %v3842 = vpop.f32.mrb[0].mxu0
      %v3843 = vadd.f32 0.0, %v3842
      %v3844 = vpop.f32.mrb[0].mxu0
      %3845 = vmatprep.mubr.f32.mxu0 0.0
      %3846 = vmatmul.mubr.f32.gmra.mrb[0].mxu0 %v3305
      %v3847 = vpop.f32.mrb[0].mxu0
      %v3848 = vadd.f32 0.0, %v3847
      %v3849 = vpop.f32.mrb[0].mxu0
      %3850 = vmatprep.mubr.f32.mxu0 0.0
      %3851 = vmatmul.mubr.f32.gmra.mrb[0].mxu0 %v3308
      %v3852 = vpop.f32.mrb[0].mxu0
      %v3853 = vadd.f32 0.0, %v3852
      %v3854 = vpop.f32.mrb[0].mxu0
      %3855 = vmatprep.mubr.f32.mxu0 0.0
      %3856 = vmatmul.mubr.f32.gmra.mrb[0].mxu0 %v3311
      %v3857 = vpop.f32.mrb[0].mxu0
      %v3858 = vadd.f32 0.0, %v3857
      %v3859 = vpop.f32.mrb[0].mxu0
      %3860 = vmatprep.mubr.f32.mxu0 0.0
      %3861 = vmatmul.mubr.f32.gmra.mrb[0].mxu0 %v3314
      %v3862 = vpop.f32.mrb[0].mxu0
      %v3863 = vadd.f32 0.0, %v3862
      %v3864 = vpop.f32.mrb[0].mxu0
      %3865 = vmatprep.mubr.f32.mxu0 0.0
      %3866 = vmatmul.mubr.f32.gmra.mrb[0].mxu0 %v3317
      %v3867 = vpop.f32.mrb[0].mxu0
      %v3868 = vadd.f32 0.0, %v3867
      %v3869 = vpop.f32.mrb[0].mxu0
      %3870 = vmatprep.mubr.f32.mxu0 0.0
      %3871 = vmatmul.mubr.f32.gmra.mrb[0].mxu0 %v3320
      %v3872 = vpop.f32.mrb[0].mxu0
      %v3873 = vadd.f32 0.0, %v3872
      %v3874 = vpop.f32.mrb[0].mxu0
      %3875 = vmatprep.mubr.f32.mxu0 0.0
      %3876 = vmatmul.mubr.f32.gmra.mrb[0].mxu0 %v3323
      %v3877 = vpop.f32.mrb[0].mxu0
      %v3878 = vadd.f32 0.0, %v3877
      %v3879 = vpop.f32.mrb[0].mxu0
      %3880 = vmatprep.mubr.f32.mxu0 0.0
      %3881 = vmatmul.mubr.f32.gmra.mrb[0].mxu0 %v3326
      %v3882 = vpop.f32.mrb[0].mxu0
      %v3883 = vadd.f32 0.0, %v3882
      %v3884 = vpop.f32.mrb[0].mxu0
      %3885 = vmatprep.mubr.f32.mxu0 0.0
      %3886 = vmatmul.mubr.f32.gmra.mrb[0].mxu0 %v3329
      %v3887 = vpop.f32.mrb[0].mxu0
      %v3888 = vadd.f32 0.0, %v3887
      %v3889 = vpop.f32.mrb[0].mxu0
      %3890 = vmatprep.mubr.f32.mxu0 0.0
      %3891 = vmatmul.mubr.f32.gmra.mrb[0].mxu0 %v3332
      %v3892 = vpop.f32.mrb[0].mxu0
      %v3893 = vadd.f32 0.0, %v3892
      %v3894 = vpop.f32.mrb[0].mxu0
      %3895 = vmatprep.mubr.f32.mxu0 0.0
      %3896 = vmatmul.mubr.f32.gmra.mrb[0].mxu0 %v3335
      %v3897 = vpop.f32.mrb[0].mxu0
      %v3898 = vadd.f32 0.0, %v3897
      %v3899 = vpop.f32.mrb[0].mxu0
      %3900 = vmatprep.mubr.f32.mxu0 0.0
      %3901 = vmatmul.mubr.f32.gmra.mrb[0].mxu0 %v3338
      %v3902 = vpop.f32.mrb[0].mxu0
      %v3903 = vadd.f32 0.0, %v3902
      %v3904 = vpop.f32.mrb[0].mxu0
      %3905 = vmatprep.mubr.f32.mxu0 0.0
      %3906 = vmatmul.mubr.f32.gmra.mrb[0].mxu0 %v3341
      %v3907 = vpop.f32.mrb[0].mxu0
      %v3908 = vadd.f32 0.0, %v3907
      %v3909 = vpop.f32.mrb[0].mxu0
      %3910 = vmatprep.mubr.f32.mxu0 0.0
      %3911 = vmatmul.mubr.f32.gmra.mrb[0].mxu0 %v3344
      %v3912 = vpop.f32.mrb[0].mxu0
      %v3913 = vadd.f32 0.0, %v3912
      %v3914 = vpop.f32.mrb[0].mxu0
      %3915 = vmatprep.mubr.f32.mxu0 0.0
      %3916 = vmatmul.mubr.f32.gmra.mrb[0].mxu0 %v3347
      %v3917 = vpop.f32.mrb[0].mxu0
      %v3918 = vadd.f32 0.0, %v3917
      %v3919 = vpop.f32.mrb[0].mxu0
      %3920 = vmatprep.mubr.f32.mxu0 0.0
      %3921 = vmatmul.mubr.f32.gmra.mrb[0].mxu0 %v3350
      %v3922 = vpop.f32.mrb[0].mxu0
      %v3923 = vadd.f32 0.0, %v3922
      %v3924 = vpop.f32.mrb[0].mxu0
      %3925 = vmatprep.mubr.f32.mxu0 0.0
      %3926 = vmatmul.mubr.f32.gmra.mrb[0].mxu0 %v3353
      %v3927 = vpop.f32.mrb[0].mxu0
      %v3928 = vadd.f32 0.0, %v3927
      %v3929 = vpop.f32.mrb[0].mxu0
      %3930 = vmatprep.mubr.f32.mxu0 0.0
      %3931 = vmatmul.mubr.f32.gmra.mrb[0].mxu0 %v3356
      %v3932 = vpop.f32.mrb[0].mxu0
      %v3933 = vadd.f32 0.0, %v3932
      %v3934 = vpop.f32.mrb[0].mxu0
      %3935 = vmatprep.mubr.f32.mxu0 0.0
      %3936 = vmatmul.mubr.f32.gmra.mrb[0].mxu0 %v3359
      %v3937 = vpop.f32.mrb[0].mxu0
      %v3938 = vadd.f32 0.0, %v3937
      %v3939 = vpop.f32.mrb[0].mxu0
      %3940 = vmatprep.mubr.f32.mxu0 0.0
      %3941 = vmatmul.mubr.f32.gmra.mrb[0].mxu0 %v3362
      %v3942 = vpop.f32.mrb[0].mxu0
      %v3943 = vadd.f32 0.0, %v3942
      %v3944 = vpop.f32.mrb[0].mxu0
      %3945 = vmatprep.mubr.f32.mxu0 0.0
      %3946 = vmatmul.mubr.f32.gmra.mrb[0].mxu0 %v3365
      %v3947 = vpop.f32.mrb[0].mxu0
      %v3948 = vadd.f32 0.0, %v3947
      %v3949 = vpop.f32.mrb[0].mxu0
      %3950 = vmatprep.mubr.f32.mxu0 0.0
      %3951 = vmatmul.mubr.f32.gmra.mrb[0].mxu0 %v3368
      %v3952 = vpop.f32.mrb[0].mxu0
      %v3953 = vadd.f32 0.0, %v3952
      %v3954 = vpop.f32.mrb[0].mxu0
      %3955 = vmatprep.mubr.f32.mxu0 0.0
      %3956 = vmatmul.mubr.f32.gmra.mrb[0].mxu0 %v3371
      %v3957 = vpop.f32.mrb[0].mxu0
      %v3958 = vadd.f32 0.0, %v3957
      %v3959 = vpop.f32.mrb[0].mxu0
      %3960 = vmatprep.mubr.f32.mxu0 0.0
      %3961 = vmatmul.mubr.f32.gmra.mrb[0].mxu0 %v3374
      %v3962 = vpop.f32.mrb[0].mxu0
      %v3963 = vadd.f32 0.0, %v3962
      %v3964 = vpop.f32.mrb[0].mxu0
      %3965 = vmatprep.mubr.f32.mxu0 0.0
      %3966 = vmatmul.mubr.f32.gmra.mrb[0].mxu0 %v3377
      %v3967 = vpop.f32.mrb[0].mxu0
      %v3968 = vadd.f32 0.0, %v3967
      %v3969 = vpop.f32.mrb[0].mxu0
      %3970 = vmatprep.mubr.f32.mxu0 0.0
      %3971 = vmatmul.mubr.f32.gmra.mrb[0].mxu0 %v3380
      %v3972 = vpop.f32.mrb[0].mxu0
      %v3973 = vadd.f32 0.0, %v3972
      %v3974 = vpop.f32.mrb[0].mxu0
      %3975 = vmatprep.mubr.f32.mxu0 0.0
      %3976 = vmatmul.mubr.f32.gmra.mrb[0].mxu0 %v3383
      %v3977 = vpop.f32.mrb[0].mxu0
      %v3978 = vadd.f32 0.0, %v3977
      %v3979 = vpop.f32.mrb[0].mxu0
      %3980 = vmatprep.mubr.f32.mxu0 0.0
      %3981 = vmatmul.mubr.f32.gmra.mrb[0].mxu0 %v3386
      %v3982 = vpop.f32.mrb[0].mxu0
      %v3983 = vadd.f32 0.0, %v3982
      %v3984 = vpop.f32.mrb[0].mxu0
      %3985 = vmatprep.mubr.f32.mxu0 0.0
      %3986 = vmatmul.mubr.f32.gmra.mrb[0].mxu0 %v3389
      %v3987 = vpop.f32.mrb[0].mxu0
      %v3988 = vadd.f32 0.0, %v3987
      %v3989 = vpop.f32.mrb[0].mxu0
      %3990 = vmatprep.mubr.f32.mxu0 0.0
      %3991 = vmatmul.mubr.f32.gmra.mrb[0].mxu0 %v3392
      %v3992 = vpop.f32.mrb[0].mxu0
      %v3993 = vadd.f32 0.0, %v3992
      %v3994 = vpop.f32.mrb[0].mxu0
      %3995 = vmatprep.mubr.f32.mxu0 0.0
      %3996 = vmatmul.mubr.f32.gmra.mrb[0].mxu0 %v3395
      %v3997 = vpop.f32.mrb[0].mxu0
      %v3998 = vadd.f32 0.0, %v3997
      %v3999 = vpop.f32.mrb[0].mxu0
      %4000 = vmatprep.mubr.f32.mxu0 0.0
      %4001 = vmatmul.mubr.f32.gmra.mrb[0].mxu0 %v3398
      %v4002 = vpop.f32.mrb[0].mxu0
      %v4003 = vadd.f32 0.0, %v4002
      %v4004 = vpop.f32.mrb[0].mxu0
      %4005 = vmatprep.mubr.f32.mxu0 0.0
      %4006 = vmatmul.mubr.f32.gmra.mrb[0].mxu0 %v3401
      %v4007 = vpop.f32.mrb[0].mxu0
      %v4008 = vadd.f32 0.0, %v4007
      %v4009 = vpop.f32.mrb[0].mxu0
      %4010 = vmatprep.mubr.f32.mxu0 0.0
      %4011 = vmatmul.mubr.f32.gmra.mrb[0].mxu0 %v3404
      %v4012 = vpop.f32.mrb[0].mxu0
      %v4013 = vadd.f32 0.0, %v4012
      %v4014 = vpop.f32.mrb[0].mxu0
      %4015 = vmatprep.mubr.f32.mxu0 0.0
      %4016 = vmatmul.mubr.f32.gmra.mrb[0].mxu0 %v3407
      %v4017 = vpop.f32.mrb[0].mxu0
      %v4018 = vadd.f32 0.0, %v4017
      %v4019 = vpop.f32.mrb[0].mxu0
      %4020 = vmatprep.mubr.f32.mxu0 0.0
      %4021 = vmatmul.mubr.f32.gmra.mrb[0].mxu0 %v3410
      %v4022 = vpop.f32.mrb[0].mxu0
      %v4023 = vadd.f32 0.0, %v4022
      %v4024 = vpop.f32.mrb[0].mxu0
      %4025 = vmatprep.mubr.f32.mxu0 0.0
      %4026 = vmatmul.mubr.f32.gmra.mrb[0].mxu0 %v3413
      %v4027 = vpop.f32.mrb[0].mxu0
      %v4028 = vadd.f32 0.0, %v4027
      %v4029 = vpop.f32.mrb[0].mxu0
      %4030 = vmatprep.mubr.f32.mxu0 0.0
      %4031 = vmatmul.mubr.f32.gmra.mrb[0].mxu0 %v3416
      %v4032 = vpop.f32.mrb[0].mxu0
      %v4033 = vadd.f32 0.0, %v4032
      %v4034 = vpop.f32.mrb[0].mxu0
      %4035 = vmatprep.mubr.f32.mxu0 0.0
      %4036 = vmatmul.mubr.f32.gmra.mrb[0].mxu0 %v3419
      %v4037 = vpop.f32.mrb[0].mxu0
      %v4038 = vadd.f32 0.0, %v4037
      %v4039 = vpop.f32.mrb[0].mxu0
      %4040 = vmatprep.mubr.f32.mxu0 0.0
      %4041 = vmatmul.mubr.f32.gmra.mrb[0].mxu0 %v3422
      %v4042 = vpop.f32.mrb[0].mxu0
      %v4043 = vadd.f32 0.0, %v4042
      %v4044 = vpop.f32.mrb[0].mxu0
      %4045 = vmatprep.mubr.f32.mxu0 0.0
      %4046 = vmatmul.mubr.f32.gmra.mrb[0].mxu0 %v3425
      %v4047 = vpop.f32.mrb[0].mxu0
      %v4048 = vadd.f32 0.0, %v4047
      %v4049 = vpop.f32.mrb[0].mxu0
      %4050 = vmatprep.mubr.f32.mxu0 0.0
      %4051 = vmatmul.mubr.f32.gmra.mrb[0].mxu0 %v3428
      %v4052 = vpop.f32.mrb[0].mxu0
      %v4053 = vadd.f32 0.0, %v4052
      %v4054 = vpop.f32.mrb[0].mxu0
      %4055 = vmatprep.mubr.f32.mxu0 0.0
      %4056 = vmatmul.mubr.f32.gmra.mrb[0].mxu0 %v3431
      %v4057 = vpop.f32.mrb[0].mxu0
      %v4058 = vadd.f32 0.0, %v4057
      %v4059 = vpop.f32.mrb[0].mxu0
      %4060 = vmatprep.mubr.f32.mxu0 0.0
      %4061 = vmatmul.mubr.f32.gmra.mrb[0].mxu0 %v3434
      %v4062 = vpop.f32.mrb[0].mxu0
      %v4063 = vadd.f32 0.0, %v4062
      %v4064 = vpop.f32.mrb[0].mxu0
      %4065 = vmatprep.mubr.f32.mxu0 0.0
      %4066 = vmatmul.mubr.f32.gmra.mrb[0].mxu0 %v3437
      %v4067 = vpop.f32.mrb[0].mxu0
      %v4068 = vadd.f32 0.0, %v4067
      %v4069 = vpop.f32.mrb[0].mxu0
      %4070 = vmatprep.mubr.f32.mxu0 0.0
      %4071 = vmatmul.mubr.f32.gmra.mrb[0].mxu0 %v3440
      %v4072 = vpop.f32.mrb[0].mxu0
      %v4073 = vadd.f32 0.0, %v4072
      %v4074 = vpop.f32.mrb[0].mxu0
      %4075 = vmatprep.mubr.f32.mxu0 0.0
      %4076 = vmatmul.mubr.f32.gmra.mrb[0].mxu0 %v3443
      %v4077 = vpop.f32.mrb[0].mxu0
      %v4078 = vadd.f32 0.0, %v4077
      %v4079 = vpop.f32.mrb[0].mxu0
      %4080 = vmatprep.mubr.f32.mxu0 0.0
      %4081 = vmatmul.mubr.f32.gmra.mrb[0].mxu0 %v3446
      %v4082 = vpop.f32.mrb[0].mxu0
      %v4083 = vadd.f32 0.0, %v4082
      %v4084 = vpop.f32.mrb[0].mxu0
      %4085 = vmatprep.mubr.f32.mxu0 0.0
      %4086 = vmatmul.mubr.f32.gmra.mrb[0].mxu0 %v3449
      %v4087 = vpop.f32.mrb[0].mxu0
      %v4088 = vadd.f32 0.0, %v4087
      %v4089 = vpop.f32.mrb[0].mxu0
      %4090 = vmatprep.mubr.f32.mxu0 0.0
      %4091 = vmatmul.mubr.f32.gmra.mrb[0].mxu0 %v3452
      %v4092 = vpop.f32.mrb[0].mxu0
      %v4093 = vadd.f32 0.0, %v4092
      %v4094 = vpop.f32.mrb[0].mxu0
      %4095 = vmatprep.mubr.f32.mxu0 0.0
      %4096 = vmatmul.mubr.f32.gmra.mrb[0].mxu0 %v3455
      %v4097 = vpop.f32.mrb[0].mxu0
      %v4098 = vadd.f32 0.0, %v4097
      %v4099 = vpop.f32.mrb[0].mxu0
      %4100 = vmatprep.mubr.f32.mxu0 0.0
      %4101 = vmatmul.mubr.f32.gmra.mrb[0].mxu0 %v3458
      %v4102 = vpop.f32.mrb[0].mxu0
      %v4103 = vadd.f32 0.0, %v4102
      %v4104 = vpop.f32.mrb[0].mxu0
      %4105 = vmatprep.mubr.f32.mxu0 0.0
      %4106 = vmatmul.mubr.f32.gmra.mrb[0].mxu0 %v3461
      %v4107 = vpop.f32.mrb[0].mxu0
      %v4108 = vadd.f32 0.0, %v4107
      %v4109 = vpop.f32.mrb[0].mxu0
      %4110 = vmatprep.mubr.f32.mxu0 0.0
      %4111 = vmatmul.mubr.f32.gmra.mrb[0].mxu0 %v3464
      %v4112 = vpop.f32.mrb[0].mxu0
      %v4113 = vadd.f32 0.0, %v4112
      %v4114 = vpop.f32.mrb[0].mxu0
      %4115 = vmatprep.mubr.f32.mxu0 0.0
      %4116 = vmatmul.mubr.f32.gmra.mrb[0].mxu0 %v3467
      %v4117 = vpop.f32.mrb[0].mxu0
      %v4118 = vadd.f32 0.0, %v4117
      %v4119 = vpop.f32.mrb[0].mxu0
      %4120 = vmatprep.mubr.f32.mxu0 0.0
      %4121 = vmatmul.mubr.f32.gmra.mrb[0].mxu0 %v3470
      %v4122 = vpop.f32.mrb[0].mxu0
      %v4123 = vadd.f32 0.0, %v4122
      %v4124 = vpop.f32.mrb[0].mxu0
      %4125 = vmatprep.mubr.f32.mxu0 0.0
      %4126 = vmatmul.mubr.f32.gmra.mrb[0].mxu0 %v3473
      %v4127 = vpop.f32.mrb[0].mxu0
      %v4128 = vadd.f32 0.0, %v4127
      %v4129 = vpop.f32.mrb[0].mxu0
      %4130 = vmatprep.mubr.f32.mxu0 0.0
      %4131 = vmatmul.mubr.f32.gmra.mrb[0].mxu0 %v3476
      %v4132 = vpop.f32.mrb[0].mxu0
      %v4133 = vadd.f32 0.0, %v4132
      %v4134 = vpop.f32.mrb[0].mxu0
      %4135 = vmatprep.mubr.f32.mxu0 0.0
      %4136 = vmatmul.mubr.f32.gmra.mrb[0].mxu0 %v3479
      %v4137 = vpop.f32.mrb[0].mxu0
      %v4138 = vadd.f32 0.0, %v4137
      %v4139 = vpop.f32.mrb[0].mxu0
      %4140 = vmatprep.mubr.f32.mxu0 0.0
      %4141 = vmatmul.mubr.f32.gmra.mrb[0].mxu0 %v3482
      %v4142 = vpop.f32.mrb[0].mxu0
      %v4143 = vadd.f32 0.0, %v4142
      %v4144 = vpop.f32.mrb[0].mxu0
      %4145 = vmatprep.mubr.f32.mxu0 0.0
      %4146 = vmatmul.mubr.f32.gmra.mrb[0].mxu0 %v3485
      %v4147 = vpop.f32.mrb[0].mxu0
      %v4148 = vadd.f32 0.0, %v4147
      %v4149 = vpop.f32.mrb[0].mxu0
      %4150 = vmatprep.mubr.f32.mxu0 0.0
      %4151 = vmatmul.mubr.f32.gmra.mrb[0].mxu0 %v3488
      %v4152 = vpop.f32.mrb[0].mxu0
      %v4153 = vadd.f32 0.0, %v4152
      %v4154 = vpop.f32.mrb[0].mxu0
      %4155 = vmatprep.mubr.f32.mxu0 0.0
      %4156 = vmatmul.mubr.f32.gmra.mrb[0].mxu0 %v3491
      %v4157 = vpop.f32.mrb[0].mxu0
      %v4158 = vpop.f32.mrb[0].mxu0
      %4159 = vmatprep.mubr.f32.mxu0 0.0
      %4160 = vmatmul.mubr.f32.gmra.mrb[0].mxu0 %v3494
      %v4161 = vpop.f32.mrb[0].mxu0
      %v4162 = vpop.f32.mrb[0].mxu0
      %4163 = vmatprep.mubr.f32.mxu0 0.0
      %4164 = vmatmul.mubr.f32.gmra.mrb[0].mxu0 %v3497
      %v4165 = vpop.f32.mrb[0].mxu0
      %v4166 = vpop.f32.mrb[0].mxu0
      %4167 = vmatprep.mubr.f32.mxu0 0.0
      %4168 = vmatmul.mubr.f32.gmra.mrb[0].mxu0 %v3500
      %v4169 = vpop.f32.mrb[0].mxu0
      %v4170 = vpop.f32.mrb[0].mxu0
      %4171 = vdwg.mxu0
      %v4172 = vld [vmem:[%s2] sm:$0x1]
      %v4290 = vrot.slane %v3573, 1
      %v4291 = vrot.slane %v3578, 1
      %v4292 = vsel %vm489, %v4290, %v4291
      %v4293 = vrot.slane %v3583, 1
      %v4294 = vsel %vm489, %v4291, %v4293
      %v4295 = vrot.slane %v3588, 1
      %v4296 = vsel %vm489, %v4293, %v4295
      %v4297 = vrot.slane %v3593, 1
      %v4298 = vsel %vm489, %v4295, %v4297
      %v4299 = vrot.slane %v3598, 1
      %v4300 = vsel %vm489, %v4297, %v4299
      %v4301 = vrot.slane %v3603, 1
      %v4302 = vsel %vm489, %v4299, %v4301
      %v4303 = vrot.slane %v3608, 1
      %v4304 = vsel %vm489, %v4301, %v4303
      %v4305 = vrot.slane %v3613, 1
      %v4306 = vsel %vm489, %v4303, %v4305
      %v4307 = vrot.slane %v3618, 1
      %v4308 = vsel %vm489, %v4305, %v4307
      %v4309 = vrot.slane %v3623, 1
      %v4310 = vsel %vm489, %v4307, %v4309
      %v4311 = vrot.slane %v3628, 1
      %v4312 = vsel %vm489, %v4309, %v4311
      %v4313 = vrot.slane %v3633, 1
      %v4314 = vsel %vm489, %v4311, %v4313
      %v4315 = vrot.slane %v3638, 1
      %v4316 = vsel %vm489, %v4313, %v4315
      %v4317 = vrot.slane %v3643, 1
      %v4318 = vsel %vm489, %v4315, %v4317
      %v4319 = vrot.slane %v3648, 1
      %v4320 = vsel %vm489, %v4317, %v4319
      %v4321 = vrot.slane %v3653, 1
      %v4322 = vsel %vm489, %v4319, %v4321
      %v4323 = vrot.slane %v3658, 1
      %v4324 = vsel %vm489, %v4321, %v4323
      %v4325 = vrot.slane %v3663, 1
      %v4326 = vsel %vm489, %v4323, %v4325
      %v4327 = vrot.slane %v3668, 1
      %v4328 = vsel %vm489, %v4325, %v4327
      %v4329 = vrot.slane %v3673, 1
      %v4330 = vsel %vm489, %v4327, %v4329
      %v4331 = vrot.slane %v3678, 1
      %v4332 = vsel %vm489, %v4329, %v4331
      %v4333 = vrot.slane %v3683, 1
      %v4334 = vsel %vm489, %v4331, %v4333
      %v4335 = vrot.slane %v3688, 1
      %v4336 = vsel %vm489, %v4333, %v4335
      %v4337 = vrot.slane %v3693, 1
      %v4338 = vsel %vm489, %v4335, %v4337
      %v4339 = vrot.slane %v3698, 1
      %v4340 = vsel %vm489, %v4337, %v4339
      %v4341 = vrot.slane %v3703, 1
      %v4342 = vsel %vm489, %v4339, %v4341
      %v4343 = vrot.slane %v3708, 1
      %v4344 = vsel %vm489, %v4341, %v4343
      %v4345 = vrot.slane %v3713, 1
      %v4346 = vsel %vm489, %v4343, %v4345
      %v4347 = vrot.slane %v3718, 1
      %v4348 = vsel %vm489, %v4345, %v4347
      %v4349 = vrot.slane %v3723, 1
      %v4350 = vsel %vm489, %v4347, %v4349
      %v4351 = vrot.slane %v3728, 1
      %v4352 = vsel %vm489, %v4349, %v4351
      %v4353 = vrot.slane %v3733, 1
      %v4354 = vsel %vm489, %v4351, %v4353
      %v4355 = vrot.slane %v3738, 1
      %v4356 = vsel %vm489, %v4353, %v4355
      %v4357 = vrot.slane %v3743, 1
      %v4358 = vsel %vm489, %v4355, %v4357
      %v4359 = vrot.slane %v3748, 1
      %v4360 = vsel %vm489, %v4357, %v4359
      %v4361 = vrot.slane %v3753, 1
      %v4362 = vsel %vm489, %v4359, %v4361
      %v4363 = vrot.slane %v3758, 1
      %v4364 = vsel %vm489, %v4361, %v4363
      %v4365 = vrot.slane %v3763, 1
      %v4366 = vsel %vm489, %v4363, %v4365
      %v4367 = vrot.slane %v3768, 1
      %v4368 = vsel %vm489, %v4365, %v4367
      %v4369 = vrot.slane %v3773, 1
      %v4370 = vsel %vm489, %v4367, %v4369
      %v4371 = vrot.slane %v3778, 1
      %v4372 = vsel %vm489, %v4369, %v4371
      %v4373 = vrot.slane %v3783, 1
      %v4374 = vsel %vm489, %v4371, %v4373
      %v4375 = vrot.slane %v3788, 1
      %v4376 = vsel %vm489, %v4373, %v4375
      %v4377 = vrot.slane %v3793, 1
      %v4378 = vsel %vm489, %v4375, %v4377
      %v4379 = vrot.slane %v3798, 1
      %v4380 = vsel %vm489, %v4377, %v4379
      %v4381 = vrot.slane %v3803, 1
      %v4382 = vsel %vm489, %v4379, %v4381
      %v4383 = vrot.slane %v3808, 1
      %v4384 = vsel %vm489, %v4381, %v4383
      %v4385 = vrot.slane %v3813, 1
      %v4386 = vsel %vm489, %v4383, %v4385
      %v4387 = vrot.slane %v3818, 1
      %v4388 = vsel %vm489, %v4385, %v4387
      %v4389 = vrot.slane %v3823, 1
      %v4390 = vsel %vm489, %v4387, %v4389
      %v4391 = vrot.slane %v3828, 1
      %v4392 = vsel %vm489, %v4389, %v4391
      %v4393 = vrot.slane %v3833, 1
      %v4394 = vsel %vm489, %v4391, %v4393
      %v4395 = vrot.slane %v3838, 1
      %v4396 = vsel %vm489, %v4393, %v4395
      %v4397 = vrot.slane %v3843, 1
      %v4398 = vsel %vm489, %v4395, %v4397
      %v4399 = vrot.slane %v3848, 1
      %v4400 = vsel %vm489, %v4397, %v4399
      %v4401 = vrot.slane %v3853, 1
      %v4402 = vsel %vm489, %v4399, %v4401
      %v4403 = vrot.slane %v3858, 1
      %v4404 = vsel %vm489, %v4401, %v4403
      %v4405 = vrot.slane %v3863, 1
      %v4406 = vsel %vm489, %v4403, %v4405
      %v4407 = vrot.slane %v3868, 1
      %v4408 = vsel %vm489, %v4405, %v4407
      %v4409 = vrot.slane %v3873, 1
      %v4410 = vsel %vm489, %v4407, %v4409
      %v4411 = vrot.slane %v3878, 1
      %v4412 = vsel %vm489, %v4409, %v4411
      %v4413 = vrot.slane %v3883, 1
      %v4414 = vsel %vm489, %v4411, %v4413
      %v4415 = vrot.slane %v3888, 1
      %v4416 = vsel %vm489, %v4413, %v4415
      %v4417 = vrot.slane %v3893, 1
      %v4418 = vsel %vm489, %v4415, %v4417
      %v4419 = vrot.slane %v3898, 1
      %v4420 = vsel %vm489, %v4417, %v4419
      %v4421 = vrot.slane %v3903, 1
      %v4422 = vsel %vm489, %v4419, %v4421
      %v4423 = vrot.slane %v3908, 1
      %v4424 = vsel %vm489, %v4421, %v4423
      %v4425 = vrot.slane %v3913, 1
      %v4426 = vsel %vm489, %v4423, %v4425
      %v4427 = vrot.slane %v3918, 1
      %v4428 = vsel %vm489, %v4425, %v4427
      %v4429 = vrot.slane %v3923, 1
      %v4430 = vsel %vm489, %v4427, %v4429
      %v4431 = vrot.slane %v3928, 1
      %v4432 = vsel %vm489, %v4429, %v4431
      %v4433 = vrot.slane %v3933, 1
      %v4434 = vsel %vm489, %v4431, %v4433
      %v4435 = vrot.slane %v3938, 1
      %v4436 = vsel %vm489, %v4433, %v4435
      %v4437 = vrot.slane %v3943, 1
      %v4438 = vsel %vm489, %v4435, %v4437
      %v4439 = vrot.slane %v3948, 1
      %v4440 = vsel %vm489, %v4437, %v4439
      %v4441 = vrot.slane %v3953, 1
      %v4442 = vsel %vm489, %v4439, %v4441
      %v4443 = vrot.slane %v3958, 1
      %v4444 = vsel %vm489, %v4441, %v4443
      %v4445 = vrot.slane %v3963, 1
      %v4446 = vsel %vm489, %v4443, %v4445
      %v4447 = vrot.slane %v3968, 1
      %v4448 = vsel %vm489, %v4445, %v4447
      %v4449 = vrot.slane %v3973, 1
      %v4450 = vsel %vm489, %v4447, %v4449
      %v4451 = vrot.slane %v3978, 1
      %v4452 = vsel %vm489, %v4449, %v4451
      %v4453 = vrot.slane %v3983, 1
      %v4454 = vsel %vm489, %v4451, %v4453
      %v4455 = vrot.slane %v3988, 1
      %v4456 = vsel %vm489, %v4453, %v4455
      %v4457 = vrot.slane %v3993, 1
      %v4458 = vsel %vm489, %v4455, %v4457
      %v4459 = vrot.slane %v3998, 1
      %v4460 = vsel %vm489, %v4457, %v4459
      %v4461 = vrot.slane %v4003, 1
      %v4462 = vsel %vm489, %v4459, %v4461
      %v4463 = vrot.slane %v4008, 1
      %v4464 = vsel %vm489, %v4461, %v4463
      %v4465 = vrot.slane %v4013, 1
      %v4466 = vsel %vm489, %v4463, %v4465
      %v4467 = vrot.slane %v4018, 1
      %v4468 = vsel %vm489, %v4465, %v4467
      %v4469 = vrot.slane %v4023, 1
      %v4470 = vsel %vm489, %v4467, %v4469
      %v4471 = vrot.slane %v4028, 1
      %v4472 = vsel %vm489, %v4469, %v4471
      %v4473 = vrot.slane %v4033, 1
      %v4474 = vsel %vm489, %v4471, %v4473
      %v4475 = vrot.slane %v4038, 1
      %v4476 = vsel %vm489, %v4473, %v4475
      %v4477 = vrot.slane %v4043, 1
      %v4478 = vsel %vm489, %v4475, %v4477
      %v4479 = vrot.slane %v4048, 1
      %v4480 = vsel %vm489, %v4477, %v4479
      %v4481 = vrot.slane %v4053, 1
      %v4482 = vsel %vm489, %v4479, %v4481
      %v4483 = vrot.slane %v4058, 1
      %v4484 = vsel %vm489, %v4481, %v4483
      %v4485 = vrot.slane %v4063, 1
      %v4486 = vsel %vm489, %v4483, %v4485
      %v4487 = vrot.slane %v4068, 1
      %v4488 = vsel %vm489, %v4485, %v4487
      %v4489 = vrot.slane %v4073, 1
      %v4490 = vsel %vm489, %v4487, %v4489
      %v4491 = vrot.slane %v4078, 1
      %v4492 = vsel %vm489, %v4489, %v4491
      %v4493 = vrot.slane %v4083, 1
      %v4494 = vsel %vm489, %v4491, %v4493
      %v4495 = vrot.slane %v4088, 1
      %v4496 = vsel %vm489, %v4493, %v4495
      %v4497 = vrot.slane %v4093, 1
      %v4498 = vsel %vm489, %v4495, %v4497
      %v4499 = vrot.slane %v4098, 1
      %v4500 = vsel %vm489, %v4497, %v4499
      %v4501 = vrot.slane %v4103, 1
      %v4502 = vsel %vm489, %v4499, %v4501
      %v4503 = vrot.slane %v4108, 1
      %v4504 = vsel %vm489, %v4501, %v4503
      %v4505 = vrot.slane %v4113, 1
      %v4506 = vsel %vm489, %v4503, %v4505
      %v4507 = vrot.slane %v4118, 1
      %v4508 = vsel %vm489, %v4505, %v4507
      %v4509 = vrot.slane %v4123, 1
      %v4510 = vsel %vm489, %v4507, %v4509
      %v4511 = vrot.slane %v4128, 1
      %v4512 = vsel %vm489, %v4509, %v4511
      %v4513 = vrot.slane %v4133, 1
      %v4514 = vsel %vm489, %v4511, %v4513
      %v4515 = vrot.slane %v4138, 1
      %v4516 = vsel %vm489, %v4513, %v4515
      %v4517 = vrot.slane %v4143, 1
      %v4518 = vsel %vm489, %v4515, %v4517
      %v4519 = vrot.slane %v4148, 1
      %v4520 = vsel %vm489, %v4517, %v4519
      %v4521 = vrot.slane %v4153, 1
      %v4522 = vsel %vm489, %v4519, %v4521
      %v4639 = vmax.f32 %v3573, %v4292
      %v4640 = vmax.f32 %v3578, %v4294
      %v4641 = vmax.f32 %v3583, %v4296
      %v4642 = vmax.f32 %v3588, %v4298
      %v4643 = vmax.f32 %v3593, %v4300
      %v4644 = vmax.f32 %v3598, %v4302
      %v4645 = vmax.f32 %v3603, %v4304
      %v4646 = vmax.f32 %v3608, %v4306
      %v4647 = vmax.f32 %v3613, %v4308
      %v4648 = vmax.f32 %v3618, %v4310
      %v4649 = vmax.f32 %v3623, %v4312
      %v4650 = vmax.f32 %v3628, %v4314
      %v4651 = vmax.f32 %v3633, %v4316
      %v4652 = vmax.f32 %v3638, %v4318
      %v4653 = vmax.f32 %v3643, %v4320
      %v4654 = vmax.f32 %v3648, %v4322
      %v4655 = vmax.f32 %v3653, %v4324
      %v4656 = vmax.f32 %v3658, %v4326
      %v4657 = vmax.f32 %v3663, %v4328
      %v4658 = vmax.f32 %v3668, %v4330
      %v4659 = vmax.f32 %v3673, %v4332
      %v4660 = vmax.f32 %v3678, %v4334
      %v4661 = vmax.f32 %v3683, %v4336
      %v4662 = vmax.f32 %v3688, %v4338
      %v4663 = vmax.f32 %v3693, %v4340
      %v4664 = vmax.f32 %v3698, %v4342
      %v4665 = vmax.f32 %v3703, %v4344
      %v4666 = vmax.f32 %v3708, %v4346
      %v4667 = vmax.f32 %v3713, %v4348
      %v4668 = vmax.f32 %v3718, %v4350
      %v4669 = vmax.f32 %v3723, %v4352
      %v4670 = vmax.f32 %v3728, %v4354
      %v4671 = vmax.f32 %v3733, %v4356
      %v4672 = vmax.f32 %v3738, %v4358
      %v4673 = vmax.f32 %v3743, %v4360
      %v4674 = vmax.f32 %v3748, %v4362
      %v4675 = vmax.f32 %v3753, %v4364
      %v4676 = vmax.f32 %v3758, %v4366
      %v4677 = vmax.f32 %v3763, %v4368
      %v4678 = vmax.f32 %v3768, %v4370
      %v4679 = vmax.f32 %v3773, %v4372
      %v4680 = vmax.f32 %v3778, %v4374
      %v4681 = vmax.f32 %v3783, %v4376
      %v4682 = vmax.f32 %v3788, %v4378
      %v4683 = vmax.f32 %v3793, %v4380
      %v4684 = vmax.f32 %v3798, %v4382
      %v4685 = vmax.f32 %v3803, %v4384
      %v4686 = vmax.f32 %v3808, %v4386
      %v4687 = vmax.f32 %v3813, %v4388
      %v4688 = vmax.f32 %v3818, %v4390
      %v4689 = vmax.f32 %v3823, %v4392
      %v4690 = vmax.f32 %v3828, %v4394
      %v4691 = vmax.f32 %v3833, %v4396
      %v4692 = vmax.f32 %v3838, %v4398
      %v4693 = vmax.f32 %v3843, %v4400
      %v4694 = vmax.f32 %v3848, %v4402
      %v4695 = vmax.f32 %v3853, %v4404
      %v4696 = vmax.f32 %v3858, %v4406
      %v4697 = vmax.f32 %v3863, %v4408
      %v4698 = vmax.f32 %v3868, %v4410
      %v4699 = vmax.f32 %v3873, %v4412
      %v4700 = vmax.f32 %v3878, %v4414
      %v4701 = vmax.f32 %v3883, %v4416
      %v4702 = vmax.f32 %v3888, %v4418
      %v4703 = vmax.f32 %v3893, %v4420
      %v4704 = vmax.f32 %v3898, %v4422
      %v4705 = vmax.f32 %v3903, %v4424
      %v4706 = vmax.f32 %v3908, %v4426
      %v4707 = vmax.f32 %v3913, %v4428
      %v4708 = vmax.f32 %v3918, %v4430
      %v4709 = vmax.f32 %v3923, %v4432
      %v4710 = vmax.f32 %v3928, %v4434
      %v4711 = vmax.f32 %v3933, %v4436
      %v4712 = vmax.f32 %v3938, %v4438
      %v4713 = vmax.f32 %v3943, %v4440
      %v4714 = vmax.f32 %v3948, %v4442
      %v4715 = vmax.f32 %v3953, %v4444
      %v4716 = vmax.f32 %v3958, %v4446
      %v4717 = vmax.f32 %v3963, %v4448
      %v4718 = vmax.f32 %v3968, %v4450
      %v4719 = vmax.f32 %v3973, %v4452
      %v4720 = vmax.f32 %v3978, %v4454
      %v4721 = vmax.f32 %v3983, %v4456
      %v4722 = vmax.f32 %v3988, %v4458
      %v4723 = vmax.f32 %v3993, %v4460
      %v4724 = vmax.f32 %v3998, %v4462
      %v4725 = vmax.f32 %v4003, %v4464
      %v4726 = vmax.f32 %v4008, %v4466
      %v4727 = vmax.f32 %v4013, %v4468
      %v4728 = vmax.f32 %v4018, %v4470
      %v4729 = vmax.f32 %v4023, %v4472
      %v4730 = vmax.f32 %v4028, %v4474
      %v4731 = vmax.f32 %v4033, %v4476
      %v4732 = vmax.f32 %v4038, %v4478
      %v4733 = vmax.f32 %v4043, %v4480
      %v4734 = vmax.f32 %v4048, %v4482
      %v4735 = vmax.f32 %v4053, %v4484
      %v4736 = vmax.f32 %v4058, %v4486
      %v4737 = vmax.f32 %v4063, %v4488
      %v4738 = vmax.f32 %v4068, %v4490
      %v4739 = vmax.f32 %v4073, %v4492
      %v4740 = vmax.f32 %v4078, %v4494
      %v4741 = vmax.f32 %v4083, %v4496
      %v4742 = vmax.f32 %v4088, %v4498
      %v4743 = vmax.f32 %v4093, %v4500
      %v4744 = vmax.f32 %v4098, %v4502
      %v4745 = vmax.f32 %v4103, %v4504
      %v4746 = vmax.f32 %v4108, %v4506
      %v4747 = vmax.f32 %v4113, %v4508
      %v4748 = vmax.f32 %v4118, %v4510
      %v4749 = vmax.f32 %v4123, %v4512
      %v4750 = vmax.f32 %v4128, %v4514
      %v4751 = vmax.f32 %v4133, %v4516
      %v4752 = vmax.f32 %v4138, %v4518
      %v4753 = vmax.f32 %v4143, %v4520
      %v4754 = vmax.f32 %v4148, %v4522
      %v4755 = vrot.slane %v3573, 2
      %v4756 = vrot.slane %v3578, 2
      %v4757 = vsel %vm1136, %v4755, %v4756
      %v4758 = vrot.slane %v3583, 2
      %v4759 = vsel %vm1136, %v4756, %v4758
      %v4760 = vrot.slane %v3588, 2
      %v4761 = vsel %vm1136, %v4758, %v4760
      %v4762 = vrot.slane %v3593, 2
      %v4763 = vsel %vm1136, %v4760, %v4762
      %v4764 = vrot.slane %v3598, 2
      %v4765 = vsel %vm1136, %v4762, %v4764
      %v4766 = vrot.slane %v3603, 2
      %v4767 = vsel %vm1136, %v4764, %v4766
      %v4768 = vrot.slane %v3608, 2
      %v4769 = vsel %vm1136, %v4766, %v4768
      %v4770 = vrot.slane %v3613, 2
      %v4771 = vsel %vm1136, %v4768, %v4770
      %v4772 = vrot.slane %v3618, 2
      %v4773 = vsel %vm1136, %v4770, %v4772
      %v4774 = vrot.slane %v3623, 2
      %v4775 = vsel %vm1136, %v4772, %v4774
      %v4776 = vrot.slane %v3628, 2
      %v4777 = vsel %vm1136, %v4774, %v4776
      %v4778 = vrot.slane %v3633, 2
      %v4779 = vsel %vm1136, %v4776, %v4778
      %v4780 = vrot.slane %v3638, 2
      %v4781 = vsel %vm1136, %v4778, %v4780
      %v4782 = vrot.slane %v3643, 2
      %v4783 = vsel %vm1136, %v4780, %v4782
      %v4784 = vrot.slane %v3648, 2
      %v4785 = vsel %vm1136, %v4782, %v4784
      %v4786 = vrot.slane %v3653, 2
      %v4787 = vsel %vm1136, %v4784, %v4786
      %v4788 = vrot.slane %v3658, 2
      %v4789 = vsel %vm1136, %v4786, %v4788
      %v4790 = vrot.slane %v3663, 2
      %v4791 = vsel %vm1136, %v4788, %v4790
      %v4792 = vrot.slane %v3668, 2
      %v4793 = vsel %vm1136, %v4790, %v4792
      %v4794 = vrot.slane %v3673, 2
      %v4795 = vsel %vm1136, %v4792, %v4794
      %v4796 = vrot.slane %v3678, 2
      %v4797 = vsel %vm1136, %v4794, %v4796
      %v4798 = vrot.slane %v3683, 2
      %v4799 = vsel %vm1136, %v4796, %v4798
      %v4800 = vrot.slane %v3688, 2
      %v4801 = vsel %vm1136, %v4798, %v4800
      %v4802 = vrot.slane %v3693, 2
      %v4803 = vsel %vm1136, %v4800, %v4802
      %v4804 = vrot.slane %v3698, 2
      %v4805 = vsel %vm1136, %v4802, %v4804
      %v4806 = vrot.slane %v3703, 2
      %v4807 = vsel %vm1136, %v4804, %v4806
      %v4808 = vrot.slane %v3708, 2
      %v4809 = vsel %vm1136, %v4806, %v4808
      %v4810 = vrot.slane %v3713, 2
      %v4811 = vsel %vm1136, %v4808, %v4810
      %v4812 = vrot.slane %v3718, 2
      %v4813 = vsel %vm1136, %v4810, %v4812
      %v4814 = vrot.slane %v3723, 2
      %v4815 = vsel %vm1136, %v4812, %v4814
      %v4816 = vrot.slane %v3728, 2
      %v4817 = vsel %vm1136, %v4814, %v4816
      %v4818 = vrot.slane %v3733, 2
      %v4819 = vsel %vm1136, %v4816, %v4818
      %v4820 = vrot.slane %v3738, 2
      %v4821 = vsel %vm1136, %v4818, %v4820
      %v4822 = vrot.slane %v3743, 2
      %v4823 = vsel %vm1136, %v4820, %v4822
      %v4824 = vrot.slane %v3748, 2
      %v4825 = vsel %vm1136, %v4822, %v4824
      %v4826 = vrot.slane %v3753, 2
      %v4827 = vsel %vm1136, %v4824, %v4826
      %v4828 = vrot.slane %v3758, 2
      %v4829 = vsel %vm1136, %v4826, %v4828
      %v4830 = vrot.slane %v3763, 2
      %v4831 = vsel %vm1136, %v4828, %v4830
      %v4832 = vrot.slane %v3768, 2
      %v4833 = vsel %vm1136, %v4830, %v4832
      %v4834 = vrot.slane %v3773, 2
      %v4835 = vsel %vm1136, %v4832, %v4834
      %v4836 = vrot.slane %v3778, 2
      %v4837 = vsel %vm1136, %v4834, %v4836
      %v4838 = vrot.slane %v3783, 2
      %v4839 = vsel %vm1136, %v4836, %v4838
      %v4840 = vrot.slane %v3788, 2
      %v4841 = vsel %vm1136, %v4838, %v4840
      %v4842 = vrot.slane %v3793, 2
      %v4843 = vsel %vm1136, %v4840, %v4842
      %v4844 = vrot.slane %v3798, 2
      %v4845 = vsel %vm1136, %v4842, %v4844
      %v4846 = vrot.slane %v3803, 2
      %v4847 = vsel %vm1136, %v4844, %v4846
      %v4848 = vrot.slane %v3808, 2
      %v4849 = vsel %vm1136, %v4846, %v4848
      %v4850 = vrot.slane %v3813, 2
      %v4851 = vsel %vm1136, %v4848, %v4850
      %v4852 = vrot.slane %v3818, 2
      %v4853 = vsel %vm1136, %v4850, %v4852
      %v4854 = vrot.slane %v3823, 2
      %v4855 = vsel %vm1136, %v4852, %v4854
      %v4856 = vrot.slane %v3828, 2
      %v4857 = vsel %vm1136, %v4854, %v4856
      %v4858 = vrot.slane %v3833, 2
      %v4859 = vsel %vm1136, %v4856, %v4858
      %v4860 = vrot.slane %v3838, 2
      %v4861 = vsel %vm1136, %v4858, %v4860
      %v4862 = vrot.slane %v3843, 2
      %v4863 = vsel %vm1136, %v4860, %v4862
      %v4864 = vrot.slane %v3848, 2
      %v4865 = vsel %vm1136, %v4862, %v4864
      %v4866 = vrot.slane %v3853, 2
      %v4867 = vsel %vm1136, %v4864, %v4866
      %v4868 = vrot.slane %v3858, 2
      %v4869 = vsel %vm1136, %v4866, %v4868
      %v4870 = vrot.slane %v3863, 2
      %v4871 = vsel %vm1136, %v4868, %v4870
      %v4872 = vrot.slane %v3868, 2
      %v4873 = vsel %vm1136, %v4870, %v4872
      %v4874 = vrot.slane %v3873, 2
      %v4875 = vsel %vm1136, %v4872, %v4874
      %v4876 = vrot.slane %v3878, 2
      %v4877 = vsel %vm1136, %v4874, %v4876
      %v4878 = vrot.slane %v3883, 2
      %v4879 = vsel %vm1136, %v4876, %v4878
      %v4880 = vrot.slane %v3888, 2
      %v4881 = vsel %vm1136, %v4878, %v4880
      %v4882 = vrot.slane %v3893, 2
      %v4883 = vsel %vm1136, %v4880, %v4882
      %v4884 = vrot.slane %v3898, 2
      %v4885 = vsel %vm1136, %v4882, %v4884
      %v4886 = vrot.slane %v3903, 2
      %v4887 = vsel %vm1136, %v4884, %v4886
      %v4888 = vrot.slane %v3908, 2
      %v4889 = vsel %vm1136, %v4886, %v4888
      %v4890 = vrot.slane %v3913, 2
      %v4891 = vsel %vm1136, %v4888, %v4890
      %v4892 = vrot.slane %v3918, 2
      %v4893 = vsel %vm1136, %v4890, %v4892
      %v4894 = vrot.slane %v3923, 2
      %v4895 = vsel %vm1136, %v4892, %v4894
      %v4896 = vrot.slane %v3928, 2
      %v4897 = vsel %vm1136, %v4894, %v4896
      %v4898 = vrot.slane %v3933, 2
      %v4899 = vsel %vm1136, %v4896, %v4898
      %v4900 = vrot.slane %v3938, 2
      %v4901 = vsel %vm1136, %v4898, %v4900
      %v4902 = vrot.slane %v3943, 2
      %v4903 = vsel %vm1136, %v4900, %v4902
      %v4904 = vrot.slane %v3948, 2
      %v4905 = vsel %vm1136, %v4902, %v4904
      %v4906 = vrot.slane %v3953, 2
      %v4907 = vsel %vm1136, %v4904, %v4906
      %v4908 = vrot.slane %v3958, 2
      %v4909 = vsel %vm1136, %v4906, %v4908
      %v4910 = vrot.slane %v3963, 2
      %v4911 = vsel %vm1136, %v4908, %v4910
      %v4912 = vrot.slane %v3968, 2
      %v4913 = vsel %vm1136, %v4910, %v4912
      %v4914 = vrot.slane %v3973, 2
      %v4915 = vsel %vm1136, %v4912, %v4914
      %v4916 = vrot.slane %v3978, 2
      %v4917 = vsel %vm1136, %v4914, %v4916
      %v4918 = vrot.slane %v3983, 2
      %v4919 = vsel %vm1136, %v4916, %v4918
      %v4920 = vrot.slane %v3988, 2
      %v4921 = vsel %vm1136, %v4918, %v4920
      %v4922 = vrot.slane %v3993, 2
      %v4923 = vsel %vm1136, %v4920, %v4922
      %v4924 = vrot.slane %v3998, 2
      %v4925 = vsel %vm1136, %v4922, %v4924
      %v4926 = vrot.slane %v4003, 2
      %v4927 = vsel %vm1136, %v4924, %v4926
      %v4928 = vrot.slane %v4008, 2
      %v4929 = vsel %vm1136, %v4926, %v4928
      %v4930 = vrot.slane %v4013, 2
      %v4931 = vsel %vm1136, %v4928, %v4930
      %v4932 = vrot.slane %v4018, 2
      %v4933 = vsel %vm1136, %v4930, %v4932
      %v4934 = vrot.slane %v4023, 2
      %v4935 = vsel %vm1136, %v4932, %v4934
      %v4936 = vrot.slane %v4028, 2
      %v4937 = vsel %vm1136, %v4934, %v4936
      %v4938 = vrot.slane %v4033, 2
      %v4939 = vsel %vm1136, %v4936, %v4938
      %v4940 = vrot.slane %v4038, 2
      %v4941 = vsel %vm1136, %v4938, %v4940
      %v4942 = vrot.slane %v4043, 2
      %v4943 = vsel %vm1136, %v4940, %v4942
      %v4944 = vrot.slane %v4048, 2
      %v4945 = vsel %vm1136, %v4942, %v4944
      %v4946 = vrot.slane %v4053, 2
      %v4947 = vsel %vm1136, %v4944, %v4946
      %v4948 = vrot.slane %v4058, 2
      %v4949 = vsel %vm1136, %v4946, %v4948
      %v4950 = vrot.slane %v4063, 2
      %v4951 = vsel %vm1136, %v4948, %v4950
      %v4952 = vrot.slane %v4068, 2
      %v4953 = vsel %vm1136, %v4950, %v4952
      %v4954 = vrot.slane %v4073, 2
      %v4955 = vsel %vm1136, %v4952, %v4954
      %v4956 = vrot.slane %v4078, 2
      %v4957 = vsel %vm1136, %v4954, %v4956
      %v4958 = vrot.slane %v4083, 2
      %v4959 = vsel %vm1136, %v4956, %v4958
      %v4960 = vrot.slane %v4088, 2
      %v4961 = vsel %vm1136, %v4958, %v4960
      %v4962 = vrot.slane %v4093, 2
      %v4963 = vsel %vm1136, %v4960, %v4962
      %v4964 = vrot.slane %v4098, 2
      %v4965 = vsel %vm1136, %v4962, %v4964
      %v4966 = vrot.slane %v4103, 2
      %v4967 = vsel %vm1136, %v4964, %v4966
      %v4968 = vrot.slane %v4108, 2
      %v4969 = vsel %vm1136, %v4966, %v4968
      %v4970 = vrot.slane %v4113, 2
      %v4971 = vsel %vm1136, %v4968, %v4970
      %v4972 = vrot.slane %v4118, 2
      %v4973 = vsel %vm1136, %v4970, %v4972
      %v4974 = vrot.slane %v4123, 2
      %v4975 = vsel %vm1136, %v4972, %v4974
      %v4976 = vrot.slane %v4128, 2
      %v4977 = vsel %vm1136, %v4974, %v4976
      %v4978 = vrot.slane %v4133, 2
      %v4979 = vsel %vm1136, %v4976, %v4978
      %v4980 = vrot.slane %v4138, 2
      %v4981 = vsel %vm1136, %v4978, %v4980
      %v4982 = vrot.slane %v4143, 2
      %v4983 = vsel %vm1136, %v4980, %v4982
      %v4984 = vrot.slane %v4148, 2
      %v4985 = vsel %vm1136, %v4982, %v4984
      %v4986 = vrot.slane %v4153, 2
      %v4987 = vsel %vm1136, %v4984, %v4986
      %v5104 = vmax.f32 %v4639, %v4757
      %v5105 = vmax.f32 %v4640, %v4759
      %v5106 = vmax.f32 %v4641, %v4761
      %v5107 = vmax.f32 %v4642, %v4763
      %v5108 = vmax.f32 %v4643, %v4765
      %v5109 = vmax.f32 %v4644, %v4767
      %v5110 = vmax.f32 %v4645, %v4769
      %v5111 = vmax.f32 %v4646, %v4771
      %v5112 = vmax.f32 %v4647, %v4773
      %v5113 = vmax.f32 %v4648, %v4775
      %v5114 = vmax.f32 %v4649, %v4777
      %v5115 = vmax.f32 %v4650, %v4779
      %v5116 = vmax.f32 %v4651, %v4781
      %v5117 = vmax.f32 %v4652, %v4783
      %v5118 = vmax.f32 %v4653, %v4785
      %v5119 = vmax.f32 %v4654, %v4787
      %v5120 = vmax.f32 %v4655, %v4789
      %v5121 = vmax.f32 %v4656, %v4791
      %v5122 = vmax.f32 %v4657, %v4793
      %v5123 = vmax.f32 %v4658, %v4795
      %v5124 = vmax.f32 %v4659, %v4797
      %v5125 = vmax.f32 %v4660, %v4799
      %v5126 = vmax.f32 %v4661, %v4801
      %v5127 = vmax.f32 %v4662, %v4803
      %v5128 = vmax.f32 %v4663, %v4805
      %v5129 = vmax.f32 %v4664, %v4807
      %v5130 = vmax.f32 %v4665, %v4809
      %v5131 = vmax.f32 %v4666, %v4811
      %v5132 = vmax.f32 %v4667, %v4813
      %v5133 = vmax.f32 %v4668, %v4815
      %v5134 = vmax.f32 %v4669, %v4817
      %v5135 = vmax.f32 %v4670, %v4819
      %v5136 = vmax.f32 %v4671, %v4821
      %v5137 = vmax.f32 %v4672, %v4823
      %v5138 = vmax.f32 %v4673, %v4825
      %v5139 = vmax.f32 %v4674, %v4827
      %v5140 = vmax.f32 %v4675, %v4829
      %v5141 = vmax.f32 %v4676, %v4831
      %v5142 = vmax.f32 %v4677, %v4833
      %v5143 = vmax.f32 %v4678, %v4835
      %v5144 = vmax.f32 %v4679, %v4837
      %v5145 = vmax.f32 %v4680, %v4839
      %v5146 = vmax.f32 %v4681, %v4841
      %v5147 = vmax.f32 %v4682, %v4843
      %v5148 = vmax.f32 %v4683, %v4845
      %v5149 = vmax.f32 %v4684, %v4847
      %v5150 = vmax.f32 %v4685, %v4849
      %v5151 = vmax.f32 %v4686, %v4851
      %v5152 = vmax.f32 %v4687, %v4853
      %v5153 = vmax.f32 %v4688, %v4855
      %v5154 = vmax.f32 %v4689, %v4857
      %v5155 = vmax.f32 %v4690, %v4859
      %v5156 = vmax.f32 %v4691, %v4861
      %v5157 = vmax.f32 %v4692, %v4863
      %v5158 = vmax.f32 %v4693, %v4865
      %v5159 = vmax.f32 %v4694, %v4867
      %v5160 = vmax.f32 %v4695, %v4869
      %v5161 = vmax.f32 %v4696, %v4871
      %v5162 = vmax.f32 %v4697, %v4873
      %v5163 = vmax.f32 %v4698, %v4875
      %v5164 = vmax.f32 %v4699, %v4877
      %v5165 = vmax.f32 %v4700, %v4879
      %v5166 = vmax.f32 %v4701, %v4881
      %v5167 = vmax.f32 %v4702, %v4883
      %v5168 = vmax.f32 %v4703, %v4885
      %v5169 = vmax.f32 %v4704, %v4887
      %v5170 = vmax.f32 %v4705, %v4889
      %v5171 = vmax.f32 %v4706, %v4891
      %v5172 = vmax.f32 %v4707, %v4893
      %v5173 = vmax.f32 %v4708, %v4895
      %v5174 = vmax.f32 %v4709, %v4897
      %v5175 = vmax.f32 %v4710, %v4899
      %v5176 = vmax.f32 %v4711, %v4901
      %v5177 = vmax.f32 %v4712, %v4903
      %v5178 = vmax.f32 %v4713, %v4905
      %v5179 = vmax.f32 %v4714, %v4907
      %v5180 = vmax.f32 %v4715, %v4909
      %v5181 = vmax.f32 %v4716, %v4911
      %v5182 = vmax.f32 %v4717, %v4913
      %v5183 = vmax.f32 %v4718, %v4915
      %v5184 = vmax.f32 %v4719, %v4917
      %v5185 = vmax.f32 %v4720, %v4919
      %v5186 = vmax.f32 %v4721, %v4921
      %v5187 = vmax.f32 %v4722, %v4923
      %v5188 = vmax.f32 %v4723, %v4925
      %v5189 = vmax.f32 %v4724, %v4927
      %v5190 = vmax.f32 %v4725, %v4929
      %v5191 = vmax.f32 %v4726, %v4931
      %v5192 = vmax.f32 %v4727, %v4933
      %v5193 = vmax.f32 %v4728, %v4935
      %v5194 = vmax.f32 %v4729, %v4937
      %v5195 = vmax.f32 %v4730, %v4939
      %v5196 = vmax.f32 %v4731, %v4941
      %v5197 = vmax.f32 %v4732, %v4943
      %v5198 = vmax.f32 %v4733, %v4945
      %v5199 = vmax.f32 %v4734, %v4947
      %v5200 = vmax.f32 %v4735, %v4949
      %v5201 = vmax.f32 %v4736, %v4951
      %v5202 = vmax.f32 %v4737, %v4953
      %v5203 = vmax.f32 %v4738, %v4955
      %v5204 = vmax.f32 %v4739, %v4957
      %v5205 = vmax.f32 %v4740, %v4959
      %v5206 = vmax.f32 %v4741, %v4961
      %v5207 = vmax.f32 %v4742, %v4963
      %v5208 = vmax.f32 %v4743, %v4965
      %v5209 = vmax.f32 %v4744, %v4967
      %v5210 = vmax.f32 %v4745, %v4969
      %v5211 = vmax.f32 %v4746, %v4971
      %v5212 = vmax.f32 %v4747, %v4973
      %v5213 = vmax.f32 %v4748, %v4975
      %v5214 = vmax.f32 %v4749, %v4977
      %v5215 = vmax.f32 %v4750, %v4979
      %v5216 = vmax.f32 %v4751, %v4981
      %v5217 = vmax.f32 %v4752, %v4983
      %v5218 = vmax.f32 %v4753, %v4985
      %v5219 = vmax.f32 %v4754, %v4987
      %v5220 = vmax.f32 %v5104, %v5108
      %v5221 = vmax.f32 %v5105, %v5109
      %v5222 = vmax.f32 %v5106, %v5110
      %v5223 = vmax.f32 %v5107, %v5111
      %v5224 = vmax.f32 %v5112, %v5116
      %v5225 = vmax.f32 %v5113, %v5117
      %v5226 = vmax.f32 %v5114, %v5118
      %v5227 = vmax.f32 %v5115, %v5119
      %v5228 = vmax.f32 %v5120, %v5124
      %v5229 = vmax.f32 %v5121, %v5125
      %v5230 = vmax.f32 %v5122, %v5126
      %v5231 = vmax.f32 %v5123, %v5127
      %v5232 = vmax.f32 %v5128, %v5132
      %v5233 = vmax.f32 %v5129, %v5133
      %v5234 = vmax.f32 %v5130, %v5134
      %v5235 = vmax.f32 %v5131, %v5135
      %v5236 = vmax.f32 %v5136, %v5140
      %v5237 = vmax.f32 %v5137, %v5141
      %v5238 = vmax.f32 %v5138, %v5142
      %v5239 = vmax.f32 %v5139, %v5143
      %v5240 = vmax.f32 %v5144, %v5148
      %v5241 = vmax.f32 %v5145, %v5149
      %v5242 = vmax.f32 %v5146, %v5150
      %v5243 = vmax.f32 %v5147, %v5151
      %v5244 = vmax.f32 %v5152, %v5156
      %v5245 = vmax.f32 %v5153, %v5157
      %v5246 = vmax.f32 %v5154, %v5158
      %v5247 = vmax.f32 %v5155, %v5159
      %v5248 = vmax.f32 %v5160, %v5164
      %v5249 = vmax.f32 %v5161, %v5165
      %v5250 = vmax.f32 %v5162, %v5166
      %v5251 = vmax.f32 %v5163, %v5167
      %v5252 = vmax.f32 %v5168, %v5172
      %v5253 = vmax.f32 %v5169, %v5173
      %v5254 = vmax.f32 %v5170, %v5174
      %v5255 = vmax.f32 %v5171, %v5175
      %v5256 = vmax.f32 %v5176, %v5180
      %v5257 = vmax.f32 %v5177, %v5181
      %v5258 = vmax.f32 %v5178, %v5182
      %v5259 = vmax.f32 %v5179, %v5183
      %v5260 = vmax.f32 %v5184, %v5188
      %v5261 = vmax.f32 %v5185, %v5189
      %v5262 = vmax.f32 %v5186, %v5190
      %v5263 = vmax.f32 %v5187, %v5191
      %v5264 = vmax.f32 %v5192, %v5196
      %v5265 = vmax.f32 %v5193, %v5197
      %v5266 = vmax.f32 %v5194, %v5198
      %v5267 = vmax.f32 %v5195, %v5199
      %v5268 = vmax.f32 %v5200, %v5204
      %v5269 = vmax.f32 %v5201, %v5205
      %v5270 = vmax.f32 %v5202, %v5206
      %v5271 = vmax.f32 %v5203, %v5207
      %v5272 = vmax.f32 %v5208, %v5212
      %v5273 = vmax.f32 %v5209, %v5213
      %v5274 = vmax.f32 %v5210, %v5214
      %v5275 = vmax.f32 %v5211, %v5215
      %v5276 = vmax.f32 %v5220, %v5112
      %v5277 = vmax.f32 %v5221, %v5113
      %v5278 = vmax.f32 %v5222, %v5114
      %v5279 = vmax.f32 %v5223, %v5115
      %v5280 = vmax.f32 %v5224, %v5120
      %v5281 = vmax.f32 %v5225, %v5121
      %v5282 = vmax.f32 %v5226, %v5122
      %v5283 = vmax.f32 %v5227, %v5123
      %v5284 = vmax.f32 %v5228, %v5128
      %v5285 = vmax.f32 %v5229, %v5129
      %v5286 = vmax.f32 %v5230, %v5130
      %v5287 = vmax.f32 %v5231, %v5131
      %v5288 = vmax.f32 %v5232, %v5136
      %v5289 = vmax.f32 %v5233, %v5137
      %v5290 = vmax.f32 %v5234, %v5138
      %v5291 = vmax.f32 %v5235, %v5139
      %v5292 = vmax.f32 %v5236, %v5144
      %v5293 = vmax.f32 %v5237, %v5145
      %v5294 = vmax.f32 %v5238, %v5146
      %v5295 = vmax.f32 %v5239, %v5147
      %v5296 = vmax.f32 %v5240, %v5152
      %v5297 = vmax.f32 %v5241, %v5153
      %v5298 = vmax.f32 %v5242, %v5154
      %v5299 = vmax.f32 %v5243, %v5155
      %v5300 = vmax.f32 %v5244, %v5160
      %v5301 = vmax.f32 %v5245, %v5161
      %v5302 = vmax.f32 %v5246, %v5162
      %v5303 = vmax.f32 %v5247, %v5163
      %v5304 = vmax.f32 %v5248, %v5168
      %v5305 = vmax.f32 %v5249, %v5169
      %v5306 = vmax.f32 %v5250, %v5170
      %v5307 = vmax.f32 %v5251, %v5171
      %v5308 = vmax.f32 %v5252, %v5176
      %v5309 = vmax.f32 %v5253, %v5177
      %v5310 = vmax.f32 %v5254, %v5178
      %v5311 = vmax.f32 %v5255, %v5179
      %v5312 = vmax.f32 %v5256, %v5184
      %v5313 = vmax.f32 %v5257, %v5185
      %v5314 = vmax.f32 %v5258, %v5186
      %v5315 = vmax.f32 %v5259, %v5187
      %v5316 = vmax.f32 %v5260, %v5192
      %v5317 = vmax.f32 %v5261, %v5193
      %v5318 = vmax.f32 %v5262, %v5194
      %v5319 = vmax.f32 %v5263, %v5195
      %v5320 = vmax.f32 %v5264, %v5200
      %v5321 = vmax.f32 %v5265, %v5201
      %v5322 = vmax.f32 %v5266, %v5202
      %v5323 = vmax.f32 %v5267, %v5203
      %v5324 = vmax.f32 %v5268, %v5208
      %v5325 = vmax.f32 %v5269, %v5209
      %v5326 = vmax.f32 %v5270, %v5210
      %v5327 = vmax.f32 %v5271, %v5211
      %v5328 = vmax.f32 %v5272, %v5216
      %v5329 = vmax.f32 %v5273, %v5217
      %v5330 = vmax.f32 %v5274, %v5218
      %v5331 = vmax.f32 %v5275, %v5219
      %v5346 = vrot.slane %v5276, 1
      %v5347 = vrot.slane %v5280, 1
      %v5348 = vrot.slane %v5284, 1
      %v5349 = vrot.slane %v5288, 1
      %v5350 = vrot.slane %v5292, 1
      %v5351 = vrot.slane %v5296, 1
      %v5352 = vrot.slane %v5300, 1
      %v5353 = vrot.slane %v5304, 1
      %v5354 = vrot.slane %v5308, 1
      %v5355 = vrot.slane %v5312, 1
      %v5356 = vrot.slane %v5316, 1
      %v5357 = vrot.slane %v5320, 1
      %v5358 = vrot.slane %v5324, 1
      %v5359 = vrot.slane %v5328, 1
      %v5374 = vrot.slane %v5276, 2
      %v5375 = vrot.slane %v5280, 2
      %v5376 = vrot.slane %v5284, 2
      %v5377 = vrot.slane %v5288, 2
      %v5378 = vrot.slane %v5292, 2
      %v5379 = vrot.slane %v5296, 2
      %v5380 = vrot.slane %v5300, 2
      %v5381 = vrot.slane %v5304, 2
      %v5382 = vrot.slane %v5308, 2
      %v5383 = vrot.slane %v5312, 2
      %v5384 = vrot.slane %v5316, 2
      %v5385 = vrot.slane %v5320, 2
      %v5386 = vrot.slane %v5324, 2
      %v5387 = vrot.slane %v5328, 2
      %v5402 = vrot.slane %v5276, 3
      %v5403 = vrot.slane %v5280, 3
      %v5404 = vrot.slane %v5284, 3
      %v5405 = vrot.slane %v5288, 3
      %v5406 = vrot.slane %v5292, 3
      %v5407 = vrot.slane %v5296, 3
      %v5408 = vrot.slane %v5300, 3
      %v5409 = vrot.slane %v5304, 3
      %v5410 = vrot.slane %v5308, 3
      %v5411 = vrot.slane %v5312, 3
      %v5412 = vrot.slane %v5316, 3
      %v5413 = vrot.slane %v5320, 3
      %v5414 = vrot.slane %v5324, 3
      %v5415 = vrot.slane %v5328, 3
      %v5444 = vrot.slane %v5277, 4
      %v5445 = vrot.slane %v5281, 4
      %v5446 = vrot.slane %v5285, 4
      %v5447 = vrot.slane %v5289, 4
      %v5448 = vrot.slane %v5293, 4
      %v5449 = vrot.slane %v5297, 4
      %v5450 = vrot.slane %v5301, 4
      %v5451 = vrot.slane %v5305, 4
      %v5452 = vrot.slane %v5309, 4
      %v5453 = vrot.slane %v5313, 4
      %v5454 = vrot.slane %v5317, 4
      %v5455 = vrot.slane %v5321, 4
      %v5456 = vrot.slane %v5325, 4
      %v5457 = vrot.slane %v5329, 4
      %v5472 = vrot.slane %v5277, 5
      %v5473 = vrot.slane %v5281, 5
      %v5474 = vrot.slane %v5285, 5
      %v5475 = vrot.slane %v5289, 5
      %v5476 = vrot.slane %v5293, 5
      %v5477 = vrot.slane %v5297, 5
      %v5478 = vrot.slane %v5301, 5
      %v5479 = vrot.slane %v5305, 5
      %v5480 = vrot.slane %v5309, 5
      %v5481 = vrot.slane %v5313, 5
      %v5482 = vrot.slane %v5317, 5
      %v5483 = vrot.slane %v5321, 5
      %v5484 = vrot.slane %v5325, 5
      %v5485 = vrot.slane %v5329, 5
      %v5500 = vrot.slane %v5277, 6
      %v5501 = vrot.slane %v5281, 6
      %v5502 = vrot.slane %v5285, 6
      %v5503 = vrot.slane %v5289, 6
      %v5504 = vrot.slane %v5293, 6
      %v5505 = vrot.slane %v5297, 6
      %v5506 = vrot.slane %v5301, 6
      %v5507 = vrot.slane %v5305, 6
      %v5508 = vrot.slane %v5309, 6
      %v5509 = vrot.slane %v5313, 6
      %v5510 = vrot.slane %v5317, 6
      %v5511 = vrot.slane %v5321, 6
      %v5512 = vrot.slane %v5325, 6
      %v5513 = vrot.slane %v5329, 6
      %v5528 = vrot.slane %v5277, 7
      %v5529 = vrot.slane %v5281, 7
      %v5530 = vrot.slane %v5285, 7
      %v5531 = vrot.slane %v5289, 7
      %v5532 = vrot.slane %v5293, 7
      %v5533 = vrot.slane %v5297, 7
      %v5534 = vrot.slane %v5301, 7
      %v5535 = vrot.slane %v5305, 7
      %v5536 = vrot.slane %v5309, 7
      %v5537 = vrot.slane %v5313, 7
      %v5538 = vrot.slane %v5317, 7
      %v5539 = vrot.slane %v5321, 7
      %v5540 = vrot.slane %v5325, 7
      %v5541 = vrot.slane %v5329, 7
      %v5570 = vrot.slane %v5278, 1
      %v5571 = vrot.slane %v5282, 1
      %v5572 = vrot.slane %v5286, 1
      %v5573 = vrot.slane %v5290, 1
      %v5574 = vrot.slane %v5294, 1
      %v5575 = vrot.slane %v5298, 1
      %v5576 = vrot.slane %v5302, 1
      %v5577 = vrot.slane %v5306, 1
      %v5578 = vrot.slane %v5310, 1
      %v5579 = vrot.slane %v5314, 1
      %v5580 = vrot.slane %v5318, 1
      %v5581 = vrot.slane %v5322, 1
      %v5582 = vrot.slane %v5326, 1
      %v5583 = vrot.slane %v5330, 1
      %v5598 = vrot.slane %v5278, 2
      %v5599 = vrot.slane %v5282, 2
      %v5600 = vrot.slane %v5286, 2
      %v5601 = vrot.slane %v5290, 2
      %v5602 = vrot.slane %v5294, 2
      %v5603 = vrot.slane %v5298, 2
      %v5604 = vrot.slane %v5302, 2
      %v5605 = vrot.slane %v5306, 2
      %v5606 = vrot.slane %v5310, 2
      %v5607 = vrot.slane %v5314, 2
      %v5608 = vrot.slane %v5318, 2
      %v5609 = vrot.slane %v5322, 2
      %v5610 = vrot.slane %v5326, 2
      %v5611 = vrot.slane %v5330, 2
      %v5626 = vrot.slane %v5278, 3
      %v5627 = vrot.slane %v5282, 3
      %v5628 = vrot.slane %v5286, 3
      %v5629 = vrot.slane %v5290, 3
      %v5630 = vrot.slane %v5294, 3
      %v5631 = vrot.slane %v5298, 3
      %v5632 = vrot.slane %v5302, 3
      %v5633 = vrot.slane %v5306, 3
      %v5634 = vrot.slane %v5310, 3
      %v5635 = vrot.slane %v5314, 3
      %v5636 = vrot.slane %v5318, 3
      %v5637 = vrot.slane %v5322, 3
      %v5638 = vrot.slane %v5326, 3
      %v5639 = vrot.slane %v5330, 3
      %v5668 = vrot.slane %v5279, 4
      %v5669 = vrot.slane %v5283, 4
      %v5670 = vrot.slane %v5287, 4
      %v5671 = vrot.slane %v5291, 4
      %v5672 = vrot.slane %v5295, 4
      %v5673 = vrot.slane %v5299, 4
      %v5674 = vrot.slane %v5303, 4
      %v5675 = vrot.slane %v5307, 4
      %v5676 = vrot.slane %v5311, 4
      %v5677 = vrot.slane %v5315, 4
      %v5678 = vrot.slane %v5319, 4
      %v5679 = vrot.slane %v5323, 4
      %v5680 = vrot.slane %v5327, 4
      %v5681 = vrot.slane %v5331, 4
      %v5696 = vrot.slane %v5279, 5
      %v5697 = vrot.slane %v5283, 5
      %v5698 = vrot.slane %v5287, 5
      %v5699 = vrot.slane %v5291, 5
      %v5700 = vrot.slane %v5295, 5
      %v5701 = vrot.slane %v5299, 5
      %v5702 = vrot.slane %v5303, 5
      %v5703 = vrot.slane %v5307, 5
      %v5704 = vrot.slane %v5311, 5
      %v5705 = vrot.slane %v5315, 5
      %v5706 = vrot.slane %v5319, 5
      %v5707 = vrot.slane %v5323, 5
      %v5708 = vrot.slane %v5327, 5
      %v5709 = vrot.slane %v5331, 5
      %v5724 = vrot.slane %v5279, 6
      %v5725 = vrot.slane %v5283, 6
      %v5726 = vrot.slane %v5287, 6
      %v5727 = vrot.slane %v5291, 6
      %v5728 = vrot.slane %v5295, 6
      %v5729 = vrot.slane %v5299, 6
      %v5730 = vrot.slane %v5303, 6
      %v5731 = vrot.slane %v5307, 6
      %v5732 = vrot.slane %v5311, 6
      %v5733 = vrot.slane %v5315, 6
      %v5734 = vrot.slane %v5319, 6
      %v5735 = vrot.slane %v5323, 6
      %v5736 = vrot.slane %v5327, 6
      %v5737 = vrot.slane %v5331, 6
      %v5752 = vrot.slane %v5279, 7
      %v5753 = vrot.slane %v5283, 7
      %v5754 = vrot.slane %v5287, 7
      %v5755 = vrot.slane %v5291, 7
      %v5756 = vrot.slane %v5295, 7
      %v5757 = vrot.slane %v5299, 7
      %v5758 = vrot.slane %v5303, 7
      %v5759 = vrot.slane %v5307, 7
      %v5760 = vrot.slane %v5311, 7
      %v5761 = vrot.slane %v5315, 7
      %v5762 = vrot.slane %v5319, 7
      %v5763 = vrot.slane %v5323, 7
      %v5764 = vrot.slane %v5327, 7
      %v5765 = vrot.slane %v5331, 7
      %vm5780 = vcmask 1040384
      %v5781 = vsel %vm5780, %v5276, %v5346
      %v5782 = vsel %vm5780, %v5280, %v5347
      %v5783 = vsel %vm5780, %v5284, %v5348
      %v5784 = vsel %vm5780, %v5288, %v5349
      %v5785 = vsel %vm5780, %v5292, %v5350
      %v5786 = vsel %vm5780, %v5296, %v5351
      %v5787 = vsel %vm5780, %v5300, %v5352
      %v5788 = vsel %vm5780, %v5304, %v5353
      %v5789 = vsel %vm5780, %v5308, %v5354
      %v5790 = vsel %vm5780, %v5312, %v5355
      %v5791 = vsel %vm5780, %v5316, %v5356
      %v5792 = vsel %vm5780, %v5320, %v5357
      %v5793 = vsel %vm5780, %v5324, %v5358
      %v5794 = vsel %vm5780, %v5328, %v5359
      %vm5795 = vcmask 1041408
      %v5796 = vsel %vm5795, %v5781, %v5374
      %v5797 = vsel %vm5795, %v5782, %v5375
      %v5798 = vsel %vm5795, %v5783, %v5376
      %v5799 = vsel %vm5795, %v5784, %v5377
      %v5800 = vsel %vm5795, %v5785, %v5378
      %v5801 = vsel %vm5795, %v5786, %v5379
      %v5802 = vsel %vm5795, %v5787, %v5380
      %v5803 = vsel %vm5795, %v5788, %v5381
      %v5804 = vsel %vm5795, %v5789, %v5382
      %v5805 = vsel %vm5795, %v5790, %v5383
      %v5806 = vsel %vm5795, %v5791, %v5384
      %v5807 = vsel %vm5795, %v5792, %v5385
      %v5808 = vsel %vm5795, %v5793, %v5386
      %v5809 = vsel %vm5795, %v5794, %v5387
      %v5810 = vsel %vm3502, %v5796, %v5402
      %v5811 = vsel %vm3502, %v5797, %v5403
      %v5812 = vsel %vm3502, %v5798, %v5404
      %v5813 = vsel %vm3502, %v5799, %v5405
      %v5814 = vsel %vm3502, %v5800, %v5406
      %v5815 = vsel %vm3502, %v5801, %v5407
      %v5816 = vsel %vm3502, %v5802, %v5408
      %v5817 = vsel %vm3502, %v5803, %v5409
      %v5818 = vsel %vm3502, %v5804, %v5410
      %v5819 = vsel %vm3502, %v5805, %v5411
      %v5820 = vsel %vm3502, %v5806, %v5412
      %v5821 = vsel %vm3502, %v5807, %v5413
      %v5822 = vsel %vm3502, %v5808, %v5414
      %v5823 = vsel %vm3502, %v5809, %v5415
      %vm5824 = vcmask 1043456
      %v5825 = vsel %vm5824, %v5810, %v5444
      %v5826 = vsel %vm5824, %v5811, %v5445
      %v5827 = vsel %vm5824, %v5812, %v5446
      %v5828 = vsel %vm5824, %v5813, %v5447
      %v5829 = vsel %vm5824, %v5814, %v5448
      %v5830 = vsel %vm5824, %v5815, %v5449
      %v5831 = vsel %vm5824, %v5816, %v5450
      %v5832 = vsel %vm5824, %v5817, %v5451
      %v5833 = vsel %vm5824, %v5818, %v5452
      %v5834 = vsel %vm5824, %v5819, %v5453
      %v5835 = vsel %vm5824, %v5820, %v5454
      %v5836 = vsel %vm5824, %v5821, %v5455
      %v5837 = vsel %vm5824, %v5822, %v5456
      %v5838 = vsel %vm5824, %v5823, %v5457
      %vm5839 = vcmask 1044480
      %v5840 = vsel %vm5839, %v5825, %v5472
      %v5841 = vsel %vm5839, %v5826, %v5473
      %v5842 = vsel %vm5839, %v5827, %v5474
      %v5843 = vsel %vm5839, %v5828, %v5475
      %v5844 = vsel %vm5839, %v5829, %v5476
      %v5845 = vsel %vm5839, %v5830, %v5477
      %v5846 = vsel %vm5839, %v5831, %v5478
      %v5847 = vsel %vm5839, %v5832, %v5479
      %v5848 = vsel %vm5839, %v5833, %v5480
      %v5849 = vsel %vm5839, %v5834, %v5481
      %v5850 = vsel %vm5839, %v5835, %v5482
      %v5851 = vsel %vm5839, %v5836, %v5483
      %v5852 = vsel %vm5839, %v5837, %v5484
      %v5853 = vsel %vm5839, %v5838, %v5485
      %v5854 = vsel %vm1136, %v5840, %v5500
      %v5855 = vsel %vm1136, %v5841, %v5501
      %v5856 = vsel %vm1136, %v5842, %v5502
      %v5857 = vsel %vm1136, %v5843, %v5503
      %v5858 = vsel %vm1136, %v5844, %v5504
      %v5859 = vsel %vm1136, %v5845, %v5505
      %v5860 = vsel %vm1136, %v5846, %v5506
      %v5861 = vsel %vm1136, %v5847, %v5507
      %v5862 = vsel %vm1136, %v5848, %v5508
      %v5863 = vsel %vm1136, %v5849, %v5509
      %v5864 = vsel %vm1136, %v5850, %v5510
      %v5865 = vsel %vm1136, %v5851, %v5511
      %v5866 = vsel %vm1136, %v5852, %v5512
      %v5867 = vsel %vm1136, %v5853, %v5513
      %v5868 = vsel %vm489, %v5854, %v5528
      %v5869 = vsel %vm489, %v5855, %v5529
      %v5870 = vsel %vm489, %v5856, %v5530
      %v5871 = vsel %vm489, %v5857, %v5531
      %v5872 = vsel %vm489, %v5858, %v5532
      %v5873 = vsel %vm489, %v5859, %v5533
      %v5874 = vsel %vm489, %v5860, %v5534
      %v5875 = vsel %vm489, %v5861, %v5535
      %v5876 = vsel %vm489, %v5862, %v5536
      %v5877 = vsel %vm489, %v5863, %v5537
      %v5878 = vsel %vm489, %v5864, %v5538
      %v5879 = vsel %vm489, %v5865, %v5539
      %v5880 = vsel %vm489, %v5866, %v5540
      %v5881 = vsel %vm489, %v5867, %v5541
      %v5882 = vsel %vm5780, %v5278, %v5570
      %v5883 = vsel %vm5780, %v5282, %v5571
      %v5884 = vsel %vm5780, %v5286, %v5572
      %v5885 = vsel %vm5780, %v5290, %v5573
      %v5886 = vsel %vm5780, %v5294, %v5574
      %v5887 = vsel %vm5780, %v5298, %v5575
      %v5888 = vsel %vm5780, %v5302, %v5576
      %v5889 = vsel %vm5780, %v5306, %v5577
      %v5890 = vsel %vm5780, %v5310, %v5578
      %v5891 = vsel %vm5780, %v5314, %v5579
      %v5892 = vsel %vm5780, %v5318, %v5580
      %v5893 = vsel %vm5780, %v5322, %v5581
      %v5894 = vsel %vm5780, %v5326, %v5582
      %v5895 = vsel %vm5780, %v5330, %v5583
      %v5896 = vsel %vm5795, %v5882, %v5598
      %v5897 = vsel %vm5795, %v5883, %v5599
      %v5898 = vsel %vm5795, %v5884, %v5600
      %v5899 = vsel %vm5795, %v5885, %v5601
      %v5900 = vsel %vm5795, %v5886, %v5602
      %v5901 = vsel %vm5795, %v5887, %v5603
      %v5902 = vsel %vm5795, %v5888, %v5604
      %v5903 = vsel %vm5795, %v5889, %v5605
      %v5904 = vsel %vm5795, %v5890, %v5606
      %v5905 = vsel %vm5795, %v5891, %v5607
      %v5906 = vsel %vm5795, %v5892, %v5608
      %v5907 = vsel %vm5795, %v5893, %v5609
      %v5908 = vsel %vm5795, %v5894, %v5610
      %v5909 = vsel %vm5795, %v5895, %v5611
      %v5910 = vsel %vm3502, %v5896, %v5626
      %v5911 = vsel %vm3502, %v5897, %v5627
      %v5912 = vsel %vm3502, %v5898, %v5628
      %v5913 = vsel %vm3502, %v5899, %v5629
      %v5914 = vsel %vm3502, %v5900, %v5630
      %v5915 = vsel %vm3502, %v5901, %v5631
      %v5916 = vsel %vm3502, %v5902, %v5632
      %v5917 = vsel %vm3502, %v5903, %v5633
      %v5918 = vsel %vm3502, %v5904, %v5634
      %v5919 = vsel %vm3502, %v5905, %v5635
      %v5920 = vsel %vm3502, %v5906, %v5636
      %v5921 = vsel %vm3502, %v5907, %v5637
      %v5922 = vsel %vm3502, %v5908, %v5638
      %v5923 = vsel %vm3502, %v5909, %v5639
      %v5924 = vsel %vm5824, %v5910, %v5668
      %v5925 = vsel %vm5824, %v5911, %v5669
      %v5926 = vsel %vm5824, %v5912, %v5670
      %v5927 = vsel %vm5824, %v5913, %v5671
      %v5928 = vsel %vm5824, %v5914, %v5672
      %v5929 = vsel %vm5824, %v5915, %v5673
      %v5930 = vsel %vm5824, %v5916, %v5674
      %v5931 = vsel %vm5824, %v5917, %v5675
      %v5932 = vsel %vm5824, %v5918, %v5676
      %v5933 = vsel %vm5824, %v5919, %v5677
      %v5934 = vsel %vm5824, %v5920, %v5678
      %v5935 = vsel %vm5824, %v5921, %v5679
      %v5936 = vsel %vm5824, %v5922, %v5680
      %v5937 = vsel %vm5824, %v5923, %v5681
      %v5938 = vsel %vm5839, %v5924, %v5696
      %v5939 = vsel %vm5839, %v5925, %v5697
      %v5940 = vsel %vm5839, %v5926, %v5698
      %v5941 = vsel %vm5839, %v5927, %v5699
      %v5942 = vsel %vm5839, %v5928, %v5700
      %v5943 = vsel %vm5839, %v5929, %v5701
      %v5944 = vsel %vm5839, %v5930, %v5702
      %v5945 = vsel %vm5839, %v5931, %v5703
      %v5946 = vsel %vm5839, %v5932, %v5704
      %v5947 = vsel %vm5839, %v5933, %v5705
      %v5948 = vsel %vm5839, %v5934, %v5706
      %v5949 = vsel %vm5839, %v5935, %v5707
      %v5950 = vsel %vm5839, %v5936, %v5708
      %v5951 = vsel %vm5839, %v5937, %v5709
      %v5952 = vsel %vm1136, %v5938, %v5724
      %v5953 = vsel %vm1136, %v5939, %v5725
      %v5954 = vsel %vm1136, %v5940, %v5726
      %v5955 = vsel %vm1136, %v5941, %v5727
      %v5956 = vsel %vm1136, %v5942, %v5728
      %v5957 = vsel %vm1136, %v5943, %v5729
      %v5958 = vsel %vm1136, %v5944, %v5730
      %v5959 = vsel %vm1136, %v5945, %v5731
      %v5960 = vsel %vm1136, %v5946, %v5732
      %v5961 = vsel %vm1136, %v5947, %v5733
      %v5962 = vsel %vm1136, %v5948, %v5734
      %v5963 = vsel %vm1136, %v5949, %v5735
      %v5964 = vsel %vm1136, %v5950, %v5736
      %v5965 = vsel %vm1136, %v5951, %v5737
      %v5966 = vsel %vm489, %v5952, %v5752
      %v5967 = vsel %vm489, %v5953, %v5753
      %v5968 = vsel %vm489, %v5954, %v5754
      %v5969 = vsel %vm489, %v5955, %v5755
      %v5970 = vsel %vm489, %v5956, %v5756
      %v5971 = vsel %vm489, %v5957, %v5757
      %v5972 = vsel %vm489, %v5958, %v5758
      %v5973 = vsel %vm489, %v5959, %v5759
      %v5974 = vsel %vm489, %v5960, %v5760
      %v5975 = vsel %vm489, %v5961, %v5761
      %v5976 = vsel %vm489, %v5962, %v5762
      %v5977 = vsel %vm489, %v5963, %v5763
      %v5978 = vsel %vm489, %v5964, %v5764
      %v5979 = vsel %vm489, %v5965, %v5765
      %v5981 = vlaneseq
      %v5982 = vshrl.u32 %v5981, 7
      %v5983 = vsub.s32 0, %v5982
      %v5984 = vrot.slane %v4172, %v5983
      %v5986 = vadd.f32 %v5868, %v5984
      %v5987 = vadd.f32 %v5966, %v5984
      %v5988 = vadd.f32 %v5869, %v5984
      %v5989 = vadd.f32 %v5967, %v5984
      %v5990 = vadd.f32 %v5870, %v5984
      %v5991 = vadd.f32 %v5968, %v5984
      %v5992 = vadd.f32 %v5871, %v5984
      %v5993 = vadd.f32 %v5969, %v5984
      %v5994 = vadd.f32 %v5872, %v5984
      %v5995 = vadd.f32 %v5970, %v5984
      %v5996 = vadd.f32 %v5873, %v5984
      %v5997 = vadd.f32 %v5971, %v5984
      %v5998 = vadd.f32 %v5874, %v5984
      %v5999 = vadd.f32 %v5972, %v5984
      %v6000 = vadd.f32 %v5875, %v5984
      %v6001 = vadd.f32 %v5973, %v5984
      %v6002 = vadd.f32 %v5876, %v5984
      %v6003 = vadd.f32 %v5974, %v5984
      %v6004 = vadd.f32 %v5877, %v5984
      %v6005 = vadd.f32 %v5975, %v5984
      %v6006 = vadd.f32 %v5878, %v5984
      %v6007 = vadd.f32 %v5976, %v5984
      %v6008 = vadd.f32 %v5879, %v5984
      %v6009 = vadd.f32 %v5977, %v5984
      %v6010 = vadd.f32 %v5880, %v5984
      %v6011 = vadd.f32 %v5978, %v5984
      %v6012 = vadd.f32 %v5881, %v5984
      %v6013 = vadd.f32 %v5979, %v5984
      %v6014 = vmax.f32 %v5986, 0.0
      %v6015 = vmax.f32 %v5987, 0.0
      %v6016 = vmax.f32 %v5988, 0.0
      %v6017 = vmax.f32 %v5989, 0.0
      %v6018 = vmax.f32 %v5990, 0.0
      %v6019 = vmax.f32 %v5991, 0.0
      %v6020 = vmax.f32 %v5992, 0.0
      %v6021 = vmax.f32 %v5993, 0.0
      %v6022 = vmax.f32 %v5994, 0.0
      %v6023 = vmax.f32 %v5995, 0.0
      %v6024 = vmax.f32 %v5996, 0.0
      %v6025 = vmax.f32 %v5997, 0.0
      %v6026 = vmax.f32 %v5998, 0.0
      %v6027 = vmax.f32 %v5999, 0.0
      %v6028 = vmax.f32 %v6000, 0.0
      %v6029 = vmax.f32 %v6001, 0.0
      %v6030 = vmax.f32 %v6002, 0.0
      %v6031 = vmax.f32 %v6003, 0.0
      %v6032 = vmax.f32 %v6004, 0.0
      %v6033 = vmax.f32 %v6005, 0.0
      %v6034 = vmax.f32 %v6006, 0.0
      %v6035 = vmax.f32 %v6007, 0.0
      %v6036 = vmax.f32 %v6008, 0.0
      %v6037 = vmax.f32 %v6009, 0.0
      %v6038 = vmax.f32 %v6010, 0.0
      %v6039 = vmax.f32 %v6011, 0.0
      %v6040 = vmax.f32 %v6012, 0.0
      %v6041 = vmax.f32 %v6013, 0.0
      %v6042 = vld [vmem:[%s3] sm:$0xff]
      %v6043 = vld [vmem:[%s3 + $0x8] sm:$0xff]
      %v6044 = vld [vmem:[%s3 + $0x10] sm:$0xff]
      %v6045 = vld [vmem:[%s3 + $0x18] sm:$0xff]
      %v6046 = vld [vmem:[%s3 + $0x20] sm:$0xff]
      %v6047 = vld [vmem:[%s3 + $0x28] sm:$0xff]
      %v6048 = vld [vmem:[%s3 + $0x30] sm:$0xff]
      %v6049 = vld [vmem:[%s3 + $0x38] sm:$0xff]
      %v6050 = vld [vmem:[%s3 + $0x40] sm:$0xff]
      %v6051 = vld [vmem:[%s3 + $0x48] sm:$0xff]
      %v6052 = vld [vmem:[%s3 + $0x50] sm:$0xff]
      %v6053 = vld [vmem:[%s3 + $0x58] sm:$0xff]
      %v6054 = vld [vmem:[%s3 + $0x60] sm:$0xff]
      %v6055 = vld [vmem:[%s3 + $0x68] sm:$0xff]
      %v6056 = vld [vmem:[%s3 + $0x70] sm:$0xff]
      %v6057 = vld [vmem:[%s3 + $0x78] sm:$0xff]
      %v6058 = vld [vmem:[%s3 + $0x80] sm:$0xff]
      %v6059 = vld [vmem:[%s3 + $0x88] sm:$0xff]
      %v6060 = vld [vmem:[%s3 + $0x90] sm:$0xff]
      %v6061 = vld [vmem:[%s3 + $0x98] sm:$0xff]
      %v6062 = vld [vmem:[%s3 + $0xa0] sm:$0xff]
      %v6063 = vld [vmem:[%s3 + $0xa8] sm:$0xff]
      %v6064 = vld [vmem:[%s3 + $0xb0] sm:$0xff]
      %v6065 = vld [vmem:[%s3 + $0xb8] sm:$0xff]
      %v6066 = vld [vmem:[%s3 + $0xc0] sm:$0xff]
      %v6067 = vld [vmem:[%s3 + $0xc8] sm:$0xff]
      %v6068 = vld [vmem:[%s3 + $0xd0] sm:$0xff]
      %v6069 = vld [vmem:[%s3 + $0xd8] sm:$0xff]
      %v6070 = vld [vmem:[%s3 + $0xe0] sm:$0xff]
      %v6071 = vld [vmem:[%s3 + $0xe8] sm:$0xff]
      %v6072 = vld [vmem:[%s3 + $0xf0] sm:$0xff]
      %v6073 = vld [vmem:[%s3 + $0xf8] sm:$0xff]
      %v6074 = vld [vmem:[%s3 + $0x100] sm:$0xff]
      %v6075 = vld [vmem:[%s3 + $0x108] sm:$0xff]
      %v6076 = vld [vmem:[%s3 + $0x110] sm:$0xff]
      %v6077 = vld [vmem:[%s3 + $0x118] sm:$0xff]
      %v6078 = vld [vmem:[%s3 + $0x120] sm:$0xff]
      %v6079 = vld [vmem:[%s3 + $0x128] sm:$0xff]
      %v6080 = vld [vmem:[%s3 + $0x130] sm:$0xff]
      %v6081 = vld [vmem:[%s3 + $0x138] sm:$0xff]
      %v6082 = vld [vmem:[%s3 + $0x140] sm:$0xff]
      %v6083 = vld [vmem:[%s3 + $0x148] sm:$0xff]
      %v6084 = vld [vmem:[%s3 + $0x150] sm:$0xff]
      %v6085 = vld [vmem:[%s3 + $0x158] sm:$0xff]
      %v6086 = vld [vmem:[%s3 + $0x160] sm:$0xff]
      %v6087 = vld [vmem:[%s3 + $0x168] sm:$0xff]
      %v6088 = vld [vmem:[%s3 + $0x170] sm:$0xff]
      %v6089 = vld [vmem:[%s3 + $0x178] sm:$0xff]
      %v6090 = vld [vmem:[%s3 + $0x180] sm:$0xff]
      %v6091 = vld [vmem:[%s3 + $0x188] sm:$0xff]
      %v6092 = vld [vmem:[%s3 + $0x190] sm:$0xff]
      %v6093 = vld [vmem:[%s3 + $0x198] sm:$0xff]
      %v6094 = vld [vmem:[%s3 + $0x1a0] sm:$0xff]
      %v6095 = vld [vmem:[%s3 + $0x1a8] sm:$0xff]
      %v6096 = vld [vmem:[%s3 + $0x1b0] sm:$0xff]
      %v6097 = vld [vmem:[%s3 + $0x1b8] sm:$0xff]
      %v6098 = vld [vmem:[%s3 + $0x1c0] sm:$0xff]
      %v6099 = vld [vmem:[%s3 + $0x1c8] sm:$0xff]
      %v6100 = vld [vmem:[%s3 + $0x1d0] sm:$0xff]
      %v6101 = vld [vmem:[%s3 + $0x1d8] sm:$0xff]
      %v6102 = vld [vmem:[%s3 + $0x1e0] sm:$0xff]
      %v6103 = vld [vmem:[%s3 + $0x1e8] sm:$0xff]
      %v6104 = vld [vmem:[%s3 + $0x1f0] sm:$0xff]
      %v6105 = vld [vmem:[%s3 + $0x1f8] sm:$0xff]
      %v6106 = vld [vmem:[%s3 + $0x200] sm:$0xff]
      %v6107 = vld [vmem:[%s3 + $0x208] sm:$0xff]
      %v6108 = vld [vmem:[%s3 + $0x210] sm:$0xff]
      %v6109 = vld [vmem:[%s3 + $0x218] sm:$0xff]
      %v6110 = vld [vmem:[%s3 + $0x220] sm:$0xff]
      %v6111 = vld [vmem:[%s3 + $0x228] sm:$0xff]
      %v6112 = vld [vmem:[%s3 + $0x230] sm:$0xff]
      %v6113 = vld [vmem:[%s3 + $0x238] sm:$0xff]
      %v6143 = vrot.slane %v6014, 1
      %v6144 = vrot.slane %v6015, 1
      %v6145 = vsel %vm489, %v6143, %v6144
      %v6146 = vrot.slane %v6016, 1
      %v6147 = vsel %vm489, %v6144, %v6146
      %v6148 = vrot.slane %v6017, 1
      %v6149 = vsel %vm489, %v6146, %v6148
      %v6150 = vrot.slane %v6018, 1
      %v6151 = vsel %vm489, %v6148, %v6150
      %v6152 = vrot.slane %v6019, 1
      %v6153 = vsel %vm489, %v6150, %v6152
      %v6154 = vrot.slane %v6020, 1
      %v6155 = vsel %vm489, %v6152, %v6154
      %v6156 = vrot.slane %v6021, 1
      %v6157 = vsel %vm489, %v6154, %v6156
      %v6158 = vrot.slane %v6022, 1
      %v6159 = vsel %vm489, %v6156, %v6158
      %v6160 = vrot.slane %v6023, 1
      %v6161 = vsel %vm489, %v6158, %v6160
      %v6162 = vrot.slane %v6024, 1
      %v6163 = vsel %vm489, %v6160, %v6162
      %v6164 = vrot.slane %v6025, 1
      %v6165 = vsel %vm489, %v6162, %v6164
      %v6166 = vrot.slane %v6026, 1
      %v6167 = vsel %vm489, %v6164, %v6166
      %v6168 = vrot.slane %v6027, 1
      %v6169 = vsel %vm489, %v6166, %v6168
      %v6170 = vrot.slane %v6028, 1
      %v6171 = vsel %vm489, %v6168, %v6170
      %v6172 = vrot.slane %v6029, 1
      %v6173 = vsel %vm489, %v6170, %v6172
      %v6174 = vrot.slane %v6030, 1
      %v6175 = vsel %vm489, %v6172, %v6174
      %v6176 = vrot.slane %v6031, 1
      %v6177 = vsel %vm489, %v6174, %v6176
      %v6178 = vrot.slane %v6032, 1
      %v6179 = vsel %vm489, %v6176, %v6178
      %v6180 = vrot.slane %v6033, 1
      %v6181 = vsel %vm489, %v6178, %v6180
      %v6182 = vrot.slane %v6034, 1
      %v6183 = vsel %vm489, %v6180, %v6182
      %v6184 = vrot.slane %v6035, 1
      %v6185 = vsel %vm489, %v6182, %v6184
      %v6186 = vrot.slane %v6036, 1
      %v6187 = vsel %vm489, %v6184, %v6186
      %v6188 = vrot.slane %v6037, 1
      %v6189 = vsel %vm489, %v6186, %v6188
      %v6190 = vrot.slane %v6038, 1
      %v6191 = vsel %vm489, %v6188, %v6190
      %v6192 = vrot.slane %v6039, 1
      %v6193 = vsel %vm489, %v6190, %v6192
      %v6194 = vrot.slane %v6040, 1
      %v6195 = vsel %vm489, %v6192, %v6194
      %v6196 = vrot.slane %v6041, 1
      %v6197 = vsel %vm489, %v6194, %v6196
      %v6198 = vrot.slane 0.0, 1
      %v6199 = vsel %vm489, %v6196, %v6198
      %v6200 = vsel %vm489, %v6198, %v6198
      %6201 = vrot.lane.b32.xlu0 %v6145, 64
      %v6202 = vpop.permute.xlu0 %6201
      %6203 = vrot.lane.b32.xlu0 %v6147, 64
      %v6204 = vpop.permute.xlu0 %6203
      %6205 = vrot.lane.b32.xlu0 %v6149, 64
      %v6206 = vpop.permute.xlu0 %6205
      %6207 = vrot.lane.b32.xlu0 %v6151, 64
      %v6208 = vpop.permute.xlu0 %6207
      %6209 = vrot.lane.b32.xlu0 %v6153, 64
      %v6210 = vpop.permute.xlu0 %6209
      %6211 = vrot.lane.b32.xlu0 %v6155, 64
      %v6212 = vpop.permute.xlu0 %6211
      %6213 = vrot.lane.b32.xlu0 %v6157, 64
      %v6214 = vpop.permute.xlu0 %6213
      %6215 = vrot.lane.b32.xlu0 %v6159, 64
      %v6216 = vpop.permute.xlu0 %6215
      %6217 = vrot.lane.b32.xlu0 %v6161, 64
      %v6218 = vpop.permute.xlu0 %6217
      %6219 = vrot.lane.b32.xlu0 %v6163, 64
      %v6220 = vpop.permute.xlu0 %6219
      %6221 = vrot.lane.b32.xlu0 %v6165, 64
      %v6222 = vpop.permute.xlu0 %6221
      %6223 = vrot.lane.b32.xlu0 %v6167, 64
      %v6224 = vpop.permute.xlu0 %6223
      %6225 = vrot.lane.b32.xlu0 %v6169, 64
      %v6226 = vpop.permute.xlu0 %6225
      %6227 = vrot.lane.b32.xlu0 %v6171, 64
      %v6228 = vpop.permute.xlu0 %6227
      %6229 = vrot.lane.b32.xlu0 %v6173, 64
      %v6230 = vpop.permute.xlu0 %6229
      %6231 = vrot.lane.b32.xlu0 %v6175, 64
      %v6232 = vpop.permute.xlu0 %6231
      %6233 = vrot.lane.b32.xlu0 %v6177, 64
      %v6234 = vpop.permute.xlu0 %6233
      %6235 = vrot.lane.b32.xlu0 %v6179, 64
      %v6236 = vpop.permute.xlu0 %6235
      %6237 = vrot.lane.b32.xlu0 %v6181, 64
      %v6238 = vpop.permute.xlu0 %6237
      %6239 = vrot.lane.b32.xlu0 %v6183, 64
      %v6240 = vpop.permute.xlu0 %6239
      %6241 = vrot.lane.b32.xlu0 %v6185, 64
      %v6242 = vpop.permute.xlu0 %6241
      %6243 = vrot.lane.b32.xlu0 %v6187, 64
      %v6244 = vpop.permute.xlu0 %6243
      %6245 = vrot.lane.b32.xlu0 %v6189, 64
      %v6246 = vpop.permute.xlu0 %6245
      %6247 = vrot.lane.b32.xlu0 %v6191, 64
      %v6248 = vpop.permute.xlu0 %6247
      %6249 = vrot.lane.b32.xlu0 %v6193, 64
      %v6250 = vpop.permute.xlu0 %6249
      %6251 = vrot.lane.b32.xlu0 %v6195, 64
      %v6252 = vpop.permute.xlu0 %6251
      %6253 = vrot.lane.b32.xlu0 %v6197, 64
      %v6254 = vpop.permute.xlu0 %6253
      %6255 = vrot.lane.b32.xlu0 %v6199, 64
      %v6256 = vpop.permute.xlu0 %6255
      %6257 = vrot.lane.b32.xlu0 %v6200, 64
      %v6258 = vpop.permute.xlu0 %6257
      %v6288 = vrot.slane %v6014, 2
      %v6289 = vrot.slane %v6015, 2
      %v6290 = vsel %vm1136, %v6288, %v6289
      %v6291 = vrot.slane %v6016, 2
      %v6292 = vsel %vm1136, %v6289, %v6291
      %v6293 = vrot.slane %v6017, 2
      %v6294 = vsel %vm1136, %v6291, %v6293
      %v6295 = vrot.slane %v6018, 2
      %v6296 = vsel %vm1136, %v6293, %v6295
      %v6297 = vrot.slane %v6019, 2
      %v6298 = vsel %vm1136, %v6295, %v6297
      %v6299 = vrot.slane %v6020, 2
      %v6300 = vsel %vm1136, %v6297, %v6299
      %v6301 = vrot.slane %v6021, 2
      %v6302 = vsel %vm1136, %v6299, %v6301
      %v6303 = vrot.slane %v6022, 2
      %v6304 = vsel %vm1136, %v6301, %v6303
      %v6305 = vrot.slane %v6023, 2
      %v6306 = vsel %vm1136, %v6303, %v6305
      %v6307 = vrot.slane %v6024, 2
      %v6308 = vsel %vm1136, %v6305, %v6307
      %v6309 = vrot.slane %v6025, 2
      %v6310 = vsel %vm1136, %v6307, %v6309
      %v6311 = vrot.slane %v6026, 2
      %v6312 = vsel %vm1136, %v6309, %v6311
      %v6313 = vrot.slane %v6027, 2
      %v6314 = vsel %vm1136, %v6311, %v6313
      %v6315 = vrot.slane %v6028, 2
      %v6316 = vsel %vm1136, %v6313, %v6315
      %v6317 = vrot.slane %v6029, 2
      %v6318 = vsel %vm1136, %v6315, %v6317
      %v6319 = vrot.slane %v6030, 2
      %v6320 = vsel %vm1136, %v6317, %v6319
      %v6321 = vrot.slane %v6031, 2
      %v6322 = vsel %vm1136, %v6319, %v6321
      %v6323 = vrot.slane %v6032, 2
      %v6324 = vsel %vm1136, %v6321, %v6323
      %v6325 = vrot.slane %v6033, 2
      %v6326 = vsel %vm1136, %v6323, %v6325
      %v6327 = vrot.slane %v6034, 2
      %v6328 = vsel %vm1136, %v6325, %v6327
      %v6329 = vrot.slane %v6035, 2
      %v6330 = vsel %vm1136, %v6327, %v6329
      %v6331 = vrot.slane %v6036, 2
      %v6332 = vsel %vm1136, %v6329, %v6331
      %v6333 = vrot.slane %v6037, 2
      %v6334 = vsel %vm1136, %v6331, %v6333
      %v6335 = vrot.slane %v6038, 2
      %v6336 = vsel %vm1136, %v6333, %v6335
      %v6337 = vrot.slane %v6039, 2
      %v6338 = vsel %vm1136, %v6335, %v6337
      %v6339 = vrot.slane %v6040, 2
      %v6340 = vsel %vm1136, %v6337, %v6339
      %v6341 = vrot.slane %v6041, 2
      %v6342 = vsel %vm1136, %v6339, %v6341
      %v6343 = vrot.slane 0.0, 2
      %v6344 = vsel %vm1136, %v6341, %v6343
      %v6345 = vsel %vm1136, %v6343, %v6343
      %vm6371 = vcmask 523264
      %v6372 = vsel %vm6371, %v6014, %v6202
      %v6373 = vsel %vm6371, %v6015, %v6204
      %v6374 = vsel %vm6371, %v6016, %v6206
      %v6375 = vsel %vm6371, %v6017, %v6208
      %v6376 = vsel %vm6371, %v6018, %v6210
      %v6377 = vsel %vm6371, %v6019, %v6212
      %v6378 = vsel %vm6371, %v6020, %v6214
      %v6379 = vsel %vm6371, %v6021, %v6216
      %v6380 = vsel %vm6371, %v6022, %v6218
      %v6381 = vsel %vm6371, %v6023, %v6220
      %v6382 = vsel %vm6371, %v6024, %v6222
      %v6383 = vsel %vm6371, %v6025, %v6224
      %v6384 = vsel %vm6371, %v6026, %v6226
      %v6385 = vsel %vm6371, %v6027, %v6228
      %v6386 = vsel %vm6371, %v6028, %v6230
      %v6387 = vsel %vm6371, %v6029, %v6232
      %v6388 = vsel %vm6371, %v6030, %v6234
      %v6389 = vsel %vm6371, %v6031, %v6236
      %v6390 = vsel %vm6371, %v6032, %v6238
      %v6391 = vsel %vm6371, %v6033, %v6240
      %v6392 = vsel %vm6371, %v6034, %v6242
      %v6393 = vsel %vm6371, %v6035, %v6244
      %v6394 = vsel %vm6371, %v6036, %v6246
      %v6395 = vsel %vm6371, %v6037, %v6248
      %v6396 = vsel %vm6371, %v6038, %v6250
      %v6397 = vsel %vm6371, %v6039, %v6252
      %v6398 = vsel %vm6371, %v6040, %v6254
      %v6399 = vsel %vm6371, %v6041, %v6256
      %v6400 = vsel %vm6371, 0.0, %v6258
      %6426 = vrot.lane.b32.xlu0 %v6374, 64
      %v6427 = vpop.permute.xlu0 %6426
      %6428 = vrot.lane.b32.xlu0 %v6294, 64
      %v6429 = vpop.permute.xlu0 %6428
      %6430 = vrot.lane.b32.xlu0 %v6375, 64
      %v6431 = vpop.permute.xlu0 %6430
      %6432 = vrot.lane.b32.xlu0 %v6296, 64
      %v6433 = vpop.permute.xlu0 %6432
      %6434 = vrot.lane.b32.xlu0 %v6376, 64
      %v6435 = vpop.permute.xlu0 %6434
      %6436 = vrot.lane.b32.xlu0 %v6298, 64
      %v6437 = vpop.permute.xlu0 %6436
      %6438 = vrot.lane.b32.xlu0 %v6377, 64
      %v6439 = vpop.permute.xlu0 %6438
      %6440 = vrot.lane.b32.xlu0 %v6300, 64
      %v6441 = vpop.permute.xlu0 %6440
      %6442 = vrot.lane.b32.xlu0 %v6378, 64
      %v6443 = vpop.permute.xlu0 %6442
      %6444 = vrot.lane.b32.xlu0 %v6302, 64
      %v6445 = vpop.permute.xlu0 %6444
      %6446 = vrot.lane.b32.xlu0 %v6379, 64
      %v6447 = vpop.permute.xlu0 %6446
      %6448 = vrot.lane.b32.xlu0 %v6304, 64
      %v6449 = vpop.permute.xlu0 %6448
      %6450 = vrot.lane.b32.xlu0 %v6380, 64
      %v6451 = vpop.permute.xlu0 %6450
      %6452 = vrot.lane.b32.xlu0 %v6306, 64
      %v6453 = vpop.permute.xlu0 %6452
      %6454 = vrot.lane.b32.xlu0 %v6381, 64
      %v6455 = vpop.permute.xlu0 %6454
      %6456 = vrot.lane.b32.xlu0 %v6308, 64
      %v6457 = vpop.permute.xlu0 %6456
      %6458 = vrot.lane.b32.xlu0 %v6382, 64
      %v6459 = vpop.permute.xlu0 %6458
      %6460 = vrot.lane.b32.xlu0 %v6310, 64
      %v6461 = vpop.permute.xlu0 %6460
      %6462 = vrot.lane.b32.xlu0 %v6383, 64
      %v6463 = vpop.permute.xlu0 %6462
      %6464 = vrot.lane.b32.xlu0 %v6312, 64
      %v6465 = vpop.permute.xlu0 %6464
      %6466 = vrot.lane.b32.xlu0 %v6384, 64
      %v6467 = vpop.permute.xlu0 %6466
      %6468 = vrot.lane.b32.xlu0 %v6314, 64
      %v6469 = vpop.permute.xlu0 %6468
      %6470 = vrot.lane.b32.xlu0 %v6385, 64
      %v6471 = vpop.permute.xlu0 %6470
      %6472 = vrot.lane.b32.xlu0 %v6316, 64
      %v6473 = vpop.permute.xlu0 %6472
      %6474 = vrot.lane.b32.xlu0 %v6386, 64
      %v6475 = vpop.permute.xlu0 %6474
      %6476 = vrot.lane.b32.xlu0 %v6318, 64
      %v6477 = vpop.permute.xlu0 %6476
      %6478 = vrot.lane.b32.xlu0 %v6387, 64
      %v6479 = vpop.permute.xlu0 %6478
      %6480 = vrot.lane.b32.xlu0 %v6320, 64
      %v6481 = vpop.permute.xlu0 %6480
      %6482 = vrot.lane.b32.xlu0 %v6388, 64
      %v6483 = vpop.permute.xlu0 %6482
      %6484 = vrot.lane.b32.xlu0 %v6322, 64
      %v6485 = vpop.permute.xlu0 %6484
      %6486 = vrot.lane.b32.xlu0 %v6389, 64
      %v6487 = vpop.permute.xlu0 %6486
      %6488 = vrot.lane.b32.xlu0 %v6324, 64
      %v6489 = vpop.permute.xlu0 %6488
      %6490 = vrot.lane.b32.xlu0 %v6390, 64
      %v6491 = vpop.permute.xlu0 %6490
      %6492 = vrot.lane.b32.xlu0 %v6326, 64
      %v6493 = vpop.permute.xlu0 %6492
      %6494 = vrot.lane.b32.xlu0 %v6391, 64
      %v6495 = vpop.permute.xlu0 %6494
      %6496 = vrot.lane.b32.xlu0 %v6328, 64
      %v6497 = vpop.permute.xlu0 %6496
      %6498 = vrot.lane.b32.xlu0 %v6392, 64
      %v6499 = vpop.permute.xlu0 %6498
      %6500 = vrot.lane.b32.xlu0 %v6330, 64
      %v6501 = vpop.permute.xlu0 %6500
      %6502 = vrot.lane.b32.xlu0 %v6393, 64
      %v6503 = vpop.permute.xlu0 %6502
      %6504 = vrot.lane.b32.xlu0 %v6332, 64
      %v6505 = vpop.permute.xlu0 %6504
      %6506 = vrot.lane.b32.xlu0 %v6394, 64
      %v6507 = vpop.permute.xlu0 %6506
      %6508 = vrot.lane.b32.xlu0 %v6334, 64
      %v6509 = vpop.permute.xlu0 %6508
      %6510 = vrot.lane.b32.xlu0 %v6395, 64
      %v6511 = vpop.permute.xlu0 %6510
      %6512 = vrot.lane.b32.xlu0 %v6336, 64
      %v6513 = vpop.permute.xlu0 %6512
      %6514 = vrot.lane.b32.xlu0 %v6396, 64
      %v6515 = vpop.permute.xlu0 %6514
      %6516 = vrot.lane.b32.xlu0 %v6338, 64
      %v6517 = vpop.permute.xlu0 %6516
      %6518 = vrot.lane.b32.xlu0 %v6397, 64
      %v6519 = vpop.permute.xlu0 %6518
      %6520 = vrot.lane.b32.xlu0 %v6340, 64
      %v6521 = vpop.permute.xlu0 %6520
      %6522 = vrot.lane.b32.xlu0 %v6398, 64
      %v6523 = vpop.permute.xlu0 %6522
      %6524 = vrot.lane.b32.xlu0 %v6342, 64
      %v6525 = vpop.permute.xlu0 %6524
      %v6526 = vsel %vm6371, %v6427, %v6429
      %v6527 = vsel %vm6371, %v6431, %v6433
      %v6528 = vsel %vm6371, %v6435, %v6437
      %v6529 = vsel %vm6371, %v6439, %v6441
      %v6530 = vsel %vm6371, %v6443, %v6445
      %v6531 = vsel %vm6371, %v6447, %v6449
      %v6532 = vsel %vm6371, %v6451, %v6453
      %v6533 = vsel %vm6371, %v6455, %v6457
      %v6534 = vsel %vm6371, %v6459, %v6461
      %v6535 = vsel %vm6371, %v6463, %v6465
      %v6536 = vsel %vm6371, %v6467, %v6469
      %v6537 = vsel %vm6371, %v6471, %v6473
      %v6538 = vsel %vm6371, %v6475, %v6477
      %v6539 = vsel %vm6371, %v6479, %v6481
      %v6540 = vsel %vm6371, %v6483, %v6485
      %v6541 = vsel %vm6371, %v6487, %v6489
      %v6542 = vsel %vm6371, %v6491, %v6493
      %v6543 = vsel %vm6371, %v6495, %v6497
      %v6544 = vsel %vm6371, %v6499, %v6501
      %v6545 = vsel %vm6371, %v6503, %v6505
      %v6546 = vsel %vm6371, %v6507, %v6509
      %v6547 = vsel %vm6371, %v6511, %v6513
      %v6548 = vsel %vm6371, %v6515, %v6517
      %v6549 = vsel %vm6371, %v6519, %v6521
      %v6550 = vsel %vm6371, %v6523, %v6525
      %v6601 = vsel %vm6371, %v6290, %v6427
      %v6602 = vsel %vm6371, %v6292, %v6431
      %v6603 = vsel %vm6371, %v6294, %v6435
      %v6604 = vsel %vm6371, %v6296, %v6439
      %v6605 = vsel %vm6371, %v6298, %v6443
      %v6606 = vsel %vm6371, %v6300, %v6447
      %v6607 = vsel %vm6371, %v6302, %v6451
      %v6608 = vsel %vm6371, %v6304, %v6455
      %v6609 = vsel %vm6371, %v6306, %v6459
      %v6610 = vsel %vm6371, %v6308, %v6463
      %v6611 = vsel %vm6371, %v6310, %v6467
      %v6612 = vsel %vm6371, %v6312, %v6471
      %v6613 = vsel %vm6371, %v6314, %v6475
      %v6614 = vsel %vm6371, %v6316, %v6479
      %v6615 = vsel %vm6371, %v6318, %v6483
      %v6616 = vsel %vm6371, %v6320, %v6487
      %v6617 = vsel %vm6371, %v6322, %v6491
      %v6618 = vsel %vm6371, %v6324, %v6495
      %v6619 = vsel %vm6371, %v6326, %v6499
      %v6620 = vsel %vm6371, %v6328, %v6503
      %v6621 = vsel %vm6371, %v6330, %v6507
      %v6622 = vsel %vm6371, %v6332, %v6511
      %v6623 = vsel %vm6371, %v6334, %v6515
      %v6624 = vsel %vm6371, %v6336, %v6519
      %v6625 = vsel %vm6371, %v6338, %v6523
      %v6626 = vsel %vm6371, %v6298, 0
      %v6628 = vsel %vm6371, %v6300, 0
      %v6630 = vsel %vm6371, %v6302, 0
      %v6632 = vsel %vm6371, %v6304, 0
      %v6634 = vsel %vm6371, %v6306, 0
      %v6636 = vsel %vm6371, %v6308, 0
      %v6638 = vsel %vm6371, %v6310, 0
      %v6640 = vsel %vm6371, %v6312, 0
      %v6642 = vsel %vm6371, %v6314, 0
      %v6644 = vsel %vm6371, %v6316, 0
      %v6646 = vsel %vm6371, %v6318, 0
      %v6648 = vsel %vm6371, %v6320, 0
      %v6650 = vsel %vm6371, %v6322, 0
      %v6652 = vsel %vm6371, %v6324, 0
      %v6654 = vsel %vm6371, %v6326, 0
      %v6656 = vsel %vm6371, %v6328, 0
      %v6658 = vsel %vm6371, %v6330, 0
      %v6660 = vsel %vm6371, %v6332, 0
      %v6662 = vsel %vm6371, %v6334, 0
      %v6664 = vsel %vm6371, %v6336, 0
      %v6666 = vsel %vm6371, %v6338, 0
      %v6668 = vsel %vm6371, %v6340, 0
      %v6670 = vsel %vm6371, %v6342, 0
      %v6672 = vsel %vm6371, %v6344, 0
      %v6674 = vsel %vm6371, %v6345, 0
      %6676 = vmatprep.subr.mxu0 0.0
      %6677 = vmatpush1.msra.mxu0 %v6042
      %6678 = vmatprep.subr.mxu0 0.0
      %6679 = vmatpush1.msra.mxu0 %v6043
      %6680 = vmatprep.subr.mxu0 0.0
      %6681 = vmatpush1.msra.mxu0 %v6044
      %6682 = vmatprep.subr.mxu0 0.0
      %6683 = vmatpush1.msra.mxu0 %v6045
      %6684 = vmatprep.subr.mxu0 0.0
      %6685 = vmatpush1.msra.mxu0 %v6046
      %6686 = vmatprep.subr.mxu0 0.0
      %6687 = vmatpush1.msra.mxu0 %v6047
      %6688 = vmatprep.subr.mxu0 0.0
      %6689 = vmatpush1.msra.mxu0 %v6048
      %6690 = vmatprep.subr.mxu0 0.0
      %6691 = vmatpush1.msra.mxu0 %v6049
      %6692 = vmatprep.subr.mxu0 0.0
      %6693 = vmatpush1.msra.mxu0 %v6050
      %6694 = vmatprep.subr.mxu0 0.0
      %6695 = vmatpush1.msra.mxu0 %v6051
      %6696 = vmatprep.subr.mxu0 0.0
      %6697 = vmatpush1.msra.mxu0 %v6052
      %6698 = vmatprep.subr.mxu0 0.0
      %6699 = vmatpush1.msra.mxu0 %v6053
      %6700 = vmatprep.subr.mxu0 0.0
      %6701 = vmatpush1.msra.mxu0 %v6054
      %6702 = vmatprep.subr.mxu0 0.0
      %6703 = vmatpush1.msra.mxu0 %v6055
      %6704 = vmatprep.subr.mxu0 0.0
      %6705 = vmatpush1.msra.mxu0 %v6056
      %6706 = vmatprep.subr.mxu0 0.0
      %6707 = vmatpush1.msra.mxu0 %v6057
      %6708 = vmatprep.subr.mxu0 0.0
      %6709 = vmatpush1.msra.mxu0 %v6058
      %6710 = vmatprep.subr.mxu0 0.0
      %6711 = vmatpush1.msra.mxu0 %v6059
      %6712 = vmatprep.subr.mxu0 0.0
      %6713 = vmatpush1.msra.mxu0 %v6060
      %6714 = vmatprep.subr.mxu0 0.0
      %6715 = vmatpush1.msra.mxu0 %v6061
      %6716 = vmatprep.subr.mxu0 0.0
      %6717 = vmatpush1.msra.mxu0 %v6062
      %6718 = vmatprep.subr.mxu0 0.0
      %6719 = vmatpush1.msra.mxu0 %v6063
      %6720 = vmatprep.subr.mxu0 0.0
      %6721 = vmatpush1.msra.mxu0 %v6064
      %6722 = vmatprep.subr.mxu0 0.0
      %6723 = vmatpush1.msra.mxu0 %v6065
      %6724 = vmatprep.subr.mxu0 0.0
      %6725 = vmatpush1.msra.mxu0 %v6066
      %6726 = vmatprep.subr.mxu0 0.0
      %6727 = vmatpush1.msra.mxu0 %v6067
      %6728 = vmatprep.subr.mxu0 0.0
      %6729 = vmatpush1.msra.mxu0 %v6068
      %6730 = vmatprep.subr.mxu0 0.0
      %6731 = vmatpush1.msra.mxu0 %v6069
      %6732 = vmatprep.subr.mxu0 0.0
      %6733 = vmatpush1.msra.mxu0 %v6070
      %6734 = vmatprep.subr.mxu0 0.0
      %6735 = vmatpush1.msra.mxu0 %v6071
      %6736 = vmatprep.subr.mxu0 0.0
      %6737 = vmatpush1.msra.mxu0 %v6072
      %6738 = vmatprep.subr.mxu0 0.0
      %6739 = vmatpush1.msra.mxu0 %v6073
      %6740 = vmatprep.mubr.f32.mxu0 %v6601
      %6741 = vmatmul.mubr.f32.gmra.mrb[0].mxu0 %v6372
      %v6742 = vpop.f32.mrb[0].mxu0
      %v6743 = vadd.f32 0.0, %v6742
      %v6744 = vpop.f32.mrb[0].mxu0
      %6745 = vmatprep.mubr.f32.mxu0 %v6602
      %6746 = vmatmul.mubr.f32.gmra.mrb[0].mxu0 %v6373
      %v6747 = vpop.f32.mrb[0].mxu0
      %v6748 = vadd.f32 0.0, %v6747
      %v6749 = vpop.f32.mrb[0].mxu0
      %6750 = vmatprep.mubr.f32.mxu0 %v6603
      %6751 = vmatmul.mubr.f32.gmra.mrb[0].mxu0 %v6374
      %v6752 = vpop.f32.mrb[0].mxu0
      %v6753 = vadd.f32 0.0, %v6752
      %v6754 = vpop.f32.mrb[0].mxu0
      %6755 = vmatprep.mubr.f32.mxu0 %v6604
      %6756 = vmatmul.mubr.f32.gmra.mrb[0].mxu0 %v6375
      %v6757 = vpop.f32.mrb[0].mxu0
      %v6758 = vadd.f32 0.0, %v6757
      %v6759 = vpop.f32.mrb[0].mxu0
      %6760 = vmatprep.mubr.f32.mxu0 %v6605
      %6761 = vmatmul.mubr.f32.gmra.mrb[0].mxu0 %v6376
      %v6762 = vpop.f32.mrb[0].mxu0
      %v6763 = vadd.f32 0.0, %v6762
      %v6764 = vpop.f32.mrb[0].mxu0
      %6765 = vmatprep.mubr.f32.mxu0 %v6606
      %6766 = vmatmul.mubr.f32.gmra.mrb[0].mxu0 %v6377
      %v6767 = vpop.f32.mrb[0].mxu0
      %v6768 = vadd.f32 0.0, %v6767
      %v6769 = vpop.f32.mrb[0].mxu0
      %6770 = vmatprep.mubr.f32.mxu0 %v6607
      %6771 = vmatmul.mubr.f32.gmra.mrb[0].mxu0 %v6378
      %v6772 = vpop.f32.mrb[0].mxu0
      %v6773 = vadd.f32 0.0, %v6772
      %v6774 = vpop.f32.mrb[0].mxu0
      %6775 = vmatprep.mubr.f32.mxu0 %v6608
      %6776 = vmatmul.mubr.f32.gmra.mrb[0].mxu0 %v6379
      %v6777 = vpop.f32.mrb[0].mxu0
      %v6778 = vadd.f32 0.0, %v6777
      %v6779 = vpop.f32.mrb[0].mxu0
      %6780 = vmatprep.mubr.f32.mxu0 %v6609
      %6781 = vmatmul.mubr.f32.gmra.mrb[0].mxu0 %v6380
      %v6782 = vpop.f32.mrb[0].mxu0
      %v6783 = vadd.f32 0.0, %v6782
      %v6784 = vpop.f32.mrb[0].mxu0
      %6785 = vmatprep.mubr.f32.mxu0 %v6610
      %6786 = vmatmul.mubr.f32.gmra.mrb[0].mxu0 %v6381
      %v6787 = vpop.f32.mrb[0].mxu0
      %v6788 = vadd.f32 0.0, %v6787
      %v6789 = vpop.f32.mrb[0].mxu0
      %6790 = vmatprep.mubr.f32.mxu0 %v6611
      %6791 = vmatmul.mubr.f32.gmra.mrb[0].mxu0 %v6382
      %v6792 = vpop.f32.mrb[0].mxu0
      %v6793 = vadd.f32 0.0, %v6792
      %v6794 = vpop.f32.mrb[0].mxu0
      %6795 = vmatprep.mubr.f32.mxu0 %v6612
      %6796 = vmatmul.mubr.f32.gmra.mrb[0].mxu0 %v6383
      %v6797 = vpop.f32.mrb[0].mxu0
      %v6798 = vadd.f32 0.0, %v6797
      %v6799 = vpop.f32.mrb[0].mxu0
      %6800 = vmatprep.mubr.f32.mxu0 %v6613
      %6801 = vmatmul.mubr.f32.gmra.mrb[0].mxu0 %v6384
      %v6802 = vpop.f32.mrb[0].mxu0
      %v6803 = vadd.f32 0.0, %v6802
      %v6804 = vpop.f32.mrb[0].mxu0
      %6805 = vmatprep.mubr.f32.mxu0 %v6614
      %6806 = vmatmul.mubr.f32.gmra.mrb[0].mxu0 %v6385
      %v6807 = vpop.f32.mrb[0].mxu0
      %v6808 = vadd.f32 0.0, %v6807
      %v6809 = vpop.f32.mrb[0].mxu0
      %6810 = vmatprep.mubr.f32.mxu0 %v6615
      %6811 = vmatmul.mubr.f32.gmra.mrb[0].mxu0 %v6386
      %v6812 = vpop.f32.mrb[0].mxu0
      %v6813 = vadd.f32 0.0, %v6812
      %v6814 = vpop.f32.mrb[0].mxu0
      %6815 = vmatprep.mubr.f32.mxu0 %v6616
      %6816 = vmatmul.mubr.f32.gmra.mrb[0].mxu0 %v6387
      %v6817 = vpop.f32.mrb[0].mxu0
      %v6818 = vadd.f32 0.0, %v6817
      %v6819 = vpop.f32.mrb[0].mxu0
      %6820 = vmatprep.mubr.f32.mxu0 %v6617
      %6821 = vmatmul.mubr.f32.gmra.mrb[0].mxu0 %v6388
      %v6822 = vpop.f32.mrb[0].mxu0
      %v6823 = vadd.f32 0.0, %v6822
      %v6824 = vpop.f32.mrb[0].mxu0
      %6825 = vmatprep.mubr.f32.mxu0 %v6618
      %6826 = vmatmul.mubr.f32.gmra.mrb[0].mxu0 %v6389
      %v6827 = vpop.f32.mrb[0].mxu0
      %v6828 = vadd.f32 0.0, %v6827
      %v6829 = vpop.f32.mrb[0].mxu0
      %6830 = vmatprep.mubr.f32.mxu0 %v6619
      %6831 = vmatmul.mubr.f32.gmra.mrb[0].mxu0 %v6390
      %v6832 = vpop.f32.mrb[0].mxu0
      %v6833 = vadd.f32 0.0, %v6832
      %v6834 = vpop.f32.mrb[0].mxu0
      %6835 = vmatprep.mubr.f32.mxu0 %v6620
      %6836 = vmatmul.mubr.f32.gmra.mrb[0].mxu0 %v6391
      %v6837 = vpop.f32.mrb[0].mxu0
      %v6838 = vadd.f32 0.0, %v6837
      %v6839 = vpop.f32.mrb[0].mxu0
      %6840 = vmatprep.mubr.f32.mxu0 %v6621
      %6841 = vmatmul.mubr.f32.gmra.mrb[0].mxu0 %v6392
      %v6842 = vpop.f32.mrb[0].mxu0
      %v6843 = vadd.f32 0.0, %v6842
      %v6844 = vpop.f32.mrb[0].mxu0
      %6845 = vmatprep.mubr.f32.mxu0 %v6622
      %6846 = vmatmul.mubr.f32.gmra.mrb[0].mxu0 %v6393
      %v6847 = vpop.f32.mrb[0].mxu0
      %v6848 = vadd.f32 0.0, %v6847
      %v6849 = vpop.f32.mrb[0].mxu0
      %6850 = vmatprep.mubr.f32.mxu0 %v6623
      %6851 = vmatmul.mubr.f32.gmra.mrb[0].mxu0 %v6394
      %v6852 = vpop.f32.mrb[0].mxu0
      %v6853 = vadd.f32 0.0, %v6852
      %v6854 = vpop.f32.mrb[0].mxu0
      %6855 = vmatprep.mubr.f32.mxu0 %v6624
      %6856 = vmatmul.mubr.f32.gmra.mrb[0].mxu0 %v6395
      %v6857 = vpop.f32.mrb[0].mxu0
      %v6858 = vpop.f32.mrb[0].mxu0
      %6859 = vmatprep.mubr.f32.mxu0 %v6625
      %6860 = vmatmul.mubr.f32.gmra.mrb[0].mxu0 %v6396
      %v6861 = vpop.f32.mrb[0].mxu0
      %v6862 = vpop.f32.mrb[0].mxu0
      %6863 = vdwg.mxu0
      %6864 = vmatprep.subr.mxu0 0.0
      %6865 = vmatpush1.msra.mxu0 %v6074
      %6866 = vmatprep.subr.mxu0 0.0
      %6867 = vmatpush1.msra.mxu0 %v6075
      %6868 = vmatprep.subr.mxu0 0.0
      %6869 = vmatpush1.msra.mxu0 %v6076
      %6870 = vmatprep.subr.mxu0 0.0
      %6871 = vmatpush1.msra.mxu0 %v6077
      %6872 = vmatprep.subr.mxu0 0.0
      %6873 = vmatpush1.msra.mxu0 %v6078
      %6874 = vmatprep.subr.mxu0 0.0
      %6875 = vmatpush1.msra.mxu0 %v6079
      %6876 = vmatprep.subr.mxu0 0.0
      %6877 = vmatpush1.msra.mxu0 %v6080
      %6878 = vmatprep.subr.mxu0 0.0
      %6879 = vmatpush1.msra.mxu0 %v6081
      %6880 = vmatprep.subr.mxu0 0.0
      %6881 = vmatpush1.msra.mxu0 %v6082
      %6882 = vmatprep.subr.mxu0 0.0
      %6883 = vmatpush1.msra.mxu0 %v6083
      %6884 = vmatprep.subr.mxu0 0.0
      %6885 = vmatpush1.msra.mxu0 %v6084
      %6886 = vmatprep.subr.mxu0 0.0
      %6887 = vmatpush1.msra.mxu0 %v6085
      %6888 = vmatprep.subr.mxu0 0.0
      %6889 = vmatpush1.msra.mxu0 %v6086
      %6890 = vmatprep.subr.mxu0 0.0
      %6891 = vmatpush1.msra.mxu0 %v6087
      %6892 = vmatprep.subr.mxu0 0.0
      %6893 = vmatpush1.msra.mxu0 %v6088
      %6894 = vmatprep.subr.mxu0 0.0
      %6895 = vmatpush1.msra.mxu0 %v6089
      %6896 = vmatprep.subr.mxu0 0.0
      %6897 = vmatpush1.msra.mxu0 %v6090
      %6898 = vmatprep.subr.mxu0 0.0
      %6899 = vmatpush1.msra.mxu0 %v6091
      %6900 = vmatprep.subr.mxu0 0.0
      %6901 = vmatpush1.msra.mxu0 %v6092
      %6902 = vmatprep.subr.mxu0 0.0
      %6903 = vmatpush1.msra.mxu0 %v6093
      %6904 = vmatprep.subr.mxu0 0.0
      %6905 = vmatpush1.msra.mxu0 %v6094
      %6906 = vmatprep.subr.mxu0 0.0
      %6907 = vmatpush1.msra.mxu0 %v6095
      %6908 = vmatprep.subr.mxu0 0.0
      %6909 = vmatpush1.msra.mxu0 %v6096
      %6910 = vmatprep.subr.mxu0 0.0
      %6911 = vmatpush1.msra.mxu0 %v6097
      %6912 = vmatprep.subr.mxu0 0.0
      %6913 = vmatpush1.msra.mxu0 %v6098
      %6914 = vmatprep.subr.mxu0 0.0
      %6915 = vmatpush1.msra.mxu0 %v6099
      %6916 = vmatprep.subr.mxu0 0.0
      %6917 = vmatpush1.msra.mxu0 %v6100
      %6918 = vmatprep.subr.mxu0 0.0
      %6919 = vmatpush1.msra.mxu0 %v6101
      %6920 = vmatprep.subr.mxu0 0.0
      %6921 = vmatpush1.msra.mxu0 %v6102
      %6922 = vmatprep.subr.mxu0 0.0
      %6923 = vmatpush1.msra.mxu0 %v6103
      %6924 = vmatprep.subr.mxu0 0.0
      %6925 = vmatpush1.msra.mxu0 %v6104
      %6926 = vmatprep.subr.mxu0 0.0
      %6927 = vmatpush1.msra.mxu0 %v6105
      %6928 = vmatprep.mubr.f32.mxu0 %v6376
      %6929 = vmatmul.mubr.f32.gmra.mrb[0].mxu0 %v6526
      %v6930 = vpop.f32.mrb[0].mxu0
      %v6931 = vadd.f32 %v6743, %v6930
      %v6932 = vpop.f32.mrb[0].mxu0
      %6933 = vmatprep.mubr.f32.mxu0 %v6377
      %6934 = vmatmul.mubr.f32.gmra.mrb[0].mxu0 %v6527
      %v6935 = vpop.f32.mrb[0].mxu0
      %v6936 = vadd.f32 %v6748, %v6935
      %v6937 = vpop.f32.mrb[0].mxu0
      %6938 = vmatprep.mubr.f32.mxu0 %v6378
      %6939 = vmatmul.mubr.f32.gmra.mrb[0].mxu0 %v6528
      %v6940 = vpop.f32.mrb[0].mxu0
      %v6941 = vadd.f32 %v6753, %v6940
      %v6942 = vpop.f32.mrb[0].mxu0
      %6943 = vmatprep.mubr.f32.mxu0 %v6379
      %6944 = vmatmul.mubr.f32.gmra.mrb[0].mxu0 %v6529
      %v6945 = vpop.f32.mrb[0].mxu0
      %v6946 = vadd.f32 %v6758, %v6945
      %v6947 = vpop.f32.mrb[0].mxu0
      %6948 = vmatprep.mubr.f32.mxu0 %v6380
      %6949 = vmatmul.mubr.f32.gmra.mrb[0].mxu0 %v6530
      %v6950 = vpop.f32.mrb[0].mxu0
      %v6951 = vadd.f32 %v6763, %v6950
      %v6952 = vpop.f32.mrb[0].mxu0
      %6953 = vmatprep.mubr.f32.mxu0 %v6381
      %6954 = vmatmul.mubr.f32.gmra.mrb[0].mxu0 %v6531
      %v6955 = vpop.f32.mrb[0].mxu0
      %v6956 = vadd.f32 %v6768, %v6955
      %v6957 = vpop.f32.mrb[0].mxu0
      %6958 = vmatprep.mubr.f32.mxu0 %v6382
      %6959 = vmatmul.mubr.f32.gmra.mrb[0].mxu0 %v6532
      %v6960 = vpop.f32.mrb[0].mxu0
      %v6961 = vadd.f32 %v6773, %v6960
      %v6962 = vpop.f32.mrb[0].mxu0
      %6963 = vmatprep.mubr.f32.mxu0 %v6383
      %6964 = vmatmul.mubr.f32.gmra.mrb[0].mxu0 %v6533
      %v6965 = vpop.f32.mrb[0].mxu0
      %v6966 = vadd.f32 %v6778, %v6965
      %v6967 = vpop.f32.mrb[0].mxu0
      %6968 = vmatprep.mubr.f32.mxu0 %v6384
      %6969 = vmatmul.mubr.f32.gmra.mrb[0].mxu0 %v6534
      %v6970 = vpop.f32.mrb[0].mxu0
      %v6971 = vadd.f32 %v6783, %v6970
      %v6972 = vpop.f32.mrb[0].mxu0
      %6973 = vmatprep.mubr.f32.mxu0 %v6385
      %6974 = vmatmul.mubr.f32.gmra.mrb[0].mxu0 %v6535
      %v6975 = vpop.f32.mrb[0].mxu0
      %v6976 = vadd.f32 %v6788, %v6975
      %v6977 = vpop.f32.mrb[0].mxu0
      %6978 = vmatprep.mubr.f32.mxu0 %v6386
      %6979 = vmatmul.mubr.f32.gmra.mrb[0].mxu0 %v6536
      %v6980 = vpop.f32.mrb[0].mxu0
      %v6981 = vadd.f32 %v6793, %v6980
      %v6982 = vpop.f32.mrb[0].mxu0
      %6983 = vmatprep.mubr.f32.mxu0 %v6387
      %6984 = vmatmul.mubr.f32.gmra.mrb[0].mxu0 %v6537
      %v6985 = vpop.f32.mrb[0].mxu0
      %v6986 = vadd.f32 %v6798, %v6985
      %v6987 = vpop.f32.mrb[0].mxu0
      %6988 = vmatprep.mubr.f32.mxu0 %v6388
      %6989 = vmatmul.mubr.f32.gmra.mrb[0].mxu0 %v6538
      %v6990 = vpop.f32.mrb[0].mxu0
      %v6991 = vadd.f32 %v6803, %v6990
      %v6992 = vpop.f32.mrb[0].mxu0
      %6993 = vmatprep.mubr.f32.mxu0 %v6389
      %6994 = vmatmul.mubr.f32.gmra.mrb[0].mxu0 %v6539
      %v6995 = vpop.f32.mrb[0].mxu0
      %v6996 = vadd.f32 %v6808, %v6995
      %v6997 = vpop.f32.mrb[0].mxu0
      %6998 = vmatprep.mubr.f32.mxu0 %v6390
      %6999 = vmatmul.mubr.f32.gmra.mrb[0].mxu0 %v6540
      %v7000 = vpop.f32.mrb[0].mxu0
      %v7001 = vadd.f32 %v6813, %v7000
      %v7002 = vpop.f32.mrb[0].mxu0
      %7003 = vmatprep.mubr.f32.mxu0 %v6391
      %7004 = vmatmul.mubr.f32.gmra.mrb[0].mxu0 %v6541
      %v7005 = vpop.f32.mrb[0].mxu0
      %v7006 = vadd.f32 %v6818, %v7005
      %v7007 = vpop.f32.mrb[0].mxu0
      %7008 = vmatprep.mubr.f32.mxu0 %v6392
      %7009 = vmatmul.mubr.f32.gmra.mrb[0].mxu0 %v6542
      %v7010 = vpop.f32.mrb[0].mxu0
      %v7011 = vadd.f32 %v6823, %v7010
      %v7012 = vpop.f32.mrb[0].mxu0
      %7013 = vmatprep.mubr.f32.mxu0 %v6393
      %7014 = vmatmul.mubr.f32.gmra.mrb[0].mxu0 %v6543
      %v7015 = vpop.f32.mrb[0].mxu0
      %v7016 = vadd.f32 %v6828, %v7015
      %v7017 = vpop.f32.mrb[0].mxu0
      %7018 = vmatprep.mubr.f32.mxu0 %v6394
      %7019 = vmatmul.mubr.f32.gmra.mrb[0].mxu0 %v6544
      %v7020 = vpop.f32.mrb[0].mxu0
      %v7021 = vadd.f32 %v6833, %v7020
      %v7022 = vpop.f32.mrb[0].mxu0
      %7023 = vmatprep.mubr.f32.mxu0 %v6395
      %7024 = vmatmul.mubr.f32.gmra.mrb[0].mxu0 %v6545
      %v7025 = vpop.f32.mrb[0].mxu0
      %v7026 = vadd.f32 %v6838, %v7025
      %v7027 = vpop.f32.mrb[0].mxu0
      %7028 = vmatprep.mubr.f32.mxu0 %v6396
      %7029 = vmatmul.mubr.f32.gmra.mrb[0].mxu0 %v6546
      %v7030 = vpop.f32.mrb[0].mxu0
      %v7031 = vadd.f32 %v6843, %v7030
      %v7032 = vpop.f32.mrb[0].mxu0
      %7033 = vmatprep.mubr.f32.mxu0 %v6397
      %7034 = vmatmul.mubr.f32.gmra.mrb[0].mxu0 %v6547
      %v7035 = vpop.f32.mrb[0].mxu0
      %v7036 = vadd.f32 %v6848, %v7035
      %v7037 = vpop.f32.mrb[0].mxu0
      %7038 = vmatprep.mubr.f32.mxu0 %v6398
      %7039 = vmatmul.mubr.f32.gmra.mrb[0].mxu0 %v6548
      %v7040 = vpop.f32.mrb[0].mxu0
      %v7041 = vadd.f32 %v6853, %v7040
      %v7042 = vpop.f32.mrb[0].mxu0
      %7043 = vmatprep.mubr.f32.mxu0 %v6399
      %7044 = vmatmul.mubr.f32.gmra.mrb[0].mxu0 %v6549
      %v7045 = vpop.f32.mrb[0].mxu0
      %v7046 = vpop.f32.mrb[0].mxu0
      %7047 = vmatprep.mubr.f32.mxu0 %v6400
      %7048 = vmatmul.mubr.f32.gmra.mrb[0].mxu0 %v6550
      %v7049 = vpop.f32.mrb[0].mxu0
      %v7050 = vpop.f32.mrb[0].mxu0
      %7051 = vdwg.mxu0
      %7052 = vmatprep.subr.mxu0 0.0
      %7053 = vmatpush1.msra.mxu0 %v6106
      %7054 = vmatprep.subr.mxu0 0.0
      %7055 = vmatpush1.msra.mxu0 %v6107
      %7056 = vmatprep.subr.mxu0 0.0
      %7057 = vmatpush1.msra.mxu0 %v6108
      %7058 = vmatprep.subr.mxu0 0.0
      %7059 = vmatpush1.msra.mxu0 %v6109
      %7060 = vmatprep.subr.mxu0 0.0
      %7061 = vmatpush1.msra.mxu0 %v6110
      %7062 = vmatprep.subr.mxu0 0.0
      %7063 = vmatpush1.msra.mxu0 %v6111
      %7064 = vmatprep.subr.mxu0 0.0
      %7065 = vmatpush1.msra.mxu0 %v6112
      %7066 = vmatprep.subr.mxu0 0.0
      %7067 = vmatpush1.msra.mxu0 %v6113
      %7068 = vmatprep.subr.mxu0 0.0
      %7069 = vmatpush1.msra.mxu0 0.0
      %7070 = vmatprep.subr.mxu0 0.0
      %7071 = vmatpush1.msra.mxu0 0.0
      %7072 = vmatprep.subr.mxu0 0.0
      %7073 = vmatpush1.msra.mxu0 0.0
      %7074 = vmatprep.subr.mxu0 0.0
      %7075 = vmatpush1.msra.mxu0 0.0
      %7076 = vmatprep.subr.mxu0 0.0
      %7077 = vmatpush1.msra.mxu0 0.0
      %7078 = vmatprep.subr.mxu0 0.0
      %7079 = vmatpush1.msra.mxu0 0.0
      %7080 = vmatprep.subr.mxu0 0.0
      %7081 = vmatpush1.msra.mxu0 0.0
      %7082 = vmatprep.subr.mxu0 0.0
      %7083 = vmatpush1.msra.mxu0 0.0
      %7084 = vmatprep.subr.mxu0 0.0
      %7085 = vmatpush1.msra.mxu0 0.0
      %7086 = vmatprep.subr.mxu0 0.0
      %7087 = vmatpush1.msra.mxu0 0.0
      %7088 = vmatprep.subr.mxu0 0.0
      %7089 = vmatpush1.msra.mxu0 0.0
      %7090 = vmatprep.subr.mxu0 0.0
      %7091 = vmatpush1.msra.mxu0 0.0
      %7092 = vmatprep.subr.mxu0 0.0
      %7093 = vmatpush1.msra.mxu0 0.0
      %7094 = vmatprep.subr.mxu0 0.0
      %7095 = vmatpush1.msra.mxu0 0.0
      %7096 = vmatprep.subr.mxu0 0.0
      %7097 = vmatpush1.msra.mxu0 0.0
      %7098 = vmatprep.subr.mxu0 0.0
      %7099 = vmatpush1.msra.mxu0 0.0
      %7100 = vmatprep.subr.mxu0 0.0
      %7101 = vmatpush1.msra.mxu0 0.0
      %7102 = vmatprep.subr.mxu0 0.0
      %7103 = vmatpush1.msra.mxu0 0.0
      %7104 = vmatprep.subr.mxu0 0.0
      %7105 = vmatpush1.msra.mxu0 0.0
      %7106 = vmatprep.subr.mxu0 0.0
      %7107 = vmatpush1.msra.mxu0 0.0
      %7108 = vmatprep.subr.mxu0 0.0
      %7109 = vmatpush1.msra.mxu0 0.0
      %7110 = vmatprep.subr.mxu0 0.0
      %7111 = vmatpush1.msra.mxu0 0.0
      %7112 = vmatprep.subr.mxu0 0.0
      %7113 = vmatpush1.msra.mxu0 0.0
      %7114 = vmatprep.subr.mxu0 0.0
      %7115 = vmatpush1.msra.mxu0 0.0
      %7116 = vmatprep.mubr.f32.mxu0 0.0
      %7117 = vmatmul.mubr.f32.gmra.mrb[0].mxu0 %v6626
      %v7118 = vpop.f32.mrb[0].mxu0
      %v7119 = vadd.f32 %v6931, %v7118
      %v7120 = vpop.f32.mrb[0].mxu0
      %7121 = vmatprep.mubr.f32.mxu0 0.0
      %7122 = vmatmul.mubr.f32.gmra.mrb[0].mxu0 %v6628
      %v7123 = vpop.f32.mrb[0].mxu0
      %v7124 = vadd.f32 %v6936, %v7123
      %v7125 = vpop.f32.mrb[0].mxu0
      %7126 = vmatprep.mubr.f32.mxu0 0.0
      %7127 = vmatmul.mubr.f32.gmra.mrb[0].mxu0 %v6630
      %v7128 = vpop.f32.mrb[0].mxu0
      %v7129 = vadd.f32 %v6941, %v7128
      %v7130 = vpop.f32.mrb[0].mxu0
      %7131 = vmatprep.mubr.f32.mxu0 0.0
      %7132 = vmatmul.mubr.f32.gmra.mrb[0].mxu0 %v6632
      %v7133 = vpop.f32.mrb[0].mxu0
      %v7134 = vadd.f32 %v6946, %v7133
      %v7135 = vpop.f32.mrb[0].mxu0
      %7136 = vmatprep.mubr.f32.mxu0 0.0
      %7137 = vmatmul.mubr.f32.gmra.mrb[0].mxu0 %v6634
      %v7138 = vpop.f32.mrb[0].mxu0
      %v7139 = vadd.f32 %v6951, %v7138
      %v7140 = vpop.f32.mrb[0].mxu0
      %7141 = vmatprep.mubr.f32.mxu0 0.0
      %7142 = vmatmul.mubr.f32.gmra.mrb[0].mxu0 %v6636
      %v7143 = vpop.f32.mrb[0].mxu0
      %v7144 = vadd.f32 %v6956, %v7143
      %v7145 = vpop.f32.mrb[0].mxu0
      %7146 = vmatprep.mubr.f32.mxu0 0.0
      %7147 = vmatmul.mubr.f32.gmra.mrb[0].mxu0 %v6638
      %v7148 = vpop.f32.mrb[0].mxu0
      %v7149 = vadd.f32 %v6961, %v7148
      %v7150 = vpop.f32.mrb[0].mxu0
      %7151 = vmatprep.mubr.f32.mxu0 0.0
      %7152 = vmatmul.mubr.f32.gmra.mrb[0].mxu0 %v6640
      %v7153 = vpop.f32.mrb[0].mxu0
      %v7154 = vadd.f32 %v6966, %v7153
      %v7155 = vpop.f32.mrb[0].mxu0
      %7156 = vmatprep.mubr.f32.mxu0 0.0
      %7157 = vmatmul.mubr.f32.gmra.mrb[0].mxu0 %v6642
      %v7158 = vpop.f32.mrb[0].mxu0
      %v7159 = vadd.f32 %v6971, %v7158
      %v7160 = vpop.f32.mrb[0].mxu0
      %7161 = vmatprep.mubr.f32.mxu0 0.0
      %7162 = vmatmul.mubr.f32.gmra.mrb[0].mxu0 %v6644
      %v7163 = vpop.f32.mrb[0].mxu0
      %v7164 = vadd.f32 %v6976, %v7163
      %v7165 = vpop.f32.mrb[0].mxu0
      %7166 = vmatprep.mubr.f32.mxu0 0.0
      %7167 = vmatmul.mubr.f32.gmra.mrb[0].mxu0 %v6646
      %v7168 = vpop.f32.mrb[0].mxu0
      %v7169 = vadd.f32 %v6981, %v7168
      %v7170 = vpop.f32.mrb[0].mxu0
      %7171 = vmatprep.mubr.f32.mxu0 0.0
      %7172 = vmatmul.mubr.f32.gmra.mrb[0].mxu0 %v6648
      %v7173 = vpop.f32.mrb[0].mxu0
      %v7174 = vadd.f32 %v6986, %v7173
      %v7175 = vpop.f32.mrb[0].mxu0
      %7176 = vmatprep.mubr.f32.mxu0 0.0
      %7177 = vmatmul.mubr.f32.gmra.mrb[0].mxu0 %v6650
      %v7178 = vpop.f32.mrb[0].mxu0
      %v7179 = vadd.f32 %v6991, %v7178
      %v7180 = vpop.f32.mrb[0].mxu0
      %7181 = vmatprep.mubr.f32.mxu0 0.0
      %7182 = vmatmul.mubr.f32.gmra.mrb[0].mxu0 %v6652
      %v7183 = vpop.f32.mrb[0].mxu0
      %v7184 = vadd.f32 %v6996, %v7183
      %v7185 = vpop.f32.mrb[0].mxu0
      %7186 = vmatprep.mubr.f32.mxu0 0.0
      %7187 = vmatmul.mubr.f32.gmra.mrb[0].mxu0 %v6654
      %v7188 = vpop.f32.mrb[0].mxu0
      %v7189 = vadd.f32 %v7001, %v7188
      %v7190 = vpop.f32.mrb[0].mxu0
      %7191 = vmatprep.mubr.f32.mxu0 0.0
      %7192 = vmatmul.mubr.f32.gmra.mrb[0].mxu0 %v6656
      %v7193 = vpop.f32.mrb[0].mxu0
      %v7194 = vadd.f32 %v7006, %v7193
      %v7195 = vpop.f32.mrb[0].mxu0
      %7196 = vmatprep.mubr.f32.mxu0 0.0
      %7197 = vmatmul.mubr.f32.gmra.mrb[0].mxu0 %v6658
      %v7198 = vpop.f32.mrb[0].mxu0
      %v7199 = vadd.f32 %v7011, %v7198
      %v7200 = vpop.f32.mrb[0].mxu0
      %7201 = vmatprep.mubr.f32.mxu0 0.0
      %7202 = vmatmul.mubr.f32.gmra.mrb[0].mxu0 %v6660
      %v7203 = vpop.f32.mrb[0].mxu0
      %v7204 = vadd.f32 %v7016, %v7203
      %v7205 = vpop.f32.mrb[0].mxu0
      %7206 = vmatprep.mubr.f32.mxu0 0.0
      %7207 = vmatmul.mubr.f32.gmra.mrb[0].mxu0 %v6662
      %v7208 = vpop.f32.mrb[0].mxu0
      %v7209 = vadd.f32 %v7021, %v7208
      %v7210 = vpop.f32.mrb[0].mxu0
      %7211 = vmatprep.mubr.f32.mxu0 0.0
      %7212 = vmatmul.mubr.f32.gmra.mrb[0].mxu0 %v6664
      %v7213 = vpop.f32.mrb[0].mxu0
      %v7214 = vadd.f32 %v7026, %v7213
      %v7215 = vpop.f32.mrb[0].mxu0
      %7216 = vmatprep.mubr.f32.mxu0 0.0
      %7217 = vmatmul.mubr.f32.gmra.mrb[0].mxu0 %v6666
      %v7218 = vpop.f32.mrb[0].mxu0
      %v7219 = vadd.f32 %v7031, %v7218
      %v7220 = vpop.f32.mrb[0].mxu0
      %7221 = vmatprep.mubr.f32.mxu0 0.0
      %7222 = vmatmul.mubr.f32.gmra.mrb[0].mxu0 %v6668
      %v7223 = vpop.f32.mrb[0].mxu0
      %v7224 = vadd.f32 %v7036, %v7223
      %v7225 = vpop.f32.mrb[0].mxu0
      %7226 = vmatprep.mubr.f32.mxu0 0.0
      %7227 = vmatmul.mubr.f32.gmra.mrb[0].mxu0 %v6670
      %v7228 = vpop.f32.mrb[0].mxu0
      %v7229 = vadd.f32 %v7041, %v7228
      %v7230 = vpop.f32.mrb[0].mxu0
      %7231 = vmatprep.mubr.f32.mxu0 0.0
      %7232 = vmatmul.mubr.f32.gmra.mrb[0].mxu0 %v6672
      %v7233 = vpop.f32.mrb[0].mxu0
      %v7234 = vpop.f32.mrb[0].mxu0
      %7235 = vmatprep.mubr.f32.mxu0 0.0
      %7236 = vmatmul.mubr.f32.gmra.mrb[0].mxu0 %v6674
      %v7237 = vpop.f32.mrb[0].mxu0
      %v7238 = vpop.f32.mrb[0].mxu0
      %7239 = vdwg.mxu0
      %v7240 = vld [vmem:[%s4] sm:$0x1]
      %v7264 = vrot.slane %v7119, 1
      %v7265 = vrot.slane %v7124, 1
      %v7266 = vsel %vm489, %v7264, %v7265
      %v7267 = vrot.slane %v7129, 1
      %v7268 = vsel %vm489, %v7265, %v7267
      %v7269 = vrot.slane %v7134, 1
      %v7270 = vsel %vm489, %v7267, %v7269
      %v7271 = vrot.slane %v7139, 1
      %v7272 = vsel %vm489, %v7269, %v7271
      %v7273 = vrot.slane %v7144, 1
      %v7274 = vsel %vm489, %v7271, %v7273
      %v7275 = vrot.slane %v7149, 1
      %v7276 = vsel %vm489, %v7273, %v7275
      %v7277 = vrot.slane %v7154, 1
      %v7278 = vsel %vm489, %v7275, %v7277
      %v7279 = vrot.slane %v7159, 1
      %v7280 = vsel %vm489, %v7277, %v7279
      %v7281 = vrot.slane %v7164, 1
      %v7282 = vsel %vm489, %v7279, %v7281
      %v7283 = vrot.slane %v7169, 1
      %v7284 = vsel %vm489, %v7281, %v7283
      %v7285 = vrot.slane %v7174, 1
      %v7286 = vsel %vm489, %v7283, %v7285
      %v7287 = vrot.slane %v7179, 1
      %v7288 = vsel %vm489, %v7285, %v7287
      %v7289 = vrot.slane %v7184, 1
      %v7290 = vsel %vm489, %v7287, %v7289
      %v7291 = vrot.slane %v7189, 1
      %v7292 = vsel %vm489, %v7289, %v7291
      %v7293 = vrot.slane %v7194, 1
      %v7294 = vsel %vm489, %v7291, %v7293
      %v7295 = vrot.slane %v7199, 1
      %v7296 = vsel %vm489, %v7293, %v7295
      %v7297 = vrot.slane %v7204, 1
      %v7298 = vsel %vm489, %v7295, %v7297
      %v7299 = vrot.slane %v7209, 1
      %v7300 = vsel %vm489, %v7297, %v7299
      %v7301 = vrot.slane %v7214, 1
      %v7302 = vsel %vm489, %v7299, %v7301
      %v7303 = vrot.slane %v7219, 1
      %v7304 = vsel %vm489, %v7301, %v7303
      %v7305 = vrot.slane %v7224, 1
      %v7306 = vsel %vm489, %v7303, %v7305
      %v7307 = vrot.slane %v7229, 1
      %v7308 = vsel %vm489, %v7305, %v7307
      %v7331 = vmax.f32 %v7119, %v7266
      %v7332 = vmax.f32 %v7124, %v7268
      %v7333 = vmax.f32 %v7129, %v7270
      %v7334 = vmax.f32 %v7134, %v7272
      %v7335 = vmax.f32 %v7139, %v7274
      %v7336 = vmax.f32 %v7144, %v7276
      %v7337 = vmax.f32 %v7149, %v7278
      %v7338 = vmax.f32 %v7154, %v7280
      %v7339 = vmax.f32 %v7159, %v7282
      %v7340 = vmax.f32 %v7164, %v7284
      %v7341 = vmax.f32 %v7169, %v7286
      %v7342 = vmax.f32 %v7174, %v7288
      %v7343 = vmax.f32 %v7179, %v7290
      %v7344 = vmax.f32 %v7184, %v7292
      %v7345 = vmax.f32 %v7189, %v7294
      %v7346 = vmax.f32 %v7194, %v7296
      %v7347 = vmax.f32 %v7199, %v7298
      %v7348 = vmax.f32 %v7204, %v7300
      %v7349 = vmax.f32 %v7209, %v7302
      %v7350 = vmax.f32 %v7214, %v7304
      %v7351 = vmax.f32 %v7219, %v7306
      %v7352 = vmax.f32 %v7224, %v7308
      %v7353 = vrot.slane %v7119, 2
      %v7354 = vrot.slane %v7124, 2
      %v7355 = vsel %vm1136, %v7353, %v7354
      %v7356 = vrot.slane %v7129, 2
      %v7357 = vsel %vm1136, %v7354, %v7356
      %v7358 = vrot.slane %v7134, 2
      %v7359 = vsel %vm1136, %v7356, %v7358
      %v7360 = vrot.slane %v7139, 2
      %v7361 = vsel %vm1136, %v7358, %v7360
      %v7362 = vrot.slane %v7144, 2
      %v7363 = vsel %vm1136, %v7360, %v7362
      %v7364 = vrot.slane %v7149, 2
      %v7365 = vsel %vm1136, %v7362, %v7364
      %v7366 = vrot.slane %v7154, 2
      %v7367 = vsel %vm1136, %v7364, %v7366
      %v7368 = vrot.slane %v7159, 2
      %v7369 = vsel %vm1136, %v7366, %v7368
      %v7370 = vrot.slane %v7164, 2
      %v7371 = vsel %vm1136, %v7368, %v7370
      %v7372 = vrot.slane %v7169, 2
      %v7373 = vsel %vm1136, %v7370, %v7372
      %v7374 = vrot.slane %v7174, 2
      %v7375 = vsel %vm1136, %v7372, %v7374
      %v7376 = vrot.slane %v7179, 2
      %v7377 = vsel %vm1136, %v7374, %v7376
      %v7378 = vrot.slane %v7184, 2
      %v7379 = vsel %vm1136, %v7376, %v7378
      %v7380 = vrot.slane %v7189, 2
      %v7381 = vsel %vm1136, %v7378, %v7380
      %v7382 = vrot.slane %v7194, 2
      %v7383 = vsel %vm1136, %v7380, %v7382
      %v7384 = vrot.slane %v7199, 2
      %v7385 = vsel %vm1136, %v7382, %v7384
      %v7386 = vrot.slane %v7204, 2
      %v7387 = vsel %vm1136, %v7384, %v7386
      %v7388 = vrot.slane %v7209, 2
      %v7389 = vsel %vm1136, %v7386, %v7388
      %v7390 = vrot.slane %v7214, 2
      %v7391 = vsel %vm1136, %v7388, %v7390
      %v7392 = vrot.slane %v7219, 2
      %v7393 = vsel %vm1136, %v7390, %v7392
      %v7394 = vrot.slane %v7224, 2
      %v7395 = vsel %vm1136, %v7392, %v7394
      %v7396 = vrot.slane %v7229, 2
      %v7397 = vsel %vm1136, %v7394, %v7396
      %v7420 = vmax.f32 %v7331, %v7355
      %v7421 = vmax.f32 %v7332, %v7357
      %v7422 = vmax.f32 %v7333, %v7359
      %v7423 = vmax.f32 %v7334, %v7361
      %v7424 = vmax.f32 %v7335, %v7363
      %v7425 = vmax.f32 %v7336, %v7365
      %v7426 = vmax.f32 %v7337, %v7367
      %v7427 = vmax.f32 %v7338, %v7369
      %v7428 = vmax.f32 %v7339, %v7371
      %v7429 = vmax.f32 %v7340, %v7373
      %v7430 = vmax.f32 %v7341, %v7375
      %v7431 = vmax.f32 %v7342, %v7377
      %v7432 = vmax.f32 %v7343, %v7379
      %v7433 = vmax.f32 %v7344, %v7381
      %v7434 = vmax.f32 %v7345, %v7383
      %v7435 = vmax.f32 %v7346, %v7385
      %v7436 = vmax.f32 %v7347, %v7387
      %v7437 = vmax.f32 %v7348, %v7389
      %v7438 = vmax.f32 %v7349, %v7391
      %v7439 = vmax.f32 %v7350, %v7393
      %v7440 = vmax.f32 %v7351, %v7395
      %v7441 = vmax.f32 %v7352, %v7397
      %v7442 = vmax.f32 %v7420, %v7422
      %v7443 = vmax.f32 %v7421, %v7423
      %v7444 = vmax.f32 %v7424, %v7426
      %v7445 = vmax.f32 %v7425, %v7427
      %v7446 = vmax.f32 %v7428, %v7430
      %v7447 = vmax.f32 %v7429, %v7431
      %v7448 = vmax.f32 %v7432, %v7434
      %v7449 = vmax.f32 %v7433, %v7435
      %v7450 = vmax.f32 %v7436, %v7438
      %v7451 = vmax.f32 %v7437, %v7439
      %v7452 = vmax.f32 %v7442, %v7424
      %v7453 = vmax.f32 %v7443, %v7425
      %v7454 = vmax.f32 %v7444, %v7428
      %v7455 = vmax.f32 %v7445, %v7429
      %v7456 = vmax.f32 %v7446, %v7432
      %v7457 = vmax.f32 %v7447, %v7433
      %v7458 = vmax.f32 %v7448, %v7436
      %v7459 = vmax.f32 %v7449, %v7437
      %v7460 = vmax.f32 %v7450, %v7440
      %v7461 = vmax.f32 %v7451, %v7441
      %v7467 = vrot.slane %v7452, 1
      %v7468 = vrot.slane %v7454, 1
      %v7469 = vrot.slane %v7456, 1
      %v7470 = vrot.slane %v7458, 1
      %v7471 = vrot.slane %v7460, 1
      %v7477 = vrot.slane %v7452, 2
      %v7478 = vrot.slane %v7454, 2
      %v7479 = vrot.slane %v7456, 2
      %v7480 = vrot.slane %v7458, 2
      %v7481 = vrot.slane %v7460, 2
      %v7487 = vrot.slane %v7452, 3
      %v7488 = vrot.slane %v7454, 3
      %v7489 = vrot.slane %v7456, 3
      %v7490 = vrot.slane %v7458, 3
      %v7491 = vrot.slane %v7460, 3
      %v7502 = vrot.slane %v7453, 4
      %v7503 = vrot.slane %v7455, 4
      %v7504 = vrot.slane %v7457, 4
      %v7505 = vrot.slane %v7459, 4
      %v7506 = vrot.slane %v7461, 4
      %v7512 = vsel %vm5780, %v7452, %v7467
      %v7513 = vsel %vm5780, %v7454, %v7468
      %v7514 = vsel %vm5780, %v7456, %v7469
      %v7515 = vsel %vm5780, %v7458, %v7470
      %v7516 = vsel %vm5780, %v7460, %v7471
      %v7517 = vsel %vm5795, %v7512, %v7477
      %v7518 = vsel %vm5795, %v7513, %v7478
      %v7519 = vsel %vm5795, %v7514, %v7479
      %v7520 = vsel %vm5795, %v7515, %v7480
      %v7521 = vsel %vm5795, %v7516, %v7481
      %v7522 = vsel %vm3502, %v7517, %v7487
      %v7523 = vsel %vm3502, %v7518, %v7488
      %v7524 = vsel %vm3502, %v7519, %v7489
      %v7525 = vsel %vm3502, %v7520, %v7490
      %v7526 = vsel %vm3502, %v7521, %v7491
      %v7527 = vsel %vm5824, %v7522, %v7502
      %v7528 = vsel %vm5824, %v7523, %v7503
      %v7529 = vsel %vm5824, %v7524, %v7504
      %v7530 = vsel %vm5824, %v7525, %v7505
      %v7531 = vsel %vm5824, %v7526, %v7506
      %v7533 = vlaneseq
      %v7534 = vshrl.u32 %v7533, 7
      %v7535 = vsub.s32 0, %v7534
      %v7536 = vrot.slane %v7240, %v7535
      %v7538 = vadd.f32 %v7527, %v7536
      %v7539 = vadd.f32 %v7528, %v7536
      %v7540 = vadd.f32 %v7529, %v7536
      %v7541 = vadd.f32 %v7530, %v7536
      %v7542 = vadd.f32 %v7531, %v7536
      %v7543 = vmax.f32 %v7538, 0.0
      %v7544 = vmax.f32 %v7539, 0.0
      %v7545 = vmax.f32 %v7540, 0.0
      %v7546 = vmax.f32 %v7541, 0.0
      %v7547 = vmax.f32 %v7542, 0.0
      %vm7548 = vcmask 520192
      %7549 = vst.msk [vmem:[%s224] sm:$0x1f] %vm7548, %v7543
      %7550 = vst.msk [vmem:[%s224 + $0x8] sm:$0x1f] %vm7548, %v7544
      %7551 = vst.msk [vmem:[%s224 + $0x10] sm:$0x1f] %vm7548, %v7545
      %7552 = vst.msk [vmem:[%s224 + $0x18] sm:$0x1f] %vm7548, %v7546
      %7553 = vst.msk [vmem:[%s224 + $0x20] sm:$0x1f] %vm7548, %v7547
      %p7554 = scmp.lt.s32.totalorder %s16, 1
      %s7555 = scalar_select %p7554, %s16, 1
      %s7556 = smul.addr %s7555, 5
      %s7557 = smul.addr %s7556, 8
      %s7558 = scalar_lea.vmem %s5, %s7557
      // Predicated region
      $region41: #{net1_forward.1} parent=39 // pred_check
        %p7559 = pneg %p144
      $region42: #{net1_forward.1} parent=39 // pred_check_branch
        %7561 = sbr.rel (%p7559) target = $region44
      $region43: #{net1_forward.1} parent=39 // pred_region
        _
      $region44: #{net1_forward.1} parent=39 // pred_fallthru
        _
    $region40: #{net1_forward.1} parent=5 // pred_fallthru
      _
    %p7562 = scmp.le.s32.totalorder 2, %s11
    // Predicated region
    $region45: #{net1_forward.1} parent=5 // pred_check
      %p7563 = pneg %p7562
    $region46: #{net1_forward.1} parent=5 // pred_check_branch
      %7565 = sbr.rel (%p7563) target = $region48
    $region47: #{net1_forward.1} parent=5 // pred_region
      %s7566 = ssub.s32 %s11, 2
      // Predicated region
      $region49: #{net1_forward.1} parent=47 // pred_check
        %p7567 = pneg %p150
      $region50: #{net1_forward.1} parent=47 // pred_check_branch
        %7569 = sbr.rel (%p7567) target = $region52
      $region51: #{net1_forward.1} parent=47 // pred_region
        %p7570 = scmp.lt.s32.totalorder %s17, 1
        %s7571 = scalar_select %p7570, %s17, 1
        %s7572 = smul.addr %s7571, 5
        %s7573 = smul.addr %s7572, 8
        %s7574 = scalar_lea.vmem %s5, %s7573
      $region52: #{net1_forward.1} parent=47 // pred_fallthru
        _
    $region48: #{net1_forward.1} parent=5 // pred_fallthru
      _
  $region6: #{net1_forward.1} parent=0 // loop_footer
    %s15 = sadd.s32 1, %s11
  $region7: #{net1_forward.1} parent=0 // loop_footer_branch
    %10 = sbr.rel target = $region3
  $region8: #{net1_forward.1} parent=0 // loop_exit
    _

</llo_original>
